<compile_context>
chip_gen: v6e
topology: v6e:2x2x1
jax: 0.10.0
libtpu: 0.0.40
codegen_flags: <defaults>
</compile_context>

<pallas_src>
import functools

import jax
import jax.numpy as jnp
from jax import lax
from jax.experimental import pallas as pl
from jax.experimental.pallas import tpu as pltpu


# --------------------------------------------------------------------------- #
# Kernel
# --------------------------------------------------------------------------- #
def upsample_conv_kernel(x_ref, w_ref, b_ref, o_ref, *, ksize, stride, sf,
                         out_h, out_w):
    """Fused nearest-upsample + reflection-pad + conv for B_TILE samples.

    x_ref: (B_TILE, Cin, H, W)   original channel-first images (no upsample/pad)
    w_ref: (OC, K*K*Cin)         im2col-folded weights, column order (kh, kw, cin)
    b_ref: (OC, 1)               bias column (f32)
    o_ref: (B_TILE, OC, OH*OW)   lane-dense output (pixels on lanes)
    """
    B, Cin, H, W = x_ref.shape
    K = ksize
    p = K // 2
    Hu, Wu = H * sf, W * sf
    ohw = out_h * out_w

    cols = []
    for b in range(B):                                          # static batch loop
        x = x_ref[b]                                            # (Cin, H, W)

        # ---- nearest-neighbour upsample (vreg broadcast+reshape, no HBM) ----
        if sf > 1:
            x = jnp.broadcast_to(x[:, :, None, :], (Cin, H, sf, W)).reshape(
                Cin, Hu, W)
            x = jnp.broadcast_to(x[:, :, :, None], (Cin, Hu, W, sf)).reshape(
                Cin, Hu, Wu)

        # ---- reflection pad (rows then cols; matches ReflectionPad2d) -------
        if p > 0:
            top = [x[:, p - t:p - t + 1, :] for t in range(p)]          # rows p..1
            bot = [x[:, Hu - 2 - t:Hu - 1 - t, :] for t in range(p)]    # rows Hu-2..
            x = jnp.concatenate(top + [x] + bot, axis=1)
            left = [x[:, :, p - t:p - t + 1] for t in range(p)]
            right = [x[:, :, Wu - 2 - t:Wu - 1 - t] for t in range(p)]
            x = jnp.concatenate(left + [x] + right, axis=2)
        # x: (Cin, Hu + 2p, Wu + 2p), built entirely in VMEM/vregs.

        # ---- im2col, TRANSPOSED: taps on sublanes, pixels dense on lanes ----
        taps = []
        for i in range(K):                                      # static tap loops
            for j in range(K):
                tap = x[:, i:i + (out_h - 1) * stride + 1:stride,
                           j:j + (out_w - 1) * stride + 1:stride]       # (Cin,OH,OW)
                taps.append(tap.reshape(Cin, ohw))
        cols.append(jnp.concatenate(taps, axis=0))              # (K*K*Cin, OH*OW)

    # Batch folded into the lane (pixel) dimension of one MXU matmul.
    patches = cols[0] if B == 1 else jnp.concatenate(cols, axis=1)   # (KKC, B*OHW)

    acc = jnp.dot(w_ref[...], patches,
                  preferred_element_type=jnp.float32)           # (OC, B*OHW) f32
    acc = acc + b_ref[...]                                      # bias added once

    # Lane-aligned per-sample stores (OH*OW is a multiple of 128 at module shapes).
    for b in range(B):
        o_ref[b] = acc[:, b * ohw:(b + 1) * ohw].astype(o_ref.dtype)


# --------------------------------------------------------------------------- #
# Wrapper
# --------------------------------------------------------------------------- #
def _tpu_generation_info():
    """(vmem_capacity_bytes, lowercase device_kind) with safe fallbacks."""
    vmem_bytes = 64 * 2 ** 20                    # conservative: v7x per-TC VMEM
    try:
        vmem_bytes = int(pltpu.get_tpu_info().vmem_capacity_bytes)
    except Exception:
        pass
    kind = ""
    try:
        kind = jax.devices()[0].device_kind.lower()
    except Exception:
        pass
    return vmem_bytes, kind


def _pick_batch_tile(n, max_tile=8):
    """Largest divisor of n that is <= max_tile while keeping >= 2 grid steps."""
    if n <= 1:
        return 1
    best = 1
    for t in range(1, min(max_tile, n) + 1):
        if n % t == 0 and n // t >= 2:
            best = t
    return best


def upsample_conv2d(x_nchw, weight_oihw, bias, *, kernel_size, stride=1,
                    scale_factor=None, compute_dtype=None,
                    out_dtype=jnp.float32):
    """Forward pass of UpsampleConv2d.  x_nchw: (N, Cin, H, W) -> (N, OC, OH, OW)."""
    N, Cin, H, W = x_nchw.shape
    OC = weight_oihw.shape[0]
    K = int(kernel_size)
    s = int(stride)
    sf = int(scale_factor) if scale_factor else 1
    p = K // 2
    Hu, Wu = H * sf, W * sf
    Hp, Wp = Hu + 2 * p, Wu + 2 * p
    OH = (Hp - K) // s + 1
    OW = (Wp - K) // s + 1

    vmem_cap, kind = _tpu_generation_info()
    if compute_dtype is None:
        # v5e (and older) VPU has no bf16: pack/unpack on the upsample/pad path
        # outweighs the tiny DMA saving, so keep f32 there; bf16 on v6e/v7x.
        no_bf16_vpu = any(v in kind for v in ("v2", "v3", "v4", "v5"))
        compute_dtype = jnp.float32 if no_bf16_vpu else jnp.bfloat16

    bt = _pick_batch_tile(N)

    # Channel-first straight through: no NCHW->NHWC transpose in the wrapper.
    x = x_nchw.astype(compute_dtype)
    # (OC, Cin, KH, KW) -> (OC, KH, KW, Cin) -> (OC, KH*KW*Cin): column order
    # (kh, kw, cin) matches the in-kernel tap stacking order.
    w2 = jnp.transpose(weight_oihw, (0, 2, 3, 1)).reshape(OC, K * K * Cin)
    w2 = w2.astype(compute_dtype)
    b2 = (jnp.zeros((OC, 1), jnp.float32) if bias is None
          else bias.reshape(OC, 1).astype(jnp.float32))

    # Explicit, generation-aware VMEM budget (double-buffered blocks + resident
    # weights + in-kernel intermediates), capped below physical VMEM - headroom.
    isz = jnp.dtype(compute_dtype).itemsize
    osz = jnp.dtype(out_dtype).itemsize
    est = (2 * bt * Cin * H * W * isz                 # double-buffered input blocks
           + OC * K * K * Cin * isz + OC * 4          # resident weights + bias
           + 2 * bt * OC * OH * OW * osz              # double-buffered output blocks
           + bt * Cin * Hp * Wp * isz                 # padded-upsampled images
           + bt * K * K * Cin * OH * OW * isz         # im2col patch matrices
           + bt * OC * OH * OW * 4)                   # f32 accumulator
    cap = max(vmem_cap - 16 * 2 ** 20, 32 * 2 ** 20)  # ~48 MiB on v7x, ~112 on v6e
    vmem_limit = int(min(max(2 * est, 8 * 2 ** 20), cap))

    kernel = functools.partial(upsample_conv_kernel, ksize=K, stride=s, sf=sf,
                               out_h=OH, out_w=OW)

    cost = pl.CostEstimate(
        flops=2 * N * OH * OW * K * K * Cin * OC,
        transcendentals=0,
        bytes_accessed=(N * Cin * H * W * isz
                        + OC * K * K * Cin * isz + OC * 4
                        + N * OC * OH * OW * osz))

    out = pl.pallas_call(
        kernel,
        out_shape=jax.ShapeDtypeStruct((N, OC, OH * OW), out_dtype),
        grid_spec=pltpu.PrefetchScalarGridSpec(
            num_scalar_prefetch=0,
            grid=(N // bt,),
            in_specs=[
                pl.BlockSpec((bt, Cin, H, W), lambda n: (n, 0, 0, 0)),
                pl.BlockSpec((OC, K * K * Cin), lambda n: (0, 0)),
                pl.BlockSpec((OC, 1), lambda n: (0, 0)),
            ],
            out_specs=pl.BlockSpec((bt, OC, OH * OW), lambda n: (n, 0, 0)),
        ),
        compiler_params=pltpu.CompilerParams(
            dimension_semantics=("parallel",),
            vmem_limit_bytes=vmem_limit,
        ),
        cost_estimate=cost,
    )(x, w2, b2)

    return out.reshape(N, OC, OH, OW)          # already NC(HW): reshape only


# --------------------------------------------------------------------------- #
# Pure-JAX reference (same semantics as the PyTorch module)
# --------------------------------------------------------------------------- #
def reference_upsample_conv2d(x_nchw, weight_oihw, bias, *, kernel_size,
                              stride=1, scale_factor=None):
    x = x_nchw
    if scale_factor:
        sf = int(scale_factor)
        x = jnp.repeat(x, sf, axis=2)
        x = jnp.repeat(x, sf, axis=3)
    p = kernel_size // 2
    x = jnp.pad(x, ((0, 0), (0, 0), (p, p), (p, p)), mode="reflect")
    out = lax.conv_general_dilated(
        x, weight_oihw, window_strides=(stride, stride), padding="VALID",
        dimension_numbers=("NCHW", "OIHW", "NCHW"))
    if bias is not None:
        out = out + bias.reshape(1, -1, 1, 1)
    return out


if __name__ == "__main__":
    # Module config: UpsampleConv2d(in_channels=4, out_channels=8,
    #                               kernel_size=3, stride=1, scale_factor=2)
    in_channels, out_channels, kernel_size, stride, scale_factor = 4, 8, 3, 1, 2

    key = jax.random.PRNGKey(0)
    kx, kw, kb = jax.random.split(key, 3)

    # Deterministic parameter init (PyTorch Conv2d-style uniform bounds).
    fan_in = in_channels * kernel_size * kernel_size
    bound = 1.0 / (fan_in ** 0.5)
    weight = jax.random.uniform(kw, (out_channels, in_channels, kernel_size,
                                     kernel_size), jnp.float32, -bound, bound)
    bias = jax.random.uniform(kb, (out_channels,), jnp.float32, -bound, bound)

    # Small NCHW input.
    x = jax.random.normal(kx, (2, in_channels, 16, 16), jnp.float32)

    out = upsample_conv2d(x, weight, bias, kernel_size=kernel_size,
                          stride=stride, scale_factor=scale_factor)
    out = jax.block_until_ready(out)

    ref = reference_upsample_conv2d(x, weight, bias, kernel_size=kernel_size,
                                    stride=stride, scale_factor=scale_factor)
    ref = jax.block_until_ready(ref)

    assert out.shape == (2, out_channels, 32, 32), out.shape
    assert jnp.allclose(out, ref, atol=5e-2, rtol=5e-2), (
        float(jnp.max(jnp.abs(out - ref))))

    print("KERNEL_OK")
</pallas_src>

<mosaic_0001>
module attributes {stable_mosaic.version = 11 : i64} {
  func.func @upsample_conv_kernel(%arg0: i32, %arg1: memref<1x4x16x16xbf16, #tpu.memory_space<vmem>>, %arg2: memref<8x36xbf16, #tpu.memory_space<vmem>>, %arg3: memref<8x1xf32, #tpu.memory_space<vmem>>, %arg4: memref<1x8x1024xf32, #tpu.memory_space<vmem>>) attributes {dimension_semantics = [#tpu.dimension_semantics<parallel>], iteration_bounds = array<i64: 2>, scalar_prefetch = 0 : i64, scratch_operands = 0 : i64, tpu.core_type = #tpu.core_type<tc>, window_params = [{transform_indices = @transform_0, window_bounds = array<i64: 1, 4, 16, 16>}, {pipeline_mode = #tpu.pipeline_mode<synchronous>, transform_indices = @transform_1, window_bounds = array<i64: 8, 36>}, {pipeline_mode = #tpu.pipeline_mode<synchronous>, transform_indices = @transform_2, window_bounds = array<i64: 8, 1>}, {transform_indices = @transform_3, window_bounds = array<i64: 1, 8, 1024>}]} {
    %c0 = arith.constant 0 : index
    %c0_0 = arith.constant 0 : index
    %c0_1 = arith.constant 0 : index
    %c0_2 = arith.constant 0 : index
    %0 = vector.load %arg1[%c0, %c0_0, %c0_1, %c0_2] : memref<1x4x16x16xbf16, #tpu.memory_space<vmem>>, vector<1x4x16x16xbf16>
    %1 = vector.shape_cast %0 : vector<1x4x16x16xbf16> to vector<4x16x16xbf16>
    %2 = vector.shape_cast %1 : vector<4x16x16xbf16> to vector<4x16x1x16xbf16>
    %3 = vector.shape_cast %2 : vector<4x16x1x16xbf16> to vector<4x16x1x16xbf16>
    %4 = vector.broadcast %3 : vector<4x16x1x16xbf16> to vector<4x16x2x16xbf16>
    %5 = vector.shape_cast %4 : vector<4x16x2x16xbf16> to vector<4x32x16xbf16>
    %6 = vector.shape_cast %5 : vector<4x32x16xbf16> to vector<4x32x16x1xbf16>
    %7 = vector.shape_cast %6 : vector<4x32x16x1xbf16> to vector<4x32x16x1xbf16>
    %8 = vector.broadcast %7 : vector<4x32x16x1xbf16> to vector<4x32x16x2xbf16>
    %9 = vector.shape_cast %8 : vector<4x32x16x2xbf16> to vector<4x32x32xbf16>
    %10 = vector.extract_strided_slice %9 {offsets = [0, 1, 0], sizes = [4, 1, 32], strides = [1, 1, 1]} : vector<4x32x32xbf16> to vector<4x1x32xbf16>
    %11 = vector.extract_strided_slice %9 {offsets = [0, 30, 0], sizes = [4, 1, 32], strides = [1, 1, 1]} : vector<4x32x32xbf16> to vector<4x1x32xbf16>
    %12 = tpu.concatenate %10, %9, %11 in 1 : vector<4x1x32xbf16>, vector<4x32x32xbf16>, vector<4x1x32xbf16> -> vector<4x34x32xbf16>
    %13 = vector.extract_strided_slice %12 {offsets = [0, 0, 1], sizes = [4, 34, 1], strides = [1, 1, 1]} : vector<4x34x32xbf16> to vector<4x34x1xbf16>
    %14 = vector.extract_strided_slice %12 {offsets = [0, 0, 30], sizes = [4, 34, 1], strides = [1, 1, 1]} : vector<4x34x32xbf16> to vector<4x34x1xbf16>
    %15 = tpu.concatenate %13, %12, %14 in 2 : vector<4x34x1xbf16>, vector<4x34x32xbf16>, vector<4x34x1xbf16> -> vector<4x34x34xbf16>
    %16 = vector.extract_strided_slice %15 {offsets = [0, 0, 0], sizes = [4, 32, 32], strides = [1, 1, 1]} : vector<4x34x34xbf16> to vector<4x32x32xbf16>
    %17 = vector.shape_cast %16 : vector<4x32x32xbf16> to vector<4x1024xbf16>
    %18 = vector.extract_strided_slice %15 {offsets = [0, 0, 1], sizes = [4, 32, 32], strides = [1, 1, 1]} : vector<4x34x34xbf16> to vector<4x32x32xbf16>
    %19 = vector.shape_cast %18 : vector<4x32x32xbf16> to vector<4x1024xbf16>
    %20 = vector.extract_strided_slice %15 {offsets = [0, 0, 2], sizes = [4, 32, 32], strides = [1, 1, 1]} : vector<4x34x34xbf16> to vector<4x32x32xbf16>
    %21 = vector.shape_cast %20 : vector<4x32x32xbf16> to vector<4x1024xbf16>
    %22 = vector.extract_strided_slice %15 {offsets = [0, 1, 0], sizes = [4, 32, 32], strides = [1, 1, 1]} : vector<4x34x34xbf16> to vector<4x32x32xbf16>
    %23 = vector.shape_cast %22 : vector<4x32x32xbf16> to vector<4x1024xbf16>
    %24 = vector.extract_strided_slice %15 {offsets = [0, 1, 1], sizes = [4, 32, 32], strides = [1, 1, 1]} : vector<4x34x34xbf16> to vector<4x32x32xbf16>
    %25 = vector.shape_cast %24 : vector<4x32x32xbf16> to vector<4x1024xbf16>
    %26 = vector.extract_strided_slice %15 {offsets = [0, 1, 2], sizes = [4, 32, 32], strides = [1, 1, 1]} : vector<4x34x34xbf16> to vector<4x32x32xbf16>
    %27 = vector.shape_cast %26 : vector<4x32x32xbf16> to vector<4x1024xbf16>
    %28 = vector.extract_strided_slice %15 {offsets = [0, 2, 0], sizes = [4, 32, 32], strides = [1, 1, 1]} : vector<4x34x34xbf16> to vector<4x32x32xbf16>
    %29 = vector.shape_cast %28 : vector<4x32x32xbf16> to vector<4x1024xbf16>
    %30 = vector.extract_strided_slice %15 {offsets = [0, 2, 1], sizes = [4, 32, 32], strides = [1, 1, 1]} : vector<4x34x34xbf16> to vector<4x32x32xbf16>
    %31 = vector.shape_cast %30 : vector<4x32x32xbf16> to vector<4x1024xbf16>
    %32 = vector.extract_strided_slice %15 {offsets = [0, 2, 2], sizes = [4, 32, 32], strides = [1, 1, 1]} : vector<4x34x34xbf16> to vector<4x32x32xbf16>
    %33 = vector.shape_cast %32 : vector<4x32x32xbf16> to vector<4x1024xbf16>
    %34 = tpu.concatenate %17, %19, %21, %23, %25, %27, %29, %31, %33 in 0 : vector<4x1024xbf16>, vector<4x1024xbf16>, vector<4x1024xbf16>, vector<4x1024xbf16>, vector<4x1024xbf16>, vector<4x1024xbf16>, vector<4x1024xbf16>, vector<4x1024xbf16>, vector<4x1024xbf16> -> vector<36x1024xbf16>
    %c0_3 = arith.constant 0 : index
    %c0_4 = arith.constant 0 : index
    %35 = vector.load %arg2[%c0_3, %c0_4] : memref<8x36xbf16, #tpu.memory_space<vmem>>, vector<8x36xbf16>
    %cst = arith.constant dense<0.000000e+00> : vector<8x1024xf32>
    %36 = tpu.matmul %35, %34, %cst {dimension_numbers = #tpu.dot_dimension_numbers<[1], [0], [0], [1], [0, 0, 1, 1], [], []>} : vector<8x36xbf16>, vector<36x1024xbf16>, vector<8x1024xf32> -> vector<8x1024xf32>
    %c0_5 = arith.constant 0 : index
    %c0_6 = arith.constant 0 : index
    %37 = vector.load %arg3[%c0_5, %c0_6] : memref<8x1xf32, #tpu.memory_space<vmem>>, vector<8x1xf32>
    %38 = vector.broadcast %37 : vector<8x1xf32> to vector<8x1024xf32>
    %39 = arith.addf %36, %38 : vector<8x1024xf32>
    %c0_7 = arith.constant 0 : index
    %c0_8 = arith.constant 0 : index
    %c0_9 = arith.constant 0 : index
    %40 = vector.load %arg4[%c0_7, %c0_8, %c0_9] : memref<1x8x1024xf32, #tpu.memory_space<vmem>>, vector<1x8x1024xf32>
    %41 = vector.shape_cast %40 : vector<1x8x1024xf32> to vector<8x1024xf32>
    %42 = vector.shape_cast %39 : vector<8x1024xf32> to vector<1x8x1024xf32>
    tpu.vector_store %arg4[%c0_7, %c0_8, %c0_9], %42 {strides = array<i32>} : memref<1x8x1024xf32, #tpu.memory_space<vmem>>, vector<1x8x1024xf32>,
    return
  }
  func.func @transform_0(%arg0: i32) -> (i32, i32, i32, i32) {
    %c0_i32 = arith.constant 0 : i32
    %c0_i32_0 = arith.constant 0 : i32
    %c0_i32_1 = arith.constant 0 : i32
    %c0_i32_2 = arith.constant 0 : i32
    return %arg0, %c0_i32, %c0_i32_0, %c0_i32_1 : i32, i32, i32, i32
  }
  func.func @transform_1(%arg0: i32) -> (i32, i32) {
    %c0_i32 = arith.constant 0 : i32
    %c0_i32_0 = arith.constant 0 : i32
    %c0_i32_1 = arith.constant 0 : i32
    return %c0_i32, %c0_i32_0 : i32, i32
  }
  func.func @transform_2(%arg0: i32) -> (i32, i32) {
    %c0_i32 = arith.constant 0 : i32
    %c0_i32_0 = arith.constant 0 : i32
    %c0_i32_1 = arith.constant 0 : i32
    return %c0_i32, %c0_i32_0 : i32, i32
  }
  func.func @transform_3(%arg0: i32) -> (i32, i32, i32) {
    %c0_i32 = arith.constant 0 : i32
    %c0_i32_0 = arith.constant 0 : i32
    %c0_i32_1 = arith.constant 0 : i32
    return %arg0, %c0_i32, %c0_i32_0 : i32, i32, i32
  }
}

</mosaic_0001>

<llo_original>
// kernel: tpu_custom_call.1
$region0: #{tpu_custom_call.1}
  #allocation0 [shape = 'u32[]', space=smem, size = 0x4, offset = 0x4, fixed_abs, tag = 'smem constant byte address 0x4 - core index']
  #allocation1 [shape = 'u32[144,128]{1,0:T(1,128)}', space=vmem, size = 0x12000, scoped, tag = 'internal scratch']
  %s0 = inlined_call_operand.hbm [shape: bf16[2,4,16,16], index: 0, kind: input, shape index: {}]
  %s1 = inlined_call_operand.vmem [shape: bf16[8,36], index: 1, kind: input, shape index: {}]
  %s2 = inlined_call_operand.vmem [shape: f32[8,1], index: 2, kind: input, shape index: {}]
  %s3 = inlined_call_operand.hbm [shape: f32[2,8,1024], index: 3, kind: output, shape index: {}]
  %s4 = sld [smem:[#allocation0]]
  $region49: #{tpu_custom_call.1} parent=0
    _
  %s6 = ssub.s32 1, %s4
  %s7 = scalar_select 0, %s6, %s4
  $region1: #{tpu_custom_call.1} parent=0
    #allocation2 [shape = 'u8[32768]{0}', space=vmem, size = 0x8000, scoped, tag = 'input window, operand 0']
    #allocation3 [shape = 's32[2]{0}', space=sflag, size = 0x8, scoped, tag = 'scoped memory for tpu_custom_call.1']
    #allocation4 [shape = 's32[2]{0}', space=sflag, size = 0x8, scoped, tag = 'scoped memory for tpu_custom_call.1']
    #allocation5 [shape = 'u8[65536]{0}', space=vmem, size = 0x10000, scoped, tag = 'output window, operand 0']
    %8 = vsyncpa [#allocation3], 0
    %s9 = scalar_lea.sflag [#allocation3], 1
    %10 = vsyncpa %s9, 0
    %11 = vsyncpa [#allocation4], 0
    %s12 = scalar_lea.sflag [#allocation4], 1
    %13 = vsyncpa %s12, 0
    loop: start=0, step=1, limit=4
    $region2: #{tpu_custom_call.1} parent=1 // loop_pre_header
      _
    $region3: #{tpu_custom_call.1} parent=1 // loop_header
      %s15 = sphi 0, %s19
      %p16 = scmp.ge.s32.totalorder %s15, 4
      %s25 = sphi 0, %s27
      %s28 = sphi 0, %s25
      %s29 = sphi 0, %s28
      %s45 = sphi 0, %s29
      %s49 = sphi 0, %s49
      %s51 = sphi 0, %s49
      %s52 = sphi 0, %s51
      %s66 = sphi 0, %s52
      %s70 = sphi 0, %s70
      %s72 = sphi 0, %s70
      %s73 = sphi 0, %s72
      %s87 = sphi 0, %s73
      %s93 = sphi 0, %s95
      %s96 = sphi 0, %s93
      %s97 = sphi 0, %s96
      %s113 = sphi 0, %s97
    $region4: #{tpu_custom_call.1} parent=1 // loop_header_branch
      %18 = sbr.rel (%p16) target = $region8
    $region5: #{tpu_custom_call.1} parent=1 // loop_body
      %s20 = ssub.s32 %s15, 1
      %s21 = ssub.s32 %s15, 2
      %s22 = sadd.s32 %s15, 1
      %s23 = ssub.s32 %s15, %s22
      %p24 = scmp.eq.s32.totalorder %s23, 0
      %s26 = sadd.s32 %s25, 1
      %s27 = scalar_select %p24, %s25, %s26
      %p30 = pneg %p24
      %p31 = scmp.eq.s32.totalorder %s15, 1
      %p32 = por %p30, %p31
      %p33 = scmp.ne.s32.totalorder %s25, %s28
      %p34 = scmp.eq.s32.totalorder %s15, 0
      %p35 = por %p33, %p34
      %p36 = scmp.ne.s32.totalorder %s25, %s28
      %p37 = scmp.eq.s32.totalorder %s20, 1
      %p38 = por %p36, %p37
      %p39 = scmp.ne.s32.totalorder %s28, %s29
      %p40 = scmp.eq.s32.totalorder %s20, 0
      %p41 = por %p39, %p40
      %p42 = scmp.ne.s32.totalorder %s28, %s29
      %p43 = scmp.eq.s32.totalorder %s21, 1
      %p44 = por %p42, %p43
      %p46 = scmp.ne.s32.totalorder %s29, %s45
      %p47 = scmp.eq.s32.totalorder %s21, 0
      %p48 = por %p46, %p47
      %s50 = sadd.s32 %s49, 1
      %p53 = scmp.eq.s32.totalorder %s15, 1
      %p54 = scmp.ne.s32.totalorder %s49, %s51
      %p55 = scmp.eq.s32.totalorder %s15, 0
      %p56 = por %p54, %p55
      %p57 = scmp.ne.s32.totalorder %s49, %s51
      %p58 = scmp.eq.s32.totalorder %s20, 1
      %p59 = por %p57, %p58
      %p60 = scmp.ne.s32.totalorder %s51, %s52
      %p61 = scmp.eq.s32.totalorder %s20, 0
      %p62 = por %p60, %p61
      %p63 = scmp.ne.s32.totalorder %s51, %s52
      %p64 = scmp.eq.s32.totalorder %s21, 1
      %p65 = por %p63, %p64
      %p67 = scmp.ne.s32.totalorder %s52, %s66
      %p68 = scmp.eq.s32.totalorder %s21, 0
      %p69 = por %p67, %p68
      %s71 = sadd.s32 %s70, 1
      %p74 = scmp.eq.s32.totalorder %s15, 1
      %p75 = scmp.ne.s32.totalorder %s70, %s72
      %p76 = scmp.eq.s32.totalorder %s15, 0
      %p77 = por %p75, %p76
      %p78 = scmp.ne.s32.totalorder %s70, %s72
      %p79 = scmp.eq.s32.totalorder %s20, 1
      %p80 = por %p78, %p79
      %p81 = scmp.ne.s32.totalorder %s72, %s73
      %p82 = scmp.eq.s32.totalorder %s20, 0
      %p83 = por %p81, %p82
      %p84 = scmp.ne.s32.totalorder %s72, %s73
      %p85 = scmp.eq.s32.totalorder %s21, 1
      %p86 = por %p84, %p85
      %p88 = scmp.ne.s32.totalorder %s73, %s87
      %p89 = scmp.eq.s32.totalorder %s21, 0
      %p90 = por %p88, %p89
      %s91 = ssub.s32 %s15, %s22
      %p92 = scmp.eq.s32.totalorder %s91, 0
      %s94 = sadd.s32 %s93, 1
      %s95 = scalar_select %p92, %s93, %s94
      %p98 = pneg %p92
      %p99 = scmp.eq.s32.totalorder %s15, 1
      %p100 = por %p98, %p99
      %p101 = scmp.ne.s32.totalorder %s93, %s96
      %p102 = scmp.eq.s32.totalorder %s15, 0
      %p103 = por %p101, %p102
      %p104 = scmp.ne.s32.totalorder %s93, %s96
      %p105 = scmp.eq.s32.totalorder %s20, 1
      %p106 = por %p104, %p105
      %p107 = scmp.ne.s32.totalorder %s96, %s97
      %p108 = scmp.eq.s32.totalorder %s20, 0
      %p109 = por %p107, %p108
      %p110 = scmp.ne.s32.totalorder %s96, %s97
      %p111 = scmp.eq.s32.totalorder %s21, 1
      %p112 = por %p110, %p111
      %p114 = scmp.ne.s32.totalorder %s97, %s113
      %p115 = scmp.eq.s32.totalorder %s21, 0
      %p116 = por %p114, %p115
      %p117 = scmp.le.s32.totalorder 1, %s15
      %p118 = scmp.lt.s32.totalorder %s15, 3
      %p119 = pnand %p117, %p118
      %p120 = pneg %p119
      // Predicated region
      $region9: #{tpu_custom_call.1} parent=5 // pred_check
        _
      $region10: #{tpu_custom_call.1} parent=5 // pred_check_branch
        %122 = sbr.rel (%p119) target = $region12
      $region11: #{tpu_custom_call.1} parent=5 // pred_region
        %s123 = ssub.s32 %s15, 1
        // Predicated region
        $region13: #{tpu_custom_call.1} parent=11 // pred_check
          %p124 = pneg %p62
        $region14: #{tpu_custom_call.1} parent=11 // pred_check_branch
          %126 = sbr.rel (%p124) target = $region16
        $region15: #{tpu_custom_call.1} parent=11 // pred_region
          _
        $region16: #{tpu_custom_call.1} parent=11 // pred_fallthru
          _
        // Predicated region
        $region17: #{tpu_custom_call.1} parent=11 // pred_check
          %p127 = pneg %p83
        $region18: #{tpu_custom_call.1} parent=11 // pred_check_branch
          %129 = sbr.rel (%p127) target = $region20
        $region19: #{tpu_custom_call.1} parent=11 // pred_region
          _
        $region20: #{tpu_custom_call.1} parent=11 // pred_fallthru
          _
      $region12: #{tpu_custom_call.1} parent=5 // pred_fallthru
        _
      %p130 = scmp.lt.s32.totalorder %s15, 2
      // Predicated region
      $region21: #{tpu_custom_call.1} parent=5 // pred_check
        %p131 = pneg %p130
      $region22: #{tpu_custom_call.1} parent=5 // pred_check_branch
        %133 = sbr.rel (%p131) target = $region24
      $region23: #{tpu_custom_call.1} parent=5 // pred_region
        // Predicated region
        $region25: #{tpu_custom_call.1} parent=23 // pred_check
          %p134 = pneg %p35
        $region26: #{tpu_custom_call.1} parent=23 // pred_check_branch
          %136 = sbr.rel (%p134) target = $region28
        $region27: #{tpu_custom_call.1} parent=23 // pred_region
          %s137 = sand.u32 %s25, 1
          %s138 = scalar_lea.sflag [#allocation3], %s137
          %s139 = sand.u32 %s25, 1
          %s140 = smul.addr %s139, 32
          %s141 = scalar_lea.vmem [#allocation2], %s140
          %s143 = ssub.s32 512, 512
          %144 = vsyncadd %s138, %s143
          %s145 = smul.addr %s15, 8
          %s146 = smul.addr %s145, 64
          %s147 = scalar_lea.hbm %s0, %s146
          %s148 = sshll.u32 %s141, 4
          %s149 = int_to_ptr.vmem [resolvable:$true] %s148
          %154 = dma.hbm_to_vmem [thread:$0]  %s147, 512, %s149, %s138, 64, 64, 4
        $region28: #{tpu_custom_call.1} parent=23 // pred_fallthru
          _
      $region24: #{tpu_custom_call.1} parent=5 // pred_fallthru
        _
      %p155 = scmp.le.s32.totalorder 1, %s15
      %p156 = scmp.lt.s32.totalorder %s15, 3
      %p157 = pnand %p155, %p156
      %p158 = pneg %p157
      // Predicated region
      $region29: #{tpu_custom_call.1} parent=5 // pred_check
        _
      $region30: #{tpu_custom_call.1} parent=5 // pred_check_branch
        %160 = sbr.rel (%p157) target = $region32
      $region31: #{tpu_custom_call.1} parent=5 // pred_region
        %s161 = ssub.s32 %s15, 1
        %s162 = sand.u32 %s28, 1
        %s163 = scalar_lea.sflag [#allocation3], %s162
        %s164 = sand.u32 %s28, 1
        %s165 = smul.addr %s164, 32
        %s166 = scalar_lea.vmem [#allocation2], %s165
        // Predicated region
        $region33: #{tpu_custom_call.1} parent=31 // pred_check
          %p167 = pneg %p41
        $region34: #{tpu_custom_call.1} parent=31 // pred_check_branch
          %169 = sbr.rel (%p167) target = $region36
        $region35: #{tpu_custom_call.1} parent=31 // pred_region
          %170 = dma.done %s163, 512
        $region36: #{tpu_custom_call.1} parent=31 // pred_fallthru
          _
        %s171 = sand.u32 %s28, 1
        %s172 = scalar_lea.sflag [#allocation3], %s171
        %s173 = sand.u32 %s28, 1
        %s174 = smul.addr %s173, 32
        %s175 = scalar_lea.vmem [#allocation2], %s174
        %p176 = pneg %p41
        %p177 = pneg %p38
        %p178 = pneg %p62
        %p179 = pneg %p59
        %p180 = pneg %p83
        %p181 = pneg %p80
        %p182 = pneg %p109
        %p183 = pneg %p106
        %s184 = sand.u32 %s96, 1
        %s185 = scalar_lea.sflag [#allocation4], %s184
        %s186 = sand.u32 %s96, 1
        %s187 = smul.addr %s186, 64
        %s188 = scalar_lea.vmem [#allocation5], %s187
        %v190 = vld [vmem:[%s166] sm:$0xf]
        %v191 = vld [vmem:[%s166 + $0x4] sm:$0xf]
        %v192 = vld [vmem:[%s166 + $0x8] sm:$0xf]
        %v193 = vld [vmem:[%s166 + $0xc] sm:$0xf]
        %v194 = vld [vmem:[%s166 + $0x10] sm:$0xf]
        %v195 = vld [vmem:[%s166 + $0x14] sm:$0xf]
        %v196 = vld [vmem:[%s166 + $0x18] sm:$0xf]
        %v197 = vld [vmem:[%s166 + $0x1c] sm:$0xf]
        %v207 = vunpack.c.l.s4 1966171168
        %v208 = vunpack.c.0.s8 %v207
        %v209 = vlaneseq
        %v210 = vshrl.u32 %v209, 7
        %v211 = vsub.s32 %v208, %v210
        %v212 = vrot.slane %v190, %v211
        %v213 = vcombine.high %v212, %v212
        %v215 = vunpack.c.l.s4 1966171168
        %v216 = vunpack.c.0.s8 %v215
        %v217 = vlaneseq
        %v218 = vshrl.u32 %v217, 7
        %v219 = vsub.s32 %v216, %v218
        %v220 = vrot.slane %v212, %v219
        %v222 = vunpack.c.l.s4 1966171168
        %v223 = vunpack.c.0.s8 %v222
        %v224 = vlaneseq
        %v225 = vshrl.u32 %v224, 7
        %v226 = vsub.s32 %v223, %v225
        %v227 = vrot.slane %v213, %v226
        %v228 = vcombine.high %v220, %v220
        %v229 = vcombine.high %v227, %v227
        %v231 = vunpack.c.l.s4 1966171168
        %v232 = vunpack.c.0.s8 %v231
        %v233 = vlaneseq
        %v234 = vshrl.u32 %v233, 7
        %v235 = vsub.s32 %v232, %v234
        %v236 = vrot.slane %v191, %v235
        %v237 = vcombine.high %v236, %v236
        %v239 = vunpack.c.l.s4 1966171168
        %v240 = vunpack.c.0.s8 %v239
        %v241 = vlaneseq
        %v242 = vshrl.u32 %v241, 7
        %v243 = vsub.s32 %v240, %v242
        %v244 = vrot.slane %v236, %v243
        %v246 = vunpack.c.l.s4 1966171168
        %v247 = vunpack.c.0.s8 %v246
        %v248 = vlaneseq
        %v249 = vshrl.u32 %v248, 7
        %v250 = vsub.s32 %v247, %v249
        %v251 = vrot.slane %v237, %v250
        %v252 = vcombine.high %v244, %v244
        %v253 = vcombine.high %v251, %v251
        %v255 = vunpack.c.l.s4 1966171168
        %v256 = vunpack.c.0.s8 %v255
        %v257 = vlaneseq
        %v258 = vshrl.u32 %v257, 7
        %v259 = vsub.s32 %v256, %v258
        %v260 = vrot.slane %v192, %v259
        %v261 = vcombine.high %v260, %v260
        %v263 = vunpack.c.l.s4 1966171168
        %v264 = vunpack.c.0.s8 %v263
        %v265 = vlaneseq
        %v266 = vshrl.u32 %v265, 7
        %v267 = vsub.s32 %v264, %v266
        %v268 = vrot.slane %v260, %v267
        %v270 = vunpack.c.l.s4 1966171168
        %v271 = vunpack.c.0.s8 %v270
        %v272 = vlaneseq
        %v273 = vshrl.u32 %v272, 7
        %v274 = vsub.s32 %v271, %v273
        %v275 = vrot.slane %v261, %v274
        %v276 = vcombine.high %v268, %v268
        %v277 = vcombine.high %v275, %v275
        %v279 = vunpack.c.l.s4 1966171168
        %v280 = vunpack.c.0.s8 %v279
        %v281 = vlaneseq
        %v282 = vshrl.u32 %v281, 7
        %v283 = vsub.s32 %v280, %v282
        %v284 = vrot.slane %v193, %v283
        %v285 = vcombine.high %v284, %v284
        %v287 = vunpack.c.l.s4 1966171168
        %v288 = vunpack.c.0.s8 %v287
        %v289 = vlaneseq
        %v290 = vshrl.u32 %v289, 7
        %v291 = vsub.s32 %v288, %v290
        %v292 = vrot.slane %v284, %v291
        %v294 = vunpack.c.l.s4 1966171168
        %v295 = vunpack.c.0.s8 %v294
        %v296 = vlaneseq
        %v297 = vshrl.u32 %v296, 7
        %v298 = vsub.s32 %v295, %v297
        %v299 = vrot.slane %v285, %v298
        %v300 = vcombine.high %v292, %v292
        %v301 = vcombine.high %v299, %v299
        %v303 = vunpack.c.l.s4 1966171168
        %v304 = vunpack.c.0.s8 %v303
        %v305 = vlaneseq
        %v306 = vshrl.u32 %v305, 7
        %v307 = vsub.s32 %v304, %v306
        %v308 = vrot.slane %v194, %v307
        %v309 = vcombine.high %v308, %v308
        %v311 = vunpack.c.l.s4 1966171168
        %v312 = vunpack.c.0.s8 %v311
        %v313 = vlaneseq
        %v314 = vshrl.u32 %v313, 7
        %v315 = vsub.s32 %v312, %v314
        %v316 = vrot.slane %v308, %v315
        %v318 = vunpack.c.l.s4 1966171168
        %v319 = vunpack.c.0.s8 %v318
        %v320 = vlaneseq
        %v321 = vshrl.u32 %v320, 7
        %v322 = vsub.s32 %v319, %v321
        %v323 = vrot.slane %v309, %v322
        %v324 = vcombine.high %v316, %v316
        %v325 = vcombine.high %v323, %v323
        %v327 = vunpack.c.l.s4 1966171168
        %v328 = vunpack.c.0.s8 %v327
        %v329 = vlaneseq
        %v330 = vshrl.u32 %v329, 7
        %v331 = vsub.s32 %v328, %v330
        %v332 = vrot.slane %v195, %v331
        %v333 = vcombine.high %v332, %v332
        %v335 = vunpack.c.l.s4 1966171168
        %v336 = vunpack.c.0.s8 %v335
        %v337 = vlaneseq
        %v338 = vshrl.u32 %v337, 7
        %v339 = vsub.s32 %v336, %v338
        %v340 = vrot.slane %v332, %v339
        %v342 = vunpack.c.l.s4 1966171168
        %v343 = vunpack.c.0.s8 %v342
        %v344 = vlaneseq
        %v345 = vshrl.u32 %v344, 7
        %v346 = vsub.s32 %v343, %v345
        %v347 = vrot.slane %v333, %v346
        %v348 = vcombine.high %v340, %v340
        %v349 = vcombine.high %v347, %v347
        %v351 = vunpack.c.l.s4 1966171168
        %v352 = vunpack.c.0.s8 %v351
        %v353 = vlaneseq
        %v354 = vshrl.u32 %v353, 7
        %v355 = vsub.s32 %v352, %v354
        %v356 = vrot.slane %v196, %v355
        %v357 = vcombine.high %v356, %v356
        %v359 = vunpack.c.l.s4 1966171168
        %v360 = vunpack.c.0.s8 %v359
        %v361 = vlaneseq
        %v362 = vshrl.u32 %v361, 7
        %v363 = vsub.s32 %v360, %v362
        %v364 = vrot.slane %v356, %v363
        %v366 = vunpack.c.l.s4 1966171168
        %v367 = vunpack.c.0.s8 %v366
        %v368 = vlaneseq
        %v369 = vshrl.u32 %v368, 7
        %v370 = vsub.s32 %v367, %v369
        %v371 = vrot.slane %v357, %v370
        %v372 = vcombine.high %v364, %v364
        %v373 = vcombine.high %v371, %v371
        %v375 = vunpack.c.l.s4 1966171168
        %v376 = vunpack.c.0.s8 %v375
        %v377 = vlaneseq
        %v378 = vshrl.u32 %v377, 7
        %v379 = vsub.s32 %v376, %v378
        %v380 = vrot.slane %v197, %v379
        %v381 = vcombine.high %v380, %v380
        %v383 = vunpack.c.l.s4 1966171168
        %v384 = vunpack.c.0.s8 %v383
        %v385 = vlaneseq
        %v386 = vshrl.u32 %v385, 7
        %v387 = vsub.s32 %v384, %v386
        %v388 = vrot.slane %v380, %v387
        %v390 = vunpack.c.l.s4 1966171168
        %v391 = vunpack.c.0.s8 %v390
        %v392 = vlaneseq
        %v393 = vshrl.u32 %v392, 7
        %v394 = vsub.s32 %v391, %v393
        %v395 = vrot.slane %v381, %v394
        %v396 = vcombine.high %v388, %v388
        %v397 = vcombine.high %v395, %v395
        %v398 = vunpack.i.l.s16 %v220
        %v399 = vunpack.i.h.s16 %v220
        %v400 = vunpack.i.l.s16 %v227
        %v401 = vunpack.i.h.s16 %v227
        %v402 = vunpack.i.l.s16 %v228
        %v403 = vunpack.i.h.s16 %v228
        %v404 = vunpack.i.l.s16 %v229
        %v405 = vunpack.i.h.s16 %v229
        %v406 = vunpack.i.l.s16 %v244
        %v407 = vunpack.i.h.s16 %v244
        %v408 = vunpack.i.l.s16 %v251
        %v409 = vunpack.i.h.s16 %v251
        %v410 = vunpack.i.l.s16 %v252
        %v411 = vunpack.i.h.s16 %v252
        %v412 = vunpack.i.l.s16 %v253
        %v413 = vunpack.i.h.s16 %v253
        %v414 = vunpack.i.l.s16 %v268
        %v415 = vunpack.i.h.s16 %v268
        %v416 = vunpack.i.l.s16 %v275
        %v417 = vunpack.i.h.s16 %v275
        %v418 = vunpack.i.l.s16 %v276
        %v419 = vunpack.i.h.s16 %v276
        %v420 = vunpack.i.l.s16 %v277
        %v421 = vunpack.i.h.s16 %v277
        %v422 = vunpack.i.l.s16 %v292
        %v423 = vunpack.i.h.s16 %v292
        %v424 = vunpack.i.l.s16 %v299
        %v425 = vunpack.i.h.s16 %v299
        %v426 = vunpack.i.l.s16 %v300
        %v427 = vunpack.i.h.s16 %v300
        %v428 = vunpack.i.l.s16 %v301
        %v429 = vunpack.i.h.s16 %v301
        %v430 = vunpack.i.l.s16 %v316
        %v431 = vunpack.i.h.s16 %v316
        %v432 = vunpack.i.l.s16 %v323
        %v433 = vunpack.i.h.s16 %v323
        %v434 = vunpack.i.l.s16 %v324
        %v435 = vunpack.i.h.s16 %v324
        %v436 = vunpack.i.l.s16 %v325
        %v437 = vunpack.i.h.s16 %v325
        %v438 = vunpack.i.l.s16 %v340
        %v439 = vunpack.i.h.s16 %v340
        %v440 = vunpack.i.l.s16 %v347
        %v441 = vunpack.i.h.s16 %v347
        %v442 = vunpack.i.l.s16 %v348
        %v443 = vunpack.i.h.s16 %v348
        %v444 = vunpack.i.l.s16 %v349
        %v445 = vunpack.i.h.s16 %v349
        %v446 = vunpack.i.l.s16 %v364
        %v447 = vunpack.i.h.s16 %v364
        %v448 = vunpack.i.l.s16 %v371
        %v449 = vunpack.i.h.s16 %v371
        %v450 = vunpack.i.l.s16 %v372
        %v451 = vunpack.i.h.s16 %v372
        %v452 = vunpack.i.l.s16 %v373
        %v453 = vunpack.i.h.s16 %v373
        %v454 = vunpack.i.l.s16 %v388
        %v455 = vunpack.i.h.s16 %v388
        %v456 = vunpack.i.l.s16 %v395
        %v457 = vunpack.i.h.s16 %v395
        %v458 = vunpack.i.l.s16 %v396
        %v459 = vunpack.i.h.s16 %v396
        %v460 = vunpack.i.l.s16 %v397
        %v461 = vunpack.i.h.s16 %v397
        %v462 = vpack.i.b16 %v398, %v398
        %v463 = vpack.i.b16 %v399, %v399
        %v464 = vpack.i.b16 %v400, %v400
        %v465 = vpack.i.b16 %v401, %v401
        %v466 = vpack.i.b16 %v402, %v402
        %v467 = vpack.i.b16 %v403, %v403
        %v468 = vpack.i.b16 %v404, %v404
        %v469 = vpack.i.b16 %v405, %v405
        %v470 = vpack.i.b16 %v406, %v406
        %v471 = vpack.i.b16 %v407, %v407
        %v472 = vpack.i.b16 %v408, %v408
        %v473 = vpack.i.b16 %v409, %v409
        %v474 = vpack.i.b16 %v410, %v410
        %v475 = vpack.i.b16 %v411, %v411
        %v476 = vpack.i.b16 %v412, %v412
        %v477 = vpack.i.b16 %v413, %v413
        %v478 = vpack.i.b16 %v414, %v414
        %v479 = vpack.i.b16 %v415, %v415
        %v480 = vpack.i.b16 %v416, %v416
        %v481 = vpack.i.b16 %v417, %v417
        %v482 = vpack.i.b16 %v418, %v418
        %v483 = vpack.i.b16 %v419, %v419
        %v484 = vpack.i.b16 %v420, %v420
        %v485 = vpack.i.b16 %v421, %v421
        %v486 = vpack.i.b16 %v422, %v422
        %v487 = vpack.i.b16 %v423, %v423
        %v488 = vpack.i.b16 %v424, %v424
        %v489 = vpack.i.b16 %v425, %v425
        %v490 = vpack.i.b16 %v426, %v426
        %v491 = vpack.i.b16 %v427, %v427
        %v492 = vpack.i.b16 %v428, %v428
        %v493 = vpack.i.b16 %v429, %v429
        %v494 = vpack.i.b16 %v430, %v430
        %v495 = vpack.i.b16 %v431, %v431
        %v496 = vpack.i.b16 %v432, %v432
        %v497 = vpack.i.b16 %v433, %v433
        %v498 = vpack.i.b16 %v434, %v434
        %v499 = vpack.i.b16 %v435, %v435
        %v500 = vpack.i.b16 %v436, %v436
        %v501 = vpack.i.b16 %v437, %v437
        %v502 = vpack.i.b16 %v438, %v438
        %v503 = vpack.i.b16 %v439, %v439
        %v504 = vpack.i.b16 %v440, %v440
        %v505 = vpack.i.b16 %v441, %v441
        %v506 = vpack.i.b16 %v442, %v442
        %v507 = vpack.i.b16 %v443, %v443
        %v508 = vpack.i.b16 %v444, %v444
        %v509 = vpack.i.b16 %v445, %v445
        %v510 = vpack.i.b16 %v446, %v446
        %v511 = vpack.i.b16 %v447, %v447
        %v512 = vpack.i.b16 %v448, %v448
        %v513 = vpack.i.b16 %v449, %v449
        %v514 = vpack.i.b16 %v450, %v450
        %v515 = vpack.i.b16 %v451, %v451
        %v516 = vpack.i.b16 %v452, %v452
        %v517 = vpack.i.b16 %v453, %v453
        %v518 = vpack.i.b16 %v454, %v454
        %v519 = vpack.i.b16 %v455, %v455
        %v520 = vpack.i.b16 %v456, %v456
        %v521 = vpack.i.b16 %v457, %v457
        %v522 = vpack.i.b16 %v458, %v458
        %v523 = vpack.i.b16 %v459, %v459
        %v524 = vpack.i.b16 %v460, %v460
        %v525 = vpack.i.b16 %v461, %v461
        %v526 = vlaneseq
        %v527 = vshrl.u32 %v526, 7
        %v528 = vsub.s32 0, %v527
        %v529 = vrot.slane %v462, %v528
        %v530 = vlaneseq
        %v531 = vshrl.u32 %v530, 7
        %v532 = vsub.s32 0, %v531
        %v533 = vrot.slane %v463, %v532
        %v534 = vlaneseq
        %v535 = vshrl.u32 %v534, 7
        %v536 = vsub.s32 0, %v535
        %v537 = vrot.slane %v464, %v536
        %v538 = vlaneseq
        %v539 = vshrl.u32 %v538, 7
        %v540 = vsub.s32 0, %v539
        %v541 = vrot.slane %v465, %v540
        %v542 = vlaneseq
        %v543 = vshrl.u32 %v542, 7
        %v544 = vsub.s32 0, %v543
        %v545 = vrot.slane %v466, %v544
        %v546 = vlaneseq
        %v547 = vshrl.u32 %v546, 7
        %v548 = vsub.s32 0, %v547
        %v549 = vrot.slane %v467, %v548
        %v550 = vlaneseq
        %v551 = vshrl.u32 %v550, 7
        %v552 = vsub.s32 0, %v551
        %v553 = vrot.slane %v468, %v552
        %v554 = vlaneseq
        %v555 = vshrl.u32 %v554, 7
        %v556 = vsub.s32 0, %v555
        %v557 = vrot.slane %v469, %v556
        %v558 = vlaneseq
        %v559 = vshrl.u32 %v558, 7
        %v560 = vsub.s32 0, %v559
        %v561 = vrot.slane %v470, %v560
        %v562 = vlaneseq
        %v563 = vshrl.u32 %v562, 7
        %v564 = vsub.s32 0, %v563
        %v565 = vrot.slane %v471, %v564
        %v566 = vlaneseq
        %v567 = vshrl.u32 %v566, 7
        %v568 = vsub.s32 0, %v567
        %v569 = vrot.slane %v472, %v568
        %v570 = vlaneseq
        %v571 = vshrl.u32 %v570, 7
        %v572 = vsub.s32 0, %v571
        %v573 = vrot.slane %v473, %v572
        %v574 = vlaneseq
        %v575 = vshrl.u32 %v574, 7
        %v576 = vsub.s32 0, %v575
        %v577 = vrot.slane %v474, %v576
        %v578 = vlaneseq
        %v579 = vshrl.u32 %v578, 7
        %v580 = vsub.s32 0, %v579
        %v581 = vrot.slane %v475, %v580
        %v582 = vlaneseq
        %v583 = vshrl.u32 %v582, 7
        %v584 = vsub.s32 0, %v583
        %v585 = vrot.slane %v476, %v584
        %v586 = vlaneseq
        %v587 = vshrl.u32 %v586, 7
        %v588 = vsub.s32 0, %v587
        %v589 = vrot.slane %v477, %v588
        %v590 = vlaneseq
        %v591 = vshrl.u32 %v590, 7
        %v592 = vsub.s32 0, %v591
        %v593 = vrot.slane %v478, %v592
        %v594 = vlaneseq
        %v595 = vshrl.u32 %v594, 7
        %v596 = vsub.s32 0, %v595
        %v597 = vrot.slane %v479, %v596
        %v598 = vlaneseq
        %v599 = vshrl.u32 %v598, 7
        %v600 = vsub.s32 0, %v599
        %v601 = vrot.slane %v480, %v600
        %v602 = vlaneseq
        %v603 = vshrl.u32 %v602, 7
        %v604 = vsub.s32 0, %v603
        %v605 = vrot.slane %v481, %v604
        %v606 = vlaneseq
        %v607 = vshrl.u32 %v606, 7
        %v608 = vsub.s32 0, %v607
        %v609 = vrot.slane %v482, %v608
        %v610 = vlaneseq
        %v611 = vshrl.u32 %v610, 7
        %v612 = vsub.s32 0, %v611
        %v613 = vrot.slane %v483, %v612
        %v614 = vlaneseq
        %v615 = vshrl.u32 %v614, 7
        %v616 = vsub.s32 0, %v615
        %v617 = vrot.slane %v484, %v616
        %v618 = vlaneseq
        %v619 = vshrl.u32 %v618, 7
        %v620 = vsub.s32 0, %v619
        %v621 = vrot.slane %v485, %v620
        %v622 = vlaneseq
        %v623 = vshrl.u32 %v622, 7
        %v624 = vsub.s32 0, %v623
        %v625 = vrot.slane %v486, %v624
        %v626 = vlaneseq
        %v627 = vshrl.u32 %v626, 7
        %v628 = vsub.s32 0, %v627
        %v629 = vrot.slane %v487, %v628
        %v630 = vlaneseq
        %v631 = vshrl.u32 %v630, 7
        %v632 = vsub.s32 0, %v631
        %v633 = vrot.slane %v488, %v632
        %v634 = vlaneseq
        %v635 = vshrl.u32 %v634, 7
        %v636 = vsub.s32 0, %v635
        %v637 = vrot.slane %v489, %v636
        %v638 = vlaneseq
        %v639 = vshrl.u32 %v638, 7
        %v640 = vsub.s32 0, %v639
        %v641 = vrot.slane %v490, %v640
        %v642 = vlaneseq
        %v643 = vshrl.u32 %v642, 7
        %v644 = vsub.s32 0, %v643
        %v645 = vrot.slane %v491, %v644
        %v646 = vlaneseq
        %v647 = vshrl.u32 %v646, 7
        %v648 = vsub.s32 0, %v647
        %v649 = vrot.slane %v492, %v648
        %v650 = vlaneseq
        %v651 = vshrl.u32 %v650, 7
        %v652 = vsub.s32 0, %v651
        %v653 = vrot.slane %v493, %v652
        %v654 = vlaneseq
        %v655 = vshrl.u32 %v654, 7
        %v656 = vsub.s32 0, %v655
        %v657 = vrot.slane %v494, %v656
        %v658 = vlaneseq
        %v659 = vshrl.u32 %v658, 7
        %v660 = vsub.s32 0, %v659
        %v661 = vrot.slane %v495, %v660
        %v662 = vlaneseq
        %v663 = vshrl.u32 %v662, 7
        %v664 = vsub.s32 0, %v663
        %v665 = vrot.slane %v496, %v664
        %v666 = vlaneseq
        %v667 = vshrl.u32 %v666, 7
        %v668 = vsub.s32 0, %v667
        %v669 = vrot.slane %v497, %v668
        %v670 = vlaneseq
        %v671 = vshrl.u32 %v670, 7
        %v672 = vsub.s32 0, %v671
        %v673 = vrot.slane %v498, %v672
        %v674 = vlaneseq
        %v675 = vshrl.u32 %v674, 7
        %v676 = vsub.s32 0, %v675
        %v677 = vrot.slane %v499, %v676
        %v678 = vlaneseq
        %v679 = vshrl.u32 %v678, 7
        %v680 = vsub.s32 0, %v679
        %v681 = vrot.slane %v500, %v680
        %v682 = vlaneseq
        %v683 = vshrl.u32 %v682, 7
        %v684 = vsub.s32 0, %v683
        %v685 = vrot.slane %v501, %v684
        %v686 = vlaneseq
        %v687 = vshrl.u32 %v686, 7
        %v688 = vsub.s32 0, %v687
        %v689 = vrot.slane %v502, %v688
        %v690 = vlaneseq
        %v691 = vshrl.u32 %v690, 7
        %v692 = vsub.s32 0, %v691
        %v693 = vrot.slane %v503, %v692
        %v694 = vlaneseq
        %v695 = vshrl.u32 %v694, 7
        %v696 = vsub.s32 0, %v695
        %v697 = vrot.slane %v504, %v696
        %v698 = vlaneseq
        %v699 = vshrl.u32 %v698, 7
        %v700 = vsub.s32 0, %v699
        %v701 = vrot.slane %v505, %v700
        %v702 = vlaneseq
        %v703 = vshrl.u32 %v702, 7
        %v704 = vsub.s32 0, %v703
        %v705 = vrot.slane %v506, %v704
        %v706 = vlaneseq
        %v707 = vshrl.u32 %v706, 7
        %v708 = vsub.s32 0, %v707
        %v709 = vrot.slane %v507, %v708
        %v710 = vlaneseq
        %v711 = vshrl.u32 %v710, 7
        %v712 = vsub.s32 0, %v711
        %v713 = vrot.slane %v508, %v712
        %v714 = vlaneseq
        %v715 = vshrl.u32 %v714, 7
        %v716 = vsub.s32 0, %v715
        %v717 = vrot.slane %v509, %v716
        %v718 = vlaneseq
        %v719 = vshrl.u32 %v718, 7
        %v720 = vsub.s32 0, %v719
        %v721 = vrot.slane %v510, %v720
        %v722 = vlaneseq
        %v723 = vshrl.u32 %v722, 7
        %v724 = vsub.s32 0, %v723
        %v725 = vrot.slane %v511, %v724
        %v726 = vlaneseq
        %v727 = vshrl.u32 %v726, 7
        %v728 = vsub.s32 0, %v727
        %v729 = vrot.slane %v512, %v728
        %v730 = vlaneseq
        %v731 = vshrl.u32 %v730, 7
        %v732 = vsub.s32 0, %v731
        %v733 = vrot.slane %v513, %v732
        %v734 = vlaneseq
        %v735 = vshrl.u32 %v734, 7
        %v736 = vsub.s32 0, %v735
        %v737 = vrot.slane %v514, %v736
        %v738 = vlaneseq
        %v739 = vshrl.u32 %v738, 7
        %v740 = vsub.s32 0, %v739
        %v741 = vrot.slane %v515, %v740
        %v742 = vlaneseq
        %v743 = vshrl.u32 %v742, 7
        %v744 = vsub.s32 0, %v743
        %v745 = vrot.slane %v516, %v744
        %v746 = vlaneseq
        %v747 = vshrl.u32 %v746, 7
        %v748 = vsub.s32 0, %v747
        %v749 = vrot.slane %v517, %v748
        %v750 = vlaneseq
        %v751 = vshrl.u32 %v750, 7
        %v752 = vsub.s32 0, %v751
        %v753 = vrot.slane %v518, %v752
        %v754 = vlaneseq
        %v755 = vshrl.u32 %v754, 7
        %v756 = vsub.s32 0, %v755
        %v757 = vrot.slane %v519, %v756
        %v758 = vlaneseq
        %v759 = vshrl.u32 %v758, 7
        %v760 = vsub.s32 0, %v759
        %v761 = vrot.slane %v520, %v760
        %v762 = vlaneseq
        %v763 = vshrl.u32 %v762, 7
        %v764 = vsub.s32 0, %v763
        %v765 = vrot.slane %v521, %v764
        %v766 = vlaneseq
        %v767 = vshrl.u32 %v766, 7
        %v768 = vsub.s32 0, %v767
        %v769 = vrot.slane %v522, %v768
        %v770 = vlaneseq
        %v771 = vshrl.u32 %v770, 7
        %v772 = vsub.s32 0, %v771
        %v773 = vrot.slane %v523, %v772
        %v774 = vlaneseq
        %v775 = vshrl.u32 %v774, 7
        %v776 = vsub.s32 0, %v775
        %v777 = vrot.slane %v524, %v776
        %v778 = vlaneseq
        %v779 = vshrl.u32 %v778, 7
        %v780 = vsub.s32 0, %v779
        %v781 = vrot.slane %v525, %v780
        %v783 = vpack.i.b16 %v529, %v529
        %v785 = vlaneseq
        %v786 = vshrl.u32 %v785, 7
        %v787 = vsub.s32 0, %v786
        %v788 = vrot.slane %v783, %v787
        %v790 = vpack.i.b16 %v533, %v533
        %v792 = vlaneseq
        %v793 = vshrl.u32 %v792, 7
        %v794 = vsub.s32 0, %v793
        %v795 = vrot.slane %v790, %v794
        %v797 = vpack.i.b16 %v537, %v537
        %v799 = vlaneseq
        %v800 = vshrl.u32 %v799, 7
        %v801 = vsub.s32 0, %v800
        %v802 = vrot.slane %v797, %v801
        %v804 = vpack.i.b16 %v541, %v541
        %v806 = vlaneseq
        %v807 = vshrl.u32 %v806, 7
        %v808 = vsub.s32 0, %v807
        %v809 = vrot.slane %v804, %v808
        %v811 = vpack.i.b16 %v545, %v545
        %v813 = vlaneseq
        %v814 = vshrl.u32 %v813, 7
        %v815 = vsub.s32 0, %v814
        %v816 = vrot.slane %v811, %v815
        %v818 = vpack.i.b16 %v549, %v549
        %v820 = vlaneseq
        %v821 = vshrl.u32 %v820, 7
        %v822 = vsub.s32 0, %v821
        %v823 = vrot.slane %v818, %v822
        %v825 = vpack.i.b16 %v553, %v553
        %v827 = vlaneseq
        %v828 = vshrl.u32 %v827, 7
        %v829 = vsub.s32 0, %v828
        %v830 = vrot.slane %v825, %v829
        %v832 = vpack.i.b16 %v557, %v557
        %v834 = vlaneseq
        %v835 = vshrl.u32 %v834, 7
        %v836 = vsub.s32 0, %v835
        %v837 = vrot.slane %v832, %v836
        %v839 = vpack.i.b16 %v561, %v561
        %v841 = vlaneseq
        %v842 = vshrl.u32 %v841, 7
        %v843 = vsub.s32 0, %v842
        %v844 = vrot.slane %v839, %v843
        %v846 = vpack.i.b16 %v565, %v565
        %v848 = vlaneseq
        %v849 = vshrl.u32 %v848, 7
        %v850 = vsub.s32 0, %v849
        %v851 = vrot.slane %v846, %v850
        %v853 = vpack.i.b16 %v569, %v569
        %v855 = vlaneseq
        %v856 = vshrl.u32 %v855, 7
        %v857 = vsub.s32 0, %v856
        %v858 = vrot.slane %v853, %v857
        %v860 = vpack.i.b16 %v573, %v573
        %v862 = vlaneseq
        %v863 = vshrl.u32 %v862, 7
        %v864 = vsub.s32 0, %v863
        %v865 = vrot.slane %v860, %v864
        %v867 = vpack.i.b16 %v577, %v577
        %v869 = vlaneseq
        %v870 = vshrl.u32 %v869, 7
        %v871 = vsub.s32 0, %v870
        %v872 = vrot.slane %v867, %v871
        %v874 = vpack.i.b16 %v581, %v581
        %v876 = vlaneseq
        %v877 = vshrl.u32 %v876, 7
        %v878 = vsub.s32 0, %v877
        %v879 = vrot.slane %v874, %v878
        %v881 = vpack.i.b16 %v585, %v585
        %v883 = vlaneseq
        %v884 = vshrl.u32 %v883, 7
        %v885 = vsub.s32 0, %v884
        %v886 = vrot.slane %v881, %v885
        %v888 = vpack.i.b16 %v589, %v589
        %v890 = vlaneseq
        %v891 = vshrl.u32 %v890, 7
        %v892 = vsub.s32 0, %v891
        %v893 = vrot.slane %v888, %v892
        %v895 = vpack.i.b16 %v593, %v593
        %v897 = vlaneseq
        %v898 = vshrl.u32 %v897, 7
        %v899 = vsub.s32 0, %v898
        %v900 = vrot.slane %v895, %v899
        %v902 = vpack.i.b16 %v597, %v597
        %v904 = vlaneseq
        %v905 = vshrl.u32 %v904, 7
        %v906 = vsub.s32 0, %v905
        %v907 = vrot.slane %v902, %v906
        %v909 = vpack.i.b16 %v601, %v601
        %v911 = vlaneseq
        %v912 = vshrl.u32 %v911, 7
        %v913 = vsub.s32 0, %v912
        %v914 = vrot.slane %v909, %v913
        %v916 = vpack.i.b16 %v605, %v605
        %v918 = vlaneseq
        %v919 = vshrl.u32 %v918, 7
        %v920 = vsub.s32 0, %v919
        %v921 = vrot.slane %v916, %v920
        %v923 = vpack.i.b16 %v609, %v609
        %v925 = vlaneseq
        %v926 = vshrl.u32 %v925, 7
        %v927 = vsub.s32 0, %v926
        %v928 = vrot.slane %v923, %v927
        %v930 = vpack.i.b16 %v613, %v613
        %v932 = vlaneseq
        %v933 = vshrl.u32 %v932, 7
        %v934 = vsub.s32 0, %v933
        %v935 = vrot.slane %v930, %v934
        %v937 = vpack.i.b16 %v617, %v617
        %v939 = vlaneseq
        %v940 = vshrl.u32 %v939, 7
        %v941 = vsub.s32 0, %v940
        %v942 = vrot.slane %v937, %v941
        %v944 = vpack.i.b16 %v621, %v621
        %v946 = vlaneseq
        %v947 = vshrl.u32 %v946, 7
        %v948 = vsub.s32 0, %v947
        %v949 = vrot.slane %v944, %v948
        %v951 = vpack.i.b16 %v625, %v625
        %v953 = vlaneseq
        %v954 = vshrl.u32 %v953, 7
        %v955 = vsub.s32 0, %v954
        %v956 = vrot.slane %v951, %v955
        %v958 = vpack.i.b16 %v629, %v629
        %v960 = vlaneseq
        %v961 = vshrl.u32 %v960, 7
        %v962 = vsub.s32 0, %v961
        %v963 = vrot.slane %v958, %v962
        %v965 = vpack.i.b16 %v633, %v633
        %v967 = vlaneseq
        %v968 = vshrl.u32 %v967, 7
        %v969 = vsub.s32 0, %v968
        %v970 = vrot.slane %v965, %v969
        %v972 = vpack.i.b16 %v637, %v637
        %v974 = vlaneseq
        %v975 = vshrl.u32 %v974, 7
        %v976 = vsub.s32 0, %v975
        %v977 = vrot.slane %v972, %v976
        %v979 = vpack.i.b16 %v641, %v641
        %v981 = vlaneseq
        %v982 = vshrl.u32 %v981, 7
        %v983 = vsub.s32 0, %v982
        %v984 = vrot.slane %v979, %v983
        %v986 = vpack.i.b16 %v645, %v645
        %v988 = vlaneseq
        %v989 = vshrl.u32 %v988, 7
        %v990 = vsub.s32 0, %v989
        %v991 = vrot.slane %v986, %v990
        %v993 = vpack.i.b16 %v649, %v649
        %v995 = vlaneseq
        %v996 = vshrl.u32 %v995, 7
        %v997 = vsub.s32 0, %v996
        %v998 = vrot.slane %v993, %v997
        %v1000 = vpack.i.b16 %v653, %v653
        %v1002 = vlaneseq
        %v1003 = vshrl.u32 %v1002, 7
        %v1004 = vsub.s32 0, %v1003
        %v1005 = vrot.slane %v1000, %v1004
        %v1007 = vpack.i.b16 %v657, %v657
        %v1009 = vlaneseq
        %v1010 = vshrl.u32 %v1009, 7
        %v1011 = vsub.s32 0, %v1010
        %v1012 = vrot.slane %v1007, %v1011
        %v1014 = vpack.i.b16 %v661, %v661
        %v1016 = vlaneseq
        %v1017 = vshrl.u32 %v1016, 7
        %v1018 = vsub.s32 0, %v1017
        %v1019 = vrot.slane %v1014, %v1018
        %v1021 = vpack.i.b16 %v665, %v665
        %v1023 = vlaneseq
        %v1024 = vshrl.u32 %v1023, 7
        %v1025 = vsub.s32 0, %v1024
        %v1026 = vrot.slane %v1021, %v1025
        %v1028 = vpack.i.b16 %v669, %v669
        %v1030 = vlaneseq
        %v1031 = vshrl.u32 %v1030, 7
        %v1032 = vsub.s32 0, %v1031
        %v1033 = vrot.slane %v1028, %v1032
        %v1035 = vpack.i.b16 %v673, %v673
        %v1037 = vlaneseq
        %v1038 = vshrl.u32 %v1037, 7
        %v1039 = vsub.s32 0, %v1038
        %v1040 = vrot.slane %v1035, %v1039
        %v1042 = vpack.i.b16 %v677, %v677
        %v1044 = vlaneseq
        %v1045 = vshrl.u32 %v1044, 7
        %v1046 = vsub.s32 0, %v1045
        %v1047 = vrot.slane %v1042, %v1046
        %v1049 = vpack.i.b16 %v681, %v681
        %v1051 = vlaneseq
        %v1052 = vshrl.u32 %v1051, 7
        %v1053 = vsub.s32 0, %v1052
        %v1054 = vrot.slane %v1049, %v1053
        %v1056 = vpack.i.b16 %v685, %v685
        %v1058 = vlaneseq
        %v1059 = vshrl.u32 %v1058, 7
        %v1060 = vsub.s32 0, %v1059
        %v1061 = vrot.slane %v1056, %v1060
        %v1063 = vpack.i.b16 %v689, %v689
        %v1065 = vlaneseq
        %v1066 = vshrl.u32 %v1065, 7
        %v1067 = vsub.s32 0, %v1066
        %v1068 = vrot.slane %v1063, %v1067
        %v1070 = vpack.i.b16 %v693, %v693
        %v1072 = vlaneseq
        %v1073 = vshrl.u32 %v1072, 7
        %v1074 = vsub.s32 0, %v1073
        %v1075 = vrot.slane %v1070, %v1074
        %v1077 = vpack.i.b16 %v697, %v697
        %v1079 = vlaneseq
        %v1080 = vshrl.u32 %v1079, 7
        %v1081 = vsub.s32 0, %v1080
        %v1082 = vrot.slane %v1077, %v1081
        %v1084 = vpack.i.b16 %v701, %v701
        %v1086 = vlaneseq
        %v1087 = vshrl.u32 %v1086, 7
        %v1088 = vsub.s32 0, %v1087
        %v1089 = vrot.slane %v1084, %v1088
        %v1091 = vpack.i.b16 %v705, %v705
        %v1093 = vlaneseq
        %v1094 = vshrl.u32 %v1093, 7
        %v1095 = vsub.s32 0, %v1094
        %v1096 = vrot.slane %v1091, %v1095
        %v1098 = vpack.i.b16 %v709, %v709
        %v1100 = vlaneseq
        %v1101 = vshrl.u32 %v1100, 7
        %v1102 = vsub.s32 0, %v1101
        %v1103 = vrot.slane %v1098, %v1102
        %v1105 = vpack.i.b16 %v713, %v713
        %v1107 = vlaneseq
        %v1108 = vshrl.u32 %v1107, 7
        %v1109 = vsub.s32 0, %v1108
        %v1110 = vrot.slane %v1105, %v1109
        %v1112 = vpack.i.b16 %v717, %v717
        %v1114 = vlaneseq
        %v1115 = vshrl.u32 %v1114, 7
        %v1116 = vsub.s32 0, %v1115
        %v1117 = vrot.slane %v1112, %v1116
        %v1119 = vpack.i.b16 %v721, %v721
        %v1121 = vlaneseq
        %v1122 = vshrl.u32 %v1121, 7
        %v1123 = vsub.s32 0, %v1122
        %v1124 = vrot.slane %v1119, %v1123
        %v1126 = vpack.i.b16 %v725, %v725
        %v1128 = vlaneseq
        %v1129 = vshrl.u32 %v1128, 7
        %v1130 = vsub.s32 0, %v1129
        %v1131 = vrot.slane %v1126, %v1130
        %v1133 = vpack.i.b16 %v729, %v729
        %v1135 = vlaneseq
        %v1136 = vshrl.u32 %v1135, 7
        %v1137 = vsub.s32 0, %v1136
        %v1138 = vrot.slane %v1133, %v1137
        %v1140 = vpack.i.b16 %v733, %v733
        %v1142 = vlaneseq
        %v1143 = vshrl.u32 %v1142, 7
        %v1144 = vsub.s32 0, %v1143
        %v1145 = vrot.slane %v1140, %v1144
        %v1147 = vpack.i.b16 %v737, %v737
        %v1149 = vlaneseq
        %v1150 = vshrl.u32 %v1149, 7
        %v1151 = vsub.s32 0, %v1150
        %v1152 = vrot.slane %v1147, %v1151
        %v1154 = vpack.i.b16 %v741, %v741
        %v1156 = vlaneseq
        %v1157 = vshrl.u32 %v1156, 7
        %v1158 = vsub.s32 0, %v1157
        %v1159 = vrot.slane %v1154, %v1158
        %v1161 = vpack.i.b16 %v745, %v745
        %v1163 = vlaneseq
        %v1164 = vshrl.u32 %v1163, 7
        %v1165 = vsub.s32 0, %v1164
        %v1166 = vrot.slane %v1161, %v1165
        %v1168 = vpack.i.b16 %v749, %v749
        %v1170 = vlaneseq
        %v1171 = vshrl.u32 %v1170, 7
        %v1172 = vsub.s32 0, %v1171
        %v1173 = vrot.slane %v1168, %v1172
        %v1175 = vpack.i.b16 %v753, %v753
        %v1177 = vlaneseq
        %v1178 = vshrl.u32 %v1177, 7
        %v1179 = vsub.s32 0, %v1178
        %v1180 = vrot.slane %v1175, %v1179
        %v1182 = vpack.i.b16 %v757, %v757
        %v1184 = vlaneseq
        %v1185 = vshrl.u32 %v1184, 7
        %v1186 = vsub.s32 0, %v1185
        %v1187 = vrot.slane %v1182, %v1186
        %v1189 = vpack.i.b16 %v761, %v761
        %v1191 = vlaneseq
        %v1192 = vshrl.u32 %v1191, 7
        %v1193 = vsub.s32 0, %v1192
        %v1194 = vrot.slane %v1189, %v1193
        %v1196 = vpack.i.b16 %v765, %v765
        %v1198 = vlaneseq
        %v1199 = vshrl.u32 %v1198, 7
        %v1200 = vsub.s32 0, %v1199
        %v1201 = vrot.slane %v1196, %v1200
        %v1203 = vpack.i.b16 %v769, %v769
        %v1205 = vlaneseq
        %v1206 = vshrl.u32 %v1205, 7
        %v1207 = vsub.s32 0, %v1206
        %v1208 = vrot.slane %v1203, %v1207
        %v1210 = vpack.i.b16 %v773, %v773
        %v1212 = vlaneseq
        %v1213 = vshrl.u32 %v1212, 7
        %v1214 = vsub.s32 0, %v1213
        %v1215 = vrot.slane %v1210, %v1214
        %v1217 = vpack.i.b16 %v777, %v777
        %v1219 = vlaneseq
        %v1220 = vshrl.u32 %v1219, 7
        %v1221 = vsub.s32 0, %v1220
        %v1222 = vrot.slane %v1217, %v1221
        %v1224 = vpack.i.b16 %v781, %v781
        %v1226 = vlaneseq
        %v1227 = vshrl.u32 %v1226, 7
        %v1228 = vsub.s32 0, %v1227
        %v1229 = vrot.slane %v1224, %v1228
        %v1231 = vpack.i.b16 %v788, %v788
        %1234 = vbcast.lane.c.b16.xlu0 %v1231, 256
        %v1235 = vpop.permute.xlu0 %1234
        %v1237 = vpack.i.b16 %v795, %v795
        %1240 = vbcast.lane.c.b16.xlu0 %v1237, 256
        %v1241 = vpop.permute.xlu0 %1240
        %v1243 = vpack.i.b16 %v802, %v802
        %1246 = vbcast.lane.c.b16.xlu0 %v1243, 256
        %v1247 = vpop.permute.xlu0 %1246
        %v1249 = vpack.i.b16 %v809, %v809
        %1252 = vbcast.lane.c.b16.xlu0 %v1249, 256
        %v1253 = vpop.permute.xlu0 %1252
        %v1255 = vpack.i.b16 %v816, %v816
        %1258 = vbcast.lane.c.b16.xlu0 %v1255, 256
        %v1259 = vpop.permute.xlu0 %1258
        %v1261 = vpack.i.b16 %v823, %v823
        %1264 = vbcast.lane.c.b16.xlu0 %v1261, 256
        %v1265 = vpop.permute.xlu0 %1264
        %v1267 = vpack.i.b16 %v830, %v830
        %1270 = vbcast.lane.c.b16.xlu0 %v1267, 256
        %v1271 = vpop.permute.xlu0 %1270
        %v1273 = vpack.i.b16 %v837, %v837
        %1276 = vbcast.lane.c.b16.xlu0 %v1273, 256
        %v1277 = vpop.permute.xlu0 %1276
        %v1279 = vpack.i.b16 %v844, %v844
        %1282 = vbcast.lane.c.b16.xlu0 %v1279, 256
        %v1283 = vpop.permute.xlu0 %1282
        %v1285 = vpack.i.b16 %v851, %v851
        %1288 = vbcast.lane.c.b16.xlu0 %v1285, 256
        %v1289 = vpop.permute.xlu0 %1288
        %v1291 = vpack.i.b16 %v858, %v858
        %1294 = vbcast.lane.c.b16.xlu0 %v1291, 256
        %v1295 = vpop.permute.xlu0 %1294
        %v1297 = vpack.i.b16 %v865, %v865
        %1300 = vbcast.lane.c.b16.xlu0 %v1297, 256
        %v1301 = vpop.permute.xlu0 %1300
        %v1303 = vpack.i.b16 %v872, %v872
        %1306 = vbcast.lane.c.b16.xlu0 %v1303, 256
        %v1307 = vpop.permute.xlu0 %1306
        %v1309 = vpack.i.b16 %v879, %v879
        %1312 = vbcast.lane.c.b16.xlu0 %v1309, 256
        %v1313 = vpop.permute.xlu0 %1312
        %v1315 = vpack.i.b16 %v886, %v886
        %1318 = vbcast.lane.c.b16.xlu0 %v1315, 256
        %v1319 = vpop.permute.xlu0 %1318
        %v1321 = vpack.i.b16 %v893, %v893
        %1324 = vbcast.lane.c.b16.xlu0 %v1321, 256
        %v1325 = vpop.permute.xlu0 %1324
        %v1327 = vpack.i.b16 %v900, %v900
        %1330 = vbcast.lane.c.b16.xlu0 %v1327, 256
        %v1331 = vpop.permute.xlu0 %1330
        %v1333 = vpack.i.b16 %v907, %v907
        %1336 = vbcast.lane.c.b16.xlu0 %v1333, 256
        %v1337 = vpop.permute.xlu0 %1336
        %v1339 = vpack.i.b16 %v914, %v914
        %1342 = vbcast.lane.c.b16.xlu0 %v1339, 256
        %v1343 = vpop.permute.xlu0 %1342
        %v1345 = vpack.i.b16 %v921, %v921
        %1348 = vbcast.lane.c.b16.xlu0 %v1345, 256
        %v1349 = vpop.permute.xlu0 %1348
        %v1351 = vpack.i.b16 %v928, %v928
        %1354 = vbcast.lane.c.b16.xlu0 %v1351, 256
        %v1355 = vpop.permute.xlu0 %1354
        %v1357 = vpack.i.b16 %v935, %v935
        %1360 = vbcast.lane.c.b16.xlu0 %v1357, 256
        %v1361 = vpop.permute.xlu0 %1360
        %v1363 = vpack.i.b16 %v942, %v942
        %1366 = vbcast.lane.c.b16.xlu0 %v1363, 256
        %v1367 = vpop.permute.xlu0 %1366
        %v1369 = vpack.i.b16 %v949, %v949
        %1372 = vbcast.lane.c.b16.xlu0 %v1369, 256
        %v1373 = vpop.permute.xlu0 %1372
        %v1375 = vpack.i.b16 %v956, %v956
        %1378 = vbcast.lane.c.b16.xlu0 %v1375, 256
        %v1379 = vpop.permute.xlu0 %1378
        %v1381 = vpack.i.b16 %v963, %v963
        %1384 = vbcast.lane.c.b16.xlu0 %v1381, 256
        %v1385 = vpop.permute.xlu0 %1384
        %v1387 = vpack.i.b16 %v970, %v970
        %1390 = vbcast.lane.c.b16.xlu0 %v1387, 256
        %v1391 = vpop.permute.xlu0 %1390
        %v1393 = vpack.i.b16 %v977, %v977
        %1396 = vbcast.lane.c.b16.xlu0 %v1393, 256
        %v1397 = vpop.permute.xlu0 %1396
        %v1399 = vpack.i.b16 %v984, %v984
        %1402 = vbcast.lane.c.b16.xlu0 %v1399, 256
        %v1403 = vpop.permute.xlu0 %1402
        %v1405 = vpack.i.b16 %v991, %v991
        %1408 = vbcast.lane.c.b16.xlu0 %v1405, 256
        %v1409 = vpop.permute.xlu0 %1408
        %v1411 = vpack.i.b16 %v998, %v998
        %1414 = vbcast.lane.c.b16.xlu0 %v1411, 256
        %v1415 = vpop.permute.xlu0 %1414
        %v1417 = vpack.i.b16 %v1005, %v1005
        %1420 = vbcast.lane.c.b16.xlu0 %v1417, 256
        %v1421 = vpop.permute.xlu0 %1420
        %v1423 = vpack.i.b16 %v1012, %v1012
        %1426 = vbcast.lane.c.b16.xlu0 %v1423, 256
        %v1427 = vpop.permute.xlu0 %1426
        %v1429 = vpack.i.b16 %v1019, %v1019
        %1432 = vbcast.lane.c.b16.xlu0 %v1429, 256
        %v1433 = vpop.permute.xlu0 %1432
        %v1435 = vpack.i.b16 %v1026, %v1026
        %1438 = vbcast.lane.c.b16.xlu0 %v1435, 256
        %v1439 = vpop.permute.xlu0 %1438
        %v1441 = vpack.i.b16 %v1033, %v1033
        %1444 = vbcast.lane.c.b16.xlu0 %v1441, 256
        %v1445 = vpop.permute.xlu0 %1444
        %v1447 = vpack.i.b16 %v1040, %v1040
        %1450 = vbcast.lane.c.b16.xlu0 %v1447, 256
        %v1451 = vpop.permute.xlu0 %1450
        %v1453 = vpack.i.b16 %v1047, %v1047
        %1456 = vbcast.lane.c.b16.xlu0 %v1453, 256
        %v1457 = vpop.permute.xlu0 %1456
        %v1459 = vpack.i.b16 %v1054, %v1054
        %1462 = vbcast.lane.c.b16.xlu0 %v1459, 256
        %v1463 = vpop.permute.xlu0 %1462
        %v1465 = vpack.i.b16 %v1061, %v1061
        %1468 = vbcast.lane.c.b16.xlu0 %v1465, 256
        %v1469 = vpop.permute.xlu0 %1468
        %v1471 = vpack.i.b16 %v1068, %v1068
        %1474 = vbcast.lane.c.b16.xlu0 %v1471, 256
        %v1475 = vpop.permute.xlu0 %1474
        %v1477 = vpack.i.b16 %v1075, %v1075
        %1480 = vbcast.lane.c.b16.xlu0 %v1477, 256
        %v1481 = vpop.permute.xlu0 %1480
        %v1483 = vpack.i.b16 %v1082, %v1082
        %1486 = vbcast.lane.c.b16.xlu0 %v1483, 256
        %v1487 = vpop.permute.xlu0 %1486
        %v1489 = vpack.i.b16 %v1089, %v1089
        %1492 = vbcast.lane.c.b16.xlu0 %v1489, 256
        %v1493 = vpop.permute.xlu0 %1492
        %v1495 = vpack.i.b16 %v1096, %v1096
        %1498 = vbcast.lane.c.b16.xlu0 %v1495, 256
        %v1499 = vpop.permute.xlu0 %1498
        %v1501 = vpack.i.b16 %v1103, %v1103
        %1504 = vbcast.lane.c.b16.xlu0 %v1501, 256
        %v1505 = vpop.permute.xlu0 %1504
        %v1507 = vpack.i.b16 %v1110, %v1110
        %1510 = vbcast.lane.c.b16.xlu0 %v1507, 256
        %v1511 = vpop.permute.xlu0 %1510
        %v1513 = vpack.i.b16 %v1117, %v1117
        %1516 = vbcast.lane.c.b16.xlu0 %v1513, 256
        %v1517 = vpop.permute.xlu0 %1516
        %v1519 = vpack.i.b16 %v1124, %v1124
        %1522 = vbcast.lane.c.b16.xlu0 %v1519, 256
        %v1523 = vpop.permute.xlu0 %1522
        %v1525 = vpack.i.b16 %v1131, %v1131
        %1528 = vbcast.lane.c.b16.xlu0 %v1525, 256
        %v1529 = vpop.permute.xlu0 %1528
        %v1531 = vpack.i.b16 %v1138, %v1138
        %1534 = vbcast.lane.c.b16.xlu0 %v1531, 256
        %v1535 = vpop.permute.xlu0 %1534
        %v1537 = vpack.i.b16 %v1145, %v1145
        %1540 = vbcast.lane.c.b16.xlu0 %v1537, 256
        %v1541 = vpop.permute.xlu0 %1540
        %v1543 = vpack.i.b16 %v1152, %v1152
        %1546 = vbcast.lane.c.b16.xlu0 %v1543, 256
        %v1547 = vpop.permute.xlu0 %1546
        %v1549 = vpack.i.b16 %v1159, %v1159
        %1552 = vbcast.lane.c.b16.xlu0 %v1549, 256
        %v1553 = vpop.permute.xlu0 %1552
        %v1555 = vpack.i.b16 %v1166, %v1166
        %1558 = vbcast.lane.c.b16.xlu0 %v1555, 256
        %v1559 = vpop.permute.xlu0 %1558
        %v1561 = vpack.i.b16 %v1173, %v1173
        %1564 = vbcast.lane.c.b16.xlu0 %v1561, 256
        %v1565 = vpop.permute.xlu0 %1564
        %v1567 = vpack.i.b16 %v1180, %v1180
        %1570 = vbcast.lane.c.b16.xlu0 %v1567, 256
        %v1571 = vpop.permute.xlu0 %1570
        %v1573 = vpack.i.b16 %v1187, %v1187
        %1576 = vbcast.lane.c.b16.xlu0 %v1573, 256
        %v1577 = vpop.permute.xlu0 %1576
        %v1579 = vpack.i.b16 %v1194, %v1194
        %1582 = vbcast.lane.c.b16.xlu0 %v1579, 256
        %v1583 = vpop.permute.xlu0 %1582
        %v1585 = vpack.i.b16 %v1201, %v1201
        %1588 = vbcast.lane.c.b16.xlu0 %v1585, 256
        %v1589 = vpop.permute.xlu0 %1588
        %v1591 = vpack.i.b16 %v1208, %v1208
        %1594 = vbcast.lane.c.b16.xlu0 %v1591, 256
        %v1595 = vpop.permute.xlu0 %1594
        %v1597 = vpack.i.b16 %v1215, %v1215
        %1600 = vbcast.lane.c.b16.xlu0 %v1597, 256
        %v1601 = vpop.permute.xlu0 %1600
        %v1603 = vpack.i.b16 %v1222, %v1222
        %1606 = vbcast.lane.c.b16.xlu0 %v1603, 256
        %v1607 = vpop.permute.xlu0 %1606
        %v1609 = vpack.i.b16 %v1229, %v1229
        %1612 = vbcast.lane.c.b16.xlu0 %v1609, 256
        %v1613 = vpop.permute.xlu0 %1612
        %v1614 = vcombine.low %v1235, %v1247
        %v1615 = vcombine.high %v1235, %v1247
        %v1617 = vunpack.c.l.s4 1983009808
        %v1618 = vunpack.c.0.s8 %v1617
        %v1619 = vlaneseq
        %v1620 = vshrl.u32 %v1619, 7
        %v1621 = vsub.s32 %v1618, %v1620
        %v1622 = vrot.slane %v1614, %v1621
        %v1624 = vunpack.c.l.s4 1983009808
        %v1625 = vunpack.c.0.s8 %v1624
        %v1626 = vlaneseq
        %v1627 = vshrl.u32 %v1626, 7
        %v1628 = vsub.s32 %v1625, %v1627
        %v1629 = vrot.slane %v1615, %v1628
        %v1630 = vcombine.low %v1241, %v1253
        %v1631 = vcombine.high %v1241, %v1253
        %v1633 = vunpack.c.l.s4 1983009808
        %v1634 = vunpack.c.0.s8 %v1633
        %v1635 = vlaneseq
        %v1636 = vshrl.u32 %v1635, 7
        %v1637 = vsub.s32 %v1634, %v1636
        %v1638 = vrot.slane %v1630, %v1637
        %v1640 = vunpack.c.l.s4 1983009808
        %v1641 = vunpack.c.0.s8 %v1640
        %v1642 = vlaneseq
        %v1643 = vshrl.u32 %v1642, 7
        %v1644 = vsub.s32 %v1641, %v1643
        %v1645 = vrot.slane %v1631, %v1644
        %v1646 = vcombine.low %v1259, %v1271
        %v1647 = vcombine.high %v1259, %v1271
        %v1649 = vunpack.c.l.s4 1983009808
        %v1650 = vunpack.c.0.s8 %v1649
        %v1651 = vlaneseq
        %v1652 = vshrl.u32 %v1651, 7
        %v1653 = vsub.s32 %v1650, %v1652
        %v1654 = vrot.slane %v1646, %v1653
        %v1656 = vunpack.c.l.s4 1983009808
        %v1657 = vunpack.c.0.s8 %v1656
        %v1658 = vlaneseq
        %v1659 = vshrl.u32 %v1658, 7
        %v1660 = vsub.s32 %v1657, %v1659
        %v1661 = vrot.slane %v1647, %v1660
        %v1662 = vcombine.low %v1265, %v1277
        %v1663 = vcombine.high %v1265, %v1277
        %v1665 = vunpack.c.l.s4 1983009808
        %v1666 = vunpack.c.0.s8 %v1665
        %v1667 = vlaneseq
        %v1668 = vshrl.u32 %v1667, 7
        %v1669 = vsub.s32 %v1666, %v1668
        %v1670 = vrot.slane %v1662, %v1669
        %v1672 = vunpack.c.l.s4 1983009808
        %v1673 = vunpack.c.0.s8 %v1672
        %v1674 = vlaneseq
        %v1675 = vshrl.u32 %v1674, 7
        %v1676 = vsub.s32 %v1673, %v1675
        %v1677 = vrot.slane %v1663, %v1676
        %v1678 = vcombine.low %v1622, %v1638
        %v1679 = vcombine.high %v1622, %v1638
        %v1681 = vunpack.c.l.s4 1934713408
        %v1682 = vunpack.c.0.s8 %v1681
        %v1683 = vlaneseq
        %v1684 = vshrl.u32 %v1683, 7
        %v1685 = vsub.s32 %v1682, %v1684
        %v1686 = vrot.slane %v1678, %v1685
        %v1688 = vunpack.c.l.s4 1934713408
        %v1689 = vunpack.c.0.s8 %v1688
        %v1690 = vlaneseq
        %v1691 = vshrl.u32 %v1690, 7
        %v1692 = vsub.s32 %v1689, %v1691
        %v1693 = vrot.slane %v1679, %v1692
        %v1694 = vcombine.low %v1629, %v1645
        %v1695 = vcombine.high %v1629, %v1645
        %v1697 = vunpack.c.l.s4 1934713408
        %v1698 = vunpack.c.0.s8 %v1697
        %v1699 = vlaneseq
        %v1700 = vshrl.u32 %v1699, 7
        %v1701 = vsub.s32 %v1698, %v1700
        %v1702 = vrot.slane %v1694, %v1701
        %v1704 = vunpack.c.l.s4 1934713408
        %v1705 = vunpack.c.0.s8 %v1704
        %v1706 = vlaneseq
        %v1707 = vshrl.u32 %v1706, 7
        %v1708 = vsub.s32 %v1705, %v1707
        %v1709 = vrot.slane %v1695, %v1708
        %v1710 = vcombine.low %v1654, %v1670
        %v1711 = vcombine.high %v1654, %v1670
        %v1713 = vunpack.c.l.s4 1934713408
        %v1714 = vunpack.c.0.s8 %v1713
        %v1715 = vlaneseq
        %v1716 = vshrl.u32 %v1715, 7
        %v1717 = vsub.s32 %v1714, %v1716
        %v1718 = vrot.slane %v1710, %v1717
        %v1720 = vunpack.c.l.s4 1934713408
        %v1721 = vunpack.c.0.s8 %v1720
        %v1722 = vlaneseq
        %v1723 = vshrl.u32 %v1722, 7
        %v1724 = vsub.s32 %v1721, %v1723
        %v1725 = vrot.slane %v1711, %v1724
        %v1726 = vcombine.low %v1661, %v1677
        %v1727 = vcombine.high %v1661, %v1677
        %v1729 = vunpack.c.l.s4 1934713408
        %v1730 = vunpack.c.0.s8 %v1729
        %v1731 = vlaneseq
        %v1732 = vshrl.u32 %v1731, 7
        %v1733 = vsub.s32 %v1730, %v1732
        %v1734 = vrot.slane %v1726, %v1733
        %v1736 = vunpack.c.l.s4 1934713408
        %v1737 = vunpack.c.0.s8 %v1736
        %v1738 = vlaneseq
        %v1739 = vshrl.u32 %v1738, 7
        %v1740 = vsub.s32 %v1737, %v1739
        %v1741 = vrot.slane %v1727, %v1740
        %v1742 = vcombine.low %v1686, %v1718
        %v1743 = vcombine.high %v1686, %v1718
        %v1744 = vcombine.low %v1693, %v1725
        %v1745 = vcombine.high %v1693, %v1725
        %v1746 = vcombine.low %v1702, %v1734
        %v1747 = vcombine.high %v1702, %v1734
        %v1748 = vcombine.low %v1709, %v1741
        %v1749 = vcombine.high %v1709, %v1741
        %v1750 = vcombine.low %v1283, %v1295
        %v1751 = vcombine.high %v1283, %v1295
        %v1753 = vunpack.c.l.s4 1983009808
        %v1754 = vunpack.c.0.s8 %v1753
        %v1755 = vlaneseq
        %v1756 = vshrl.u32 %v1755, 7
        %v1757 = vsub.s32 %v1754, %v1756
        %v1758 = vrot.slane %v1750, %v1757
        %v1760 = vunpack.c.l.s4 1983009808
        %v1761 = vunpack.c.0.s8 %v1760
        %v1762 = vlaneseq
        %v1763 = vshrl.u32 %v1762, 7
        %v1764 = vsub.s32 %v1761, %v1763
        %v1765 = vrot.slane %v1751, %v1764
        %v1766 = vcombine.low %v1289, %v1301
        %v1767 = vcombine.high %v1289, %v1301
        %v1769 = vunpack.c.l.s4 1983009808
        %v1770 = vunpack.c.0.s8 %v1769
        %v1771 = vlaneseq
        %v1772 = vshrl.u32 %v1771, 7
        %v1773 = vsub.s32 %v1770, %v1772
        %v1774 = vrot.slane %v1766, %v1773
        %v1776 = vunpack.c.l.s4 1983009808
        %v1777 = vunpack.c.0.s8 %v1776
        %v1778 = vlaneseq
        %v1779 = vshrl.u32 %v1778, 7
        %v1780 = vsub.s32 %v1777, %v1779
        %v1781 = vrot.slane %v1767, %v1780
        %v1782 = vcombine.low %v1307, %v1319
        %v1783 = vcombine.high %v1307, %v1319
        %v1785 = vunpack.c.l.s4 1983009808
        %v1786 = vunpack.c.0.s8 %v1785
        %v1787 = vlaneseq
        %v1788 = vshrl.u32 %v1787, 7
        %v1789 = vsub.s32 %v1786, %v1788
        %v1790 = vrot.slane %v1782, %v1789
        %v1792 = vunpack.c.l.s4 1983009808
        %v1793 = vunpack.c.0.s8 %v1792
        %v1794 = vlaneseq
        %v1795 = vshrl.u32 %v1794, 7
        %v1796 = vsub.s32 %v1793, %v1795
        %v1797 = vrot.slane %v1783, %v1796
        %v1798 = vcombine.low %v1313, %v1325
        %v1799 = vcombine.high %v1313, %v1325
        %v1801 = vunpack.c.l.s4 1983009808
        %v1802 = vunpack.c.0.s8 %v1801
        %v1803 = vlaneseq
        %v1804 = vshrl.u32 %v1803, 7
        %v1805 = vsub.s32 %v1802, %v1804
        %v1806 = vrot.slane %v1798, %v1805
        %v1808 = vunpack.c.l.s4 1983009808
        %v1809 = vunpack.c.0.s8 %v1808
        %v1810 = vlaneseq
        %v1811 = vshrl.u32 %v1810, 7
        %v1812 = vsub.s32 %v1809, %v1811
        %v1813 = vrot.slane %v1799, %v1812
        %v1814 = vcombine.low %v1758, %v1774
        %v1815 = vcombine.high %v1758, %v1774
        %v1817 = vunpack.c.l.s4 1934713408
        %v1818 = vunpack.c.0.s8 %v1817
        %v1819 = vlaneseq
        %v1820 = vshrl.u32 %v1819, 7
        %v1821 = vsub.s32 %v1818, %v1820
        %v1822 = vrot.slane %v1814, %v1821
        %v1824 = vunpack.c.l.s4 1934713408
        %v1825 = vunpack.c.0.s8 %v1824
        %v1826 = vlaneseq
        %v1827 = vshrl.u32 %v1826, 7
        %v1828 = vsub.s32 %v1825, %v1827
        %v1829 = vrot.slane %v1815, %v1828
        %v1830 = vcombine.low %v1765, %v1781
        %v1831 = vcombine.high %v1765, %v1781
        %v1833 = vunpack.c.l.s4 1934713408
        %v1834 = vunpack.c.0.s8 %v1833
        %v1835 = vlaneseq
        %v1836 = vshrl.u32 %v1835, 7
        %v1837 = vsub.s32 %v1834, %v1836
        %v1838 = vrot.slane %v1830, %v1837
        %v1840 = vunpack.c.l.s4 1934713408
        %v1841 = vunpack.c.0.s8 %v1840
        %v1842 = vlaneseq
        %v1843 = vshrl.u32 %v1842, 7
        %v1844 = vsub.s32 %v1841, %v1843
        %v1845 = vrot.slane %v1831, %v1844
        %v1846 = vcombine.low %v1790, %v1806
        %v1847 = vcombine.high %v1790, %v1806
        %v1849 = vunpack.c.l.s4 1934713408
        %v1850 = vunpack.c.0.s8 %v1849
        %v1851 = vlaneseq
        %v1852 = vshrl.u32 %v1851, 7
        %v1853 = vsub.s32 %v1850, %v1852
        %v1854 = vrot.slane %v1846, %v1853
        %v1856 = vunpack.c.l.s4 1934713408
        %v1857 = vunpack.c.0.s8 %v1856
        %v1858 = vlaneseq
        %v1859 = vshrl.u32 %v1858, 7
        %v1860 = vsub.s32 %v1857, %v1859
        %v1861 = vrot.slane %v1847, %v1860
        %v1862 = vcombine.low %v1797, %v1813
        %v1863 = vcombine.high %v1797, %v1813
        %v1865 = vunpack.c.l.s4 1934713408
        %v1866 = vunpack.c.0.s8 %v1865
        %v1867 = vlaneseq
        %v1868 = vshrl.u32 %v1867, 7
        %v1869 = vsub.s32 %v1866, %v1868
        %v1870 = vrot.slane %v1862, %v1869
        %v1872 = vunpack.c.l.s4 1934713408
        %v1873 = vunpack.c.0.s8 %v1872
        %v1874 = vlaneseq
        %v1875 = vshrl.u32 %v1874, 7
        %v1876 = vsub.s32 %v1873, %v1875
        %v1877 = vrot.slane %v1863, %v1876
        %v1878 = vcombine.low %v1822, %v1854
        %v1879 = vcombine.high %v1822, %v1854
        %v1880 = vcombine.low %v1829, %v1861
        %v1881 = vcombine.high %v1829, %v1861
        %v1882 = vcombine.low %v1838, %v1870
        %v1883 = vcombine.high %v1838, %v1870
        %v1884 = vcombine.low %v1845, %v1877
        %v1885 = vcombine.high %v1845, %v1877
        %v1886 = vcombine.low %v1331, %v1343
        %v1887 = vcombine.high %v1331, %v1343
        %v1889 = vunpack.c.l.s4 1983009808
        %v1890 = vunpack.c.0.s8 %v1889
        %v1891 = vlaneseq
        %v1892 = vshrl.u32 %v1891, 7
        %v1893 = vsub.s32 %v1890, %v1892
        %v1894 = vrot.slane %v1886, %v1893
        %v1896 = vunpack.c.l.s4 1983009808
        %v1897 = vunpack.c.0.s8 %v1896
        %v1898 = vlaneseq
        %v1899 = vshrl.u32 %v1898, 7
        %v1900 = vsub.s32 %v1897, %v1899
        %v1901 = vrot.slane %v1887, %v1900
        %v1902 = vcombine.low %v1337, %v1349
        %v1903 = vcombine.high %v1337, %v1349
        %v1905 = vunpack.c.l.s4 1983009808
        %v1906 = vunpack.c.0.s8 %v1905
        %v1907 = vlaneseq
        %v1908 = vshrl.u32 %v1907, 7
        %v1909 = vsub.s32 %v1906, %v1908
        %v1910 = vrot.slane %v1902, %v1909
        %v1912 = vunpack.c.l.s4 1983009808
        %v1913 = vunpack.c.0.s8 %v1912
        %v1914 = vlaneseq
        %v1915 = vshrl.u32 %v1914, 7
        %v1916 = vsub.s32 %v1913, %v1915
        %v1917 = vrot.slane %v1903, %v1916
        %v1918 = vcombine.low %v1355, %v1367
        %v1919 = vcombine.high %v1355, %v1367
        %v1921 = vunpack.c.l.s4 1983009808
        %v1922 = vunpack.c.0.s8 %v1921
        %v1923 = vlaneseq
        %v1924 = vshrl.u32 %v1923, 7
        %v1925 = vsub.s32 %v1922, %v1924
        %v1926 = vrot.slane %v1918, %v1925
        %v1928 = vunpack.c.l.s4 1983009808
        %v1929 = vunpack.c.0.s8 %v1928
        %v1930 = vlaneseq
        %v1931 = vshrl.u32 %v1930, 7
        %v1932 = vsub.s32 %v1929, %v1931
        %v1933 = vrot.slane %v1919, %v1932
        %v1934 = vcombine.low %v1361, %v1373
        %v1935 = vcombine.high %v1361, %v1373
        %v1937 = vunpack.c.l.s4 1983009808
        %v1938 = vunpack.c.0.s8 %v1937
        %v1939 = vlaneseq
        %v1940 = vshrl.u32 %v1939, 7
        %v1941 = vsub.s32 %v1938, %v1940
        %v1942 = vrot.slane %v1934, %v1941
        %v1944 = vunpack.c.l.s4 1983009808
        %v1945 = vunpack.c.0.s8 %v1944
        %v1946 = vlaneseq
        %v1947 = vshrl.u32 %v1946, 7
        %v1948 = vsub.s32 %v1945, %v1947
        %v1949 = vrot.slane %v1935, %v1948
        %v1950 = vcombine.low %v1894, %v1910
        %v1951 = vcombine.high %v1894, %v1910
        %v1953 = vunpack.c.l.s4 1934713408
        %v1954 = vunpack.c.0.s8 %v1953
        %v1955 = vlaneseq
        %v1956 = vshrl.u32 %v1955, 7
        %v1957 = vsub.s32 %v1954, %v1956
        %v1958 = vrot.slane %v1950, %v1957
        %v1960 = vunpack.c.l.s4 1934713408
        %v1961 = vunpack.c.0.s8 %v1960
        %v1962 = vlaneseq
        %v1963 = vshrl.u32 %v1962, 7
        %v1964 = vsub.s32 %v1961, %v1963
        %v1965 = vrot.slane %v1951, %v1964
        %v1966 = vcombine.low %v1901, %v1917
        %v1967 = vcombine.high %v1901, %v1917
        %v1969 = vunpack.c.l.s4 1934713408
        %v1970 = vunpack.c.0.s8 %v1969
        %v1971 = vlaneseq
        %v1972 = vshrl.u32 %v1971, 7
        %v1973 = vsub.s32 %v1970, %v1972
        %v1974 = vrot.slane %v1966, %v1973
        %v1976 = vunpack.c.l.s4 1934713408
        %v1977 = vunpack.c.0.s8 %v1976
        %v1978 = vlaneseq
        %v1979 = vshrl.u32 %v1978, 7
        %v1980 = vsub.s32 %v1977, %v1979
        %v1981 = vrot.slane %v1967, %v1980
        %v1982 = vcombine.low %v1926, %v1942
        %v1983 = vcombine.high %v1926, %v1942
        %v1985 = vunpack.c.l.s4 1934713408
        %v1986 = vunpack.c.0.s8 %v1985
        %v1987 = vlaneseq
        %v1988 = vshrl.u32 %v1987, 7
        %v1989 = vsub.s32 %v1986, %v1988
        %v1990 = vrot.slane %v1982, %v1989
        %v1992 = vunpack.c.l.s4 1934713408
        %v1993 = vunpack.c.0.s8 %v1992
        %v1994 = vlaneseq
        %v1995 = vshrl.u32 %v1994, 7
        %v1996 = vsub.s32 %v1993, %v1995
        %v1997 = vrot.slane %v1983, %v1996
        %v1998 = vcombine.low %v1933, %v1949
        %v1999 = vcombine.high %v1933, %v1949
        %v2001 = vunpack.c.l.s4 1934713408
        %v2002 = vunpack.c.0.s8 %v2001
        %v2003 = vlaneseq
        %v2004 = vshrl.u32 %v2003, 7
        %v2005 = vsub.s32 %v2002, %v2004
        %v2006 = vrot.slane %v1998, %v2005
        %v2008 = vunpack.c.l.s4 1934713408
        %v2009 = vunpack.c.0.s8 %v2008
        %v2010 = vlaneseq
        %v2011 = vshrl.u32 %v2010, 7
        %v2012 = vsub.s32 %v2009, %v2011
        %v2013 = vrot.slane %v1999, %v2012
        %v2014 = vcombine.low %v1958, %v1990
        %v2015 = vcombine.high %v1958, %v1990
        %v2016 = vcombine.low %v1965, %v1997
        %v2017 = vcombine.high %v1965, %v1997
        %v2018 = vcombine.low %v1974, %v2006
        %v2019 = vcombine.high %v1974, %v2006
        %v2020 = vcombine.low %v1981, %v2013
        %v2021 = vcombine.high %v1981, %v2013
        %v2022 = vcombine.low %v1379, %v1391
        %v2023 = vcombine.high %v1379, %v1391
        %v2025 = vunpack.c.l.s4 1983009808
        %v2026 = vunpack.c.0.s8 %v2025
        %v2027 = vlaneseq
        %v2028 = vshrl.u32 %v2027, 7
        %v2029 = vsub.s32 %v2026, %v2028
        %v2030 = vrot.slane %v2022, %v2029
        %v2032 = vunpack.c.l.s4 1983009808
        %v2033 = vunpack.c.0.s8 %v2032
        %v2034 = vlaneseq
        %v2035 = vshrl.u32 %v2034, 7
        %v2036 = vsub.s32 %v2033, %v2035
        %v2037 = vrot.slane %v2023, %v2036
        %v2038 = vcombine.low %v1385, %v1397
        %v2039 = vcombine.high %v1385, %v1397
        %v2041 = vunpack.c.l.s4 1983009808
        %v2042 = vunpack.c.0.s8 %v2041
        %v2043 = vlaneseq
        %v2044 = vshrl.u32 %v2043, 7
        %v2045 = vsub.s32 %v2042, %v2044
        %v2046 = vrot.slane %v2038, %v2045
        %v2048 = vunpack.c.l.s4 1983009808
        %v2049 = vunpack.c.0.s8 %v2048
        %v2050 = vlaneseq
        %v2051 = vshrl.u32 %v2050, 7
        %v2052 = vsub.s32 %v2049, %v2051
        %v2053 = vrot.slane %v2039, %v2052
        %v2054 = vcombine.low %v1403, %v1415
        %v2055 = vcombine.high %v1403, %v1415
        %v2057 = vunpack.c.l.s4 1983009808
        %v2058 = vunpack.c.0.s8 %v2057
        %v2059 = vlaneseq
        %v2060 = vshrl.u32 %v2059, 7
        %v2061 = vsub.s32 %v2058, %v2060
        %v2062 = vrot.slane %v2054, %v2061
        %v2064 = vunpack.c.l.s4 1983009808
        %v2065 = vunpack.c.0.s8 %v2064
        %v2066 = vlaneseq
        %v2067 = vshrl.u32 %v2066, 7
        %v2068 = vsub.s32 %v2065, %v2067
        %v2069 = vrot.slane %v2055, %v2068
        %v2070 = vcombine.low %v1409, %v1421
        %v2071 = vcombine.high %v1409, %v1421
        %v2073 = vunpack.c.l.s4 1983009808
        %v2074 = vunpack.c.0.s8 %v2073
        %v2075 = vlaneseq
        %v2076 = vshrl.u32 %v2075, 7
        %v2077 = vsub.s32 %v2074, %v2076
        %v2078 = vrot.slane %v2070, %v2077
        %v2080 = vunpack.c.l.s4 1983009808
        %v2081 = vunpack.c.0.s8 %v2080
        %v2082 = vlaneseq
        %v2083 = vshrl.u32 %v2082, 7
        %v2084 = vsub.s32 %v2081, %v2083
        %v2085 = vrot.slane %v2071, %v2084
        %v2086 = vcombine.low %v2030, %v2046
        %v2087 = vcombine.high %v2030, %v2046
        %v2089 = vunpack.c.l.s4 1934713408
        %v2090 = vunpack.c.0.s8 %v2089
        %v2091 = vlaneseq
        %v2092 = vshrl.u32 %v2091, 7
        %v2093 = vsub.s32 %v2090, %v2092
        %v2094 = vrot.slane %v2086, %v2093
        %v2096 = vunpack.c.l.s4 1934713408
        %v2097 = vunpack.c.0.s8 %v2096
        %v2098 = vlaneseq
        %v2099 = vshrl.u32 %v2098, 7
        %v2100 = vsub.s32 %v2097, %v2099
        %v2101 = vrot.slane %v2087, %v2100
        %v2102 = vcombine.low %v2037, %v2053
        %v2103 = vcombine.high %v2037, %v2053
        %v2105 = vunpack.c.l.s4 1934713408
        %v2106 = vunpack.c.0.s8 %v2105
        %v2107 = vlaneseq
        %v2108 = vshrl.u32 %v2107, 7
        %v2109 = vsub.s32 %v2106, %v2108
        %v2110 = vrot.slane %v2102, %v2109
        %v2112 = vunpack.c.l.s4 1934713408
        %v2113 = vunpack.c.0.s8 %v2112
        %v2114 = vlaneseq
        %v2115 = vshrl.u32 %v2114, 7
        %v2116 = vsub.s32 %v2113, %v2115
        %v2117 = vrot.slane %v2103, %v2116
        %v2118 = vcombine.low %v2062, %v2078
        %v2119 = vcombine.high %v2062, %v2078
        %v2121 = vunpack.c.l.s4 1934713408
        %v2122 = vunpack.c.0.s8 %v2121
        %v2123 = vlaneseq
        %v2124 = vshrl.u32 %v2123, 7
        %v2125 = vsub.s32 %v2122, %v2124
        %v2126 = vrot.slane %v2118, %v2125
        %v2128 = vunpack.c.l.s4 1934713408
        %v2129 = vunpack.c.0.s8 %v2128
        %v2130 = vlaneseq
        %v2131 = vshrl.u32 %v2130, 7
        %v2132 = vsub.s32 %v2129, %v2131
        %v2133 = vrot.slane %v2119, %v2132
        %v2134 = vcombine.low %v2069, %v2085
        %v2135 = vcombine.high %v2069, %v2085
        %v2137 = vunpack.c.l.s4 1934713408
        %v2138 = vunpack.c.0.s8 %v2137
        %v2139 = vlaneseq
        %v2140 = vshrl.u32 %v2139, 7
        %v2141 = vsub.s32 %v2138, %v2140
        %v2142 = vrot.slane %v2134, %v2141
        %v2144 = vunpack.c.l.s4 1934713408
        %v2145 = vunpack.c.0.s8 %v2144
        %v2146 = vlaneseq
        %v2147 = vshrl.u32 %v2146, 7
        %v2148 = vsub.s32 %v2145, %v2147
        %v2149 = vrot.slane %v2135, %v2148
        %v2150 = vcombine.low %v2094, %v2126
        %v2151 = vcombine.high %v2094, %v2126
        %v2152 = vcombine.low %v2101, %v2133
        %v2153 = vcombine.high %v2101, %v2133
        %v2154 = vcombine.low %v2110, %v2142
        %v2155 = vcombine.high %v2110, %v2142
        %v2156 = vcombine.low %v2117, %v2149
        %v2157 = vcombine.high %v2117, %v2149
        %v2158 = vcombine.low %v1427, %v1439
        %v2159 = vcombine.high %v1427, %v1439
        %v2161 = vunpack.c.l.s4 1983009808
        %v2162 = vunpack.c.0.s8 %v2161
        %v2163 = vlaneseq
        %v2164 = vshrl.u32 %v2163, 7
        %v2165 = vsub.s32 %v2162, %v2164
        %v2166 = vrot.slane %v2158, %v2165
        %v2168 = vunpack.c.l.s4 1983009808
        %v2169 = vunpack.c.0.s8 %v2168
        %v2170 = vlaneseq
        %v2171 = vshrl.u32 %v2170, 7
        %v2172 = vsub.s32 %v2169, %v2171
        %v2173 = vrot.slane %v2159, %v2172
        %v2174 = vcombine.low %v1433, %v1445
        %v2175 = vcombine.high %v1433, %v1445
        %v2177 = vunpack.c.l.s4 1983009808
        %v2178 = vunpack.c.0.s8 %v2177
        %v2179 = vlaneseq
        %v2180 = vshrl.u32 %v2179, 7
        %v2181 = vsub.s32 %v2178, %v2180
        %v2182 = vrot.slane %v2174, %v2181
        %v2184 = vunpack.c.l.s4 1983009808
        %v2185 = vunpack.c.0.s8 %v2184
        %v2186 = vlaneseq
        %v2187 = vshrl.u32 %v2186, 7
        %v2188 = vsub.s32 %v2185, %v2187
        %v2189 = vrot.slane %v2175, %v2188
        %v2190 = vcombine.low %v1451, %v1463
        %v2191 = vcombine.high %v1451, %v1463
        %v2193 = vunpack.c.l.s4 1983009808
        %v2194 = vunpack.c.0.s8 %v2193
        %v2195 = vlaneseq
        %v2196 = vshrl.u32 %v2195, 7
        %v2197 = vsub.s32 %v2194, %v2196
        %v2198 = vrot.slane %v2190, %v2197
        %v2200 = vunpack.c.l.s4 1983009808
        %v2201 = vunpack.c.0.s8 %v2200
        %v2202 = vlaneseq
        %v2203 = vshrl.u32 %v2202, 7
        %v2204 = vsub.s32 %v2201, %v2203
        %v2205 = vrot.slane %v2191, %v2204
        %v2206 = vcombine.low %v1457, %v1469
        %v2207 = vcombine.high %v1457, %v1469
        %v2209 = vunpack.c.l.s4 1983009808
        %v2210 = vunpack.c.0.s8 %v2209
        %v2211 = vlaneseq
        %v2212 = vshrl.u32 %v2211, 7
        %v2213 = vsub.s32 %v2210, %v2212
        %v2214 = vrot.slane %v2206, %v2213
        %v2216 = vunpack.c.l.s4 1983009808
        %v2217 = vunpack.c.0.s8 %v2216
        %v2218 = vlaneseq
        %v2219 = vshrl.u32 %v2218, 7
        %v2220 = vsub.s32 %v2217, %v2219
        %v2221 = vrot.slane %v2207, %v2220
        %v2222 = vcombine.low %v2166, %v2182
        %v2223 = vcombine.high %v2166, %v2182
        %v2225 = vunpack.c.l.s4 1934713408
        %v2226 = vunpack.c.0.s8 %v2225
        %v2227 = vlaneseq
        %v2228 = vshrl.u32 %v2227, 7
        %v2229 = vsub.s32 %v2226, %v2228
        %v2230 = vrot.slane %v2222, %v2229
        %v2232 = vunpack.c.l.s4 1934713408
        %v2233 = vunpack.c.0.s8 %v2232
        %v2234 = vlaneseq
        %v2235 = vshrl.u32 %v2234, 7
        %v2236 = vsub.s32 %v2233, %v2235
        %v2237 = vrot.slane %v2223, %v2236
        %v2238 = vcombine.low %v2173, %v2189
        %v2239 = vcombine.high %v2173, %v2189
        %v2241 = vunpack.c.l.s4 1934713408
        %v2242 = vunpack.c.0.s8 %v2241
        %v2243 = vlaneseq
        %v2244 = vshrl.u32 %v2243, 7
        %v2245 = vsub.s32 %v2242, %v2244
        %v2246 = vrot.slane %v2238, %v2245
        %v2248 = vunpack.c.l.s4 1934713408
        %v2249 = vunpack.c.0.s8 %v2248
        %v2250 = vlaneseq
        %v2251 = vshrl.u32 %v2250, 7
        %v2252 = vsub.s32 %v2249, %v2251
        %v2253 = vrot.slane %v2239, %v2252
        %v2254 = vcombine.low %v2198, %v2214
        %v2255 = vcombine.high %v2198, %v2214
        %v2257 = vunpack.c.l.s4 1934713408
        %v2258 = vunpack.c.0.s8 %v2257
        %v2259 = vlaneseq
        %v2260 = vshrl.u32 %v2259, 7
        %v2261 = vsub.s32 %v2258, %v2260
        %v2262 = vrot.slane %v2254, %v2261
        %v2264 = vunpack.c.l.s4 1934713408
        %v2265 = vunpack.c.0.s8 %v2264
        %v2266 = vlaneseq
        %v2267 = vshrl.u32 %v2266, 7
        %v2268 = vsub.s32 %v2265, %v2267
        %v2269 = vrot.slane %v2255, %v2268
        %v2270 = vcombine.low %v2205, %v2221
        %v2271 = vcombine.high %v2205, %v2221
        %v2273 = vunpack.c.l.s4 1934713408
        %v2274 = vunpack.c.0.s8 %v2273
        %v2275 = vlaneseq
        %v2276 = vshrl.u32 %v2275, 7
        %v2277 = vsub.s32 %v2274, %v2276
        %v2278 = vrot.slane %v2270, %v2277
        %v2280 = vunpack.c.l.s4 1934713408
        %v2281 = vunpack.c.0.s8 %v2280
        %v2282 = vlaneseq
        %v2283 = vshrl.u32 %v2282, 7
        %v2284 = vsub.s32 %v2281, %v2283
        %v2285 = vrot.slane %v2271, %v2284
        %v2286 = vcombine.low %v2230, %v2262
        %v2287 = vcombine.high %v2230, %v2262
        %v2288 = vcombine.low %v2237, %v2269
        %v2289 = vcombine.high %v2237, %v2269
        %v2290 = vcombine.low %v2246, %v2278
        %v2291 = vcombine.high %v2246, %v2278
        %v2292 = vcombine.low %v2253, %v2285
        %v2293 = vcombine.high %v2253, %v2285
        %v2294 = vcombine.low %v1475, %v1487
        %v2295 = vcombine.high %v1475, %v1487
        %v2297 = vunpack.c.l.s4 1983009808
        %v2298 = vunpack.c.0.s8 %v2297
        %v2299 = vlaneseq
        %v2300 = vshrl.u32 %v2299, 7
        %v2301 = vsub.s32 %v2298, %v2300
        %v2302 = vrot.slane %v2294, %v2301
        %v2304 = vunpack.c.l.s4 1983009808
        %v2305 = vunpack.c.0.s8 %v2304
        %v2306 = vlaneseq
        %v2307 = vshrl.u32 %v2306, 7
        %v2308 = vsub.s32 %v2305, %v2307
        %v2309 = vrot.slane %v2295, %v2308
        %v2310 = vcombine.low %v1481, %v1493
        %v2311 = vcombine.high %v1481, %v1493
        %v2313 = vunpack.c.l.s4 1983009808
        %v2314 = vunpack.c.0.s8 %v2313
        %v2315 = vlaneseq
        %v2316 = vshrl.u32 %v2315, 7
        %v2317 = vsub.s32 %v2314, %v2316
        %v2318 = vrot.slane %v2310, %v2317
        %v2320 = vunpack.c.l.s4 1983009808
        %v2321 = vunpack.c.0.s8 %v2320
        %v2322 = vlaneseq
        %v2323 = vshrl.u32 %v2322, 7
        %v2324 = vsub.s32 %v2321, %v2323
        %v2325 = vrot.slane %v2311, %v2324
        %v2326 = vcombine.low %v1499, %v1511
        %v2327 = vcombine.high %v1499, %v1511
        %v2329 = vunpack.c.l.s4 1983009808
        %v2330 = vunpack.c.0.s8 %v2329
        %v2331 = vlaneseq
        %v2332 = vshrl.u32 %v2331, 7
        %v2333 = vsub.s32 %v2330, %v2332
        %v2334 = vrot.slane %v2326, %v2333
        %v2336 = vunpack.c.l.s4 1983009808
        %v2337 = vunpack.c.0.s8 %v2336
        %v2338 = vlaneseq
        %v2339 = vshrl.u32 %v2338, 7
        %v2340 = vsub.s32 %v2337, %v2339
        %v2341 = vrot.slane %v2327, %v2340
        %v2342 = vcombine.low %v1505, %v1517
        %v2343 = vcombine.high %v1505, %v1517
        %v2345 = vunpack.c.l.s4 1983009808
        %v2346 = vunpack.c.0.s8 %v2345
        %v2347 = vlaneseq
        %v2348 = vshrl.u32 %v2347, 7
        %v2349 = vsub.s32 %v2346, %v2348
        %v2350 = vrot.slane %v2342, %v2349
        %v2352 = vunpack.c.l.s4 1983009808
        %v2353 = vunpack.c.0.s8 %v2352
        %v2354 = vlaneseq
        %v2355 = vshrl.u32 %v2354, 7
        %v2356 = vsub.s32 %v2353, %v2355
        %v2357 = vrot.slane %v2343, %v2356
        %v2358 = vcombine.low %v2302, %v2318
        %v2359 = vcombine.high %v2302, %v2318
        %v2361 = vunpack.c.l.s4 1934713408
        %v2362 = vunpack.c.0.s8 %v2361
        %v2363 = vlaneseq
        %v2364 = vshrl.u32 %v2363, 7
        %v2365 = vsub.s32 %v2362, %v2364
        %v2366 = vrot.slane %v2358, %v2365
        %v2368 = vunpack.c.l.s4 1934713408
        %v2369 = vunpack.c.0.s8 %v2368
        %v2370 = vlaneseq
        %v2371 = vshrl.u32 %v2370, 7
        %v2372 = vsub.s32 %v2369, %v2371
        %v2373 = vrot.slane %v2359, %v2372
        %v2374 = vcombine.low %v2309, %v2325
        %v2375 = vcombine.high %v2309, %v2325
        %v2377 = vunpack.c.l.s4 1934713408
        %v2378 = vunpack.c.0.s8 %v2377
        %v2379 = vlaneseq
        %v2380 = vshrl.u32 %v2379, 7
        %v2381 = vsub.s32 %v2378, %v2380
        %v2382 = vrot.slane %v2374, %v2381
        %v2384 = vunpack.c.l.s4 1934713408
        %v2385 = vunpack.c.0.s8 %v2384
        %v2386 = vlaneseq
        %v2387 = vshrl.u32 %v2386, 7
        %v2388 = vsub.s32 %v2385, %v2387
        %v2389 = vrot.slane %v2375, %v2388
        %v2390 = vcombine.low %v2334, %v2350
        %v2391 = vcombine.high %v2334, %v2350
        %v2393 = vunpack.c.l.s4 1934713408
        %v2394 = vunpack.c.0.s8 %v2393
        %v2395 = vlaneseq
        %v2396 = vshrl.u32 %v2395, 7
        %v2397 = vsub.s32 %v2394, %v2396
        %v2398 = vrot.slane %v2390, %v2397
        %v2400 = vunpack.c.l.s4 1934713408
        %v2401 = vunpack.c.0.s8 %v2400
        %v2402 = vlaneseq
        %v2403 = vshrl.u32 %v2402, 7
        %v2404 = vsub.s32 %v2401, %v2403
        %v2405 = vrot.slane %v2391, %v2404
        %v2406 = vcombine.low %v2341, %v2357
        %v2407 = vcombine.high %v2341, %v2357
        %v2409 = vunpack.c.l.s4 1934713408
        %v2410 = vunpack.c.0.s8 %v2409
        %v2411 = vlaneseq
        %v2412 = vshrl.u32 %v2411, 7
        %v2413 = vsub.s32 %v2410, %v2412
        %v2414 = vrot.slane %v2406, %v2413
        %v2416 = vunpack.c.l.s4 1934713408
        %v2417 = vunpack.c.0.s8 %v2416
        %v2418 = vlaneseq
        %v2419 = vshrl.u32 %v2418, 7
        %v2420 = vsub.s32 %v2417, %v2419
        %v2421 = vrot.slane %v2407, %v2420
        %v2422 = vcombine.low %v2366, %v2398
        %v2423 = vcombine.high %v2366, %v2398
        %v2424 = vcombine.low %v2373, %v2405
        %v2425 = vcombine.high %v2373, %v2405
        %v2426 = vcombine.low %v2382, %v2414
        %v2427 = vcombine.high %v2382, %v2414
        %v2428 = vcombine.low %v2389, %v2421
        %v2429 = vcombine.high %v2389, %v2421
        %v2430 = vcombine.low %v1523, %v1535
        %v2431 = vcombine.high %v1523, %v1535
        %v2433 = vunpack.c.l.s4 1983009808
        %v2434 = vunpack.c.0.s8 %v2433
        %v2435 = vlaneseq
        %v2436 = vshrl.u32 %v2435, 7
        %v2437 = vsub.s32 %v2434, %v2436
        %v2438 = vrot.slane %v2430, %v2437
        %v2440 = vunpack.c.l.s4 1983009808
        %v2441 = vunpack.c.0.s8 %v2440
        %v2442 = vlaneseq
        %v2443 = vshrl.u32 %v2442, 7
        %v2444 = vsub.s32 %v2441, %v2443
        %v2445 = vrot.slane %v2431, %v2444
        %v2446 = vcombine.low %v1529, %v1541
        %v2447 = vcombine.high %v1529, %v1541
        %v2449 = vunpack.c.l.s4 1983009808
        %v2450 = vunpack.c.0.s8 %v2449
        %v2451 = vlaneseq
        %v2452 = vshrl.u32 %v2451, 7
        %v2453 = vsub.s32 %v2450, %v2452
        %v2454 = vrot.slane %v2446, %v2453
        %v2456 = vunpack.c.l.s4 1983009808
        %v2457 = vunpack.c.0.s8 %v2456
        %v2458 = vlaneseq
        %v2459 = vshrl.u32 %v2458, 7
        %v2460 = vsub.s32 %v2457, %v2459
        %v2461 = vrot.slane %v2447, %v2460
        %v2462 = vcombine.low %v1547, %v1559
        %v2463 = vcombine.high %v1547, %v1559
        %v2465 = vunpack.c.l.s4 1983009808
        %v2466 = vunpack.c.0.s8 %v2465
        %v2467 = vlaneseq
        %v2468 = vshrl.u32 %v2467, 7
        %v2469 = vsub.s32 %v2466, %v2468
        %v2470 = vrot.slane %v2462, %v2469
        %v2472 = vunpack.c.l.s4 1983009808
        %v2473 = vunpack.c.0.s8 %v2472
        %v2474 = vlaneseq
        %v2475 = vshrl.u32 %v2474, 7
        %v2476 = vsub.s32 %v2473, %v2475
        %v2477 = vrot.slane %v2463, %v2476
        %v2478 = vcombine.low %v1553, %v1565
        %v2479 = vcombine.high %v1553, %v1565
        %v2481 = vunpack.c.l.s4 1983009808
        %v2482 = vunpack.c.0.s8 %v2481
        %v2483 = vlaneseq
        %v2484 = vshrl.u32 %v2483, 7
        %v2485 = vsub.s32 %v2482, %v2484
        %v2486 = vrot.slane %v2478, %v2485
        %v2488 = vunpack.c.l.s4 1983009808
        %v2489 = vunpack.c.0.s8 %v2488
        %v2490 = vlaneseq
        %v2491 = vshrl.u32 %v2490, 7
        %v2492 = vsub.s32 %v2489, %v2491
        %v2493 = vrot.slane %v2479, %v2492
        %v2494 = vcombine.low %v2438, %v2454
        %v2495 = vcombine.high %v2438, %v2454
        %v2497 = vunpack.c.l.s4 1934713408
        %v2498 = vunpack.c.0.s8 %v2497
        %v2499 = vlaneseq
        %v2500 = vshrl.u32 %v2499, 7
        %v2501 = vsub.s32 %v2498, %v2500
        %v2502 = vrot.slane %v2494, %v2501
        %v2504 = vunpack.c.l.s4 1934713408
        %v2505 = vunpack.c.0.s8 %v2504
        %v2506 = vlaneseq
        %v2507 = vshrl.u32 %v2506, 7
        %v2508 = vsub.s32 %v2505, %v2507
        %v2509 = vrot.slane %v2495, %v2508
        %v2510 = vcombine.low %v2445, %v2461
        %v2511 = vcombine.high %v2445, %v2461
        %v2513 = vunpack.c.l.s4 1934713408
        %v2514 = vunpack.c.0.s8 %v2513
        %v2515 = vlaneseq
        %v2516 = vshrl.u32 %v2515, 7
        %v2517 = vsub.s32 %v2514, %v2516
        %v2518 = vrot.slane %v2510, %v2517
        %v2520 = vunpack.c.l.s4 1934713408
        %v2521 = vunpack.c.0.s8 %v2520
        %v2522 = vlaneseq
        %v2523 = vshrl.u32 %v2522, 7
        %v2524 = vsub.s32 %v2521, %v2523
        %v2525 = vrot.slane %v2511, %v2524
        %v2526 = vcombine.low %v2470, %v2486
        %v2527 = vcombine.high %v2470, %v2486
        %v2529 = vunpack.c.l.s4 1934713408
        %v2530 = vunpack.c.0.s8 %v2529
        %v2531 = vlaneseq
        %v2532 = vshrl.u32 %v2531, 7
        %v2533 = vsub.s32 %v2530, %v2532
        %v2534 = vrot.slane %v2526, %v2533
        %v2536 = vunpack.c.l.s4 1934713408
        %v2537 = vunpack.c.0.s8 %v2536
        %v2538 = vlaneseq
        %v2539 = vshrl.u32 %v2538, 7
        %v2540 = vsub.s32 %v2537, %v2539
        %v2541 = vrot.slane %v2527, %v2540
        %v2542 = vcombine.low %v2477, %v2493
        %v2543 = vcombine.high %v2477, %v2493
        %v2545 = vunpack.c.l.s4 1934713408
        %v2546 = vunpack.c.0.s8 %v2545
        %v2547 = vlaneseq
        %v2548 = vshrl.u32 %v2547, 7
        %v2549 = vsub.s32 %v2546, %v2548
        %v2550 = vrot.slane %v2542, %v2549
        %v2552 = vunpack.c.l.s4 1934713408
        %v2553 = vunpack.c.0.s8 %v2552
        %v2554 = vlaneseq
        %v2555 = vshrl.u32 %v2554, 7
        %v2556 = vsub.s32 %v2553, %v2555
        %v2557 = vrot.slane %v2543, %v2556
        %v2558 = vcombine.low %v2502, %v2534
        %v2559 = vcombine.high %v2502, %v2534
        %v2560 = vcombine.low %v2509, %v2541
        %v2561 = vcombine.high %v2509, %v2541
        %v2562 = vcombine.low %v2518, %v2550
        %v2563 = vcombine.high %v2518, %v2550
        %v2564 = vcombine.low %v2525, %v2557
        %v2565 = vcombine.high %v2525, %v2557
        %v2566 = vcombine.low %v1571, %v1583
        %v2567 = vcombine.high %v1571, %v1583
        %v2569 = vunpack.c.l.s4 1983009808
        %v2570 = vunpack.c.0.s8 %v2569
        %v2571 = vlaneseq
        %v2572 = vshrl.u32 %v2571, 7
        %v2573 = vsub.s32 %v2570, %v2572
        %v2574 = vrot.slane %v2566, %v2573
        %v2576 = vunpack.c.l.s4 1983009808
        %v2577 = vunpack.c.0.s8 %v2576
        %v2578 = vlaneseq
        %v2579 = vshrl.u32 %v2578, 7
        %v2580 = vsub.s32 %v2577, %v2579
        %v2581 = vrot.slane %v2567, %v2580
        %v2582 = vcombine.low %v1577, %v1589
        %v2583 = vcombine.high %v1577, %v1589
        %v2585 = vunpack.c.l.s4 1983009808
        %v2586 = vunpack.c.0.s8 %v2585
        %v2587 = vlaneseq
        %v2588 = vshrl.u32 %v2587, 7
        %v2589 = vsub.s32 %v2586, %v2588
        %v2590 = vrot.slane %v2582, %v2589
        %v2592 = vunpack.c.l.s4 1983009808
        %v2593 = vunpack.c.0.s8 %v2592
        %v2594 = vlaneseq
        %v2595 = vshrl.u32 %v2594, 7
        %v2596 = vsub.s32 %v2593, %v2595
        %v2597 = vrot.slane %v2583, %v2596
        %v2598 = vcombine.low %v1595, %v1607
        %v2599 = vcombine.high %v1595, %v1607
        %v2601 = vunpack.c.l.s4 1983009808
        %v2602 = vunpack.c.0.s8 %v2601
        %v2603 = vlaneseq
        %v2604 = vshrl.u32 %v2603, 7
        %v2605 = vsub.s32 %v2602, %v2604
        %v2606 = vrot.slane %v2598, %v2605
        %v2608 = vunpack.c.l.s4 1983009808
        %v2609 = vunpack.c.0.s8 %v2608
        %v2610 = vlaneseq
        %v2611 = vshrl.u32 %v2610, 7
        %v2612 = vsub.s32 %v2609, %v2611
        %v2613 = vrot.slane %v2599, %v2612
        %v2614 = vcombine.low %v1601, %v1613
        %v2615 = vcombine.high %v1601, %v1613
        %v2617 = vunpack.c.l.s4 1983009808
        %v2618 = vunpack.c.0.s8 %v2617
        %v2619 = vlaneseq
        %v2620 = vshrl.u32 %v2619, 7
        %v2621 = vsub.s32 %v2618, %v2620
        %v2622 = vrot.slane %v2614, %v2621
        %v2624 = vunpack.c.l.s4 1983009808
        %v2625 = vunpack.c.0.s8 %v2624
        %v2626 = vlaneseq
        %v2627 = vshrl.u32 %v2626, 7
        %v2628 = vsub.s32 %v2625, %v2627
        %v2629 = vrot.slane %v2615, %v2628
        %v2630 = vcombine.low %v2574, %v2590
        %v2631 = vcombine.high %v2574, %v2590
        %v2633 = vunpack.c.l.s4 1934713408
        %v2634 = vunpack.c.0.s8 %v2633
        %v2635 = vlaneseq
        %v2636 = vshrl.u32 %v2635, 7
        %v2637 = vsub.s32 %v2634, %v2636
        %v2638 = vrot.slane %v2630, %v2637
        %v2640 = vunpack.c.l.s4 1934713408
        %v2641 = vunpack.c.0.s8 %v2640
        %v2642 = vlaneseq
        %v2643 = vshrl.u32 %v2642, 7
        %v2644 = vsub.s32 %v2641, %v2643
        %v2645 = vrot.slane %v2631, %v2644
        %v2646 = vcombine.low %v2581, %v2597
        %v2647 = vcombine.high %v2581, %v2597
        %v2649 = vunpack.c.l.s4 1934713408
        %v2650 = vunpack.c.0.s8 %v2649
        %v2651 = vlaneseq
        %v2652 = vshrl.u32 %v2651, 7
        %v2653 = vsub.s32 %v2650, %v2652
        %v2654 = vrot.slane %v2646, %v2653
        %v2656 = vunpack.c.l.s4 1934713408
        %v2657 = vunpack.c.0.s8 %v2656
        %v2658 = vlaneseq
        %v2659 = vshrl.u32 %v2658, 7
        %v2660 = vsub.s32 %v2657, %v2659
        %v2661 = vrot.slane %v2647, %v2660
        %v2662 = vcombine.low %v2606, %v2622
        %v2663 = vcombine.high %v2606, %v2622
        %v2665 = vunpack.c.l.s4 1934713408
        %v2666 = vunpack.c.0.s8 %v2665
        %v2667 = vlaneseq
        %v2668 = vshrl.u32 %v2667, 7
        %v2669 = vsub.s32 %v2666, %v2668
        %v2670 = vrot.slane %v2662, %v2669
        %v2672 = vunpack.c.l.s4 1934713408
        %v2673 = vunpack.c.0.s8 %v2672
        %v2674 = vlaneseq
        %v2675 = vshrl.u32 %v2674, 7
        %v2676 = vsub.s32 %v2673, %v2675
        %v2677 = vrot.slane %v2663, %v2676
        %v2678 = vcombine.low %v2613, %v2629
        %v2679 = vcombine.high %v2613, %v2629
        %v2681 = vunpack.c.l.s4 1934713408
        %v2682 = vunpack.c.0.s8 %v2681
        %v2683 = vlaneseq
        %v2684 = vshrl.u32 %v2683, 7
        %v2685 = vsub.s32 %v2682, %v2684
        %v2686 = vrot.slane %v2678, %v2685
        %v2688 = vunpack.c.l.s4 1934713408
        %v2689 = vunpack.c.0.s8 %v2688
        %v2690 = vlaneseq
        %v2691 = vshrl.u32 %v2690, 7
        %v2692 = vsub.s32 %v2689, %v2691
        %v2693 = vrot.slane %v2679, %v2692
        %v2694 = vcombine.low %v2638, %v2670
        %v2695 = vcombine.high %v2638, %v2670
        %v2696 = vcombine.low %v2645, %v2677
        %v2697 = vcombine.high %v2645, %v2677
        %v2698 = vcombine.low %v2654, %v2686
        %v2699 = vcombine.high %v2654, %v2686
        %v2700 = vcombine.low %v2661, %v2693
        %v2701 = vcombine.high %v2661, %v2693
        %v2703 = vpack.i.b16 %v1742, %v1742
        %v2704 = vshrl.u32 %v1742, 16
        %v2705 = vpack.i.b16 %v2704, %v2704
        %v2707 = vpack.i.b16 %v1743, %v1743
        %v2708 = vshrl.u32 %v1743, 16
        %v2709 = vpack.i.b16 %v2708, %v2708
        %v2711 = vpack.i.b16 %v1744, %v1744
        %v2712 = vshrl.u32 %v1744, 16
        %v2713 = vpack.i.b16 %v2712, %v2712
        %v2715 = vpack.i.b16 %v1745, %v1745
        %v2716 = vshrl.u32 %v1745, 16
        %v2717 = vpack.i.b16 %v2716, %v2716
        %v2719 = vpack.i.b16 %v1746, %v1746
        %v2720 = vshrl.u32 %v1746, 16
        %v2721 = vpack.i.b16 %v2720, %v2720
        %v2723 = vpack.i.b16 %v1747, %v1747
        %v2724 = vshrl.u32 %v1747, 16
        %v2725 = vpack.i.b16 %v2724, %v2724
        %v2727 = vpack.i.b16 %v1748, %v1748
        %v2728 = vshrl.u32 %v1748, 16
        %v2729 = vpack.i.b16 %v2728, %v2728
        %v2731 = vpack.i.b16 %v1749, %v1749
        %v2732 = vshrl.u32 %v1749, 16
        %v2733 = vpack.i.b16 %v2732, %v2732
        %v2735 = vpack.i.b16 %v1878, %v1878
        %v2736 = vshrl.u32 %v1878, 16
        %v2737 = vpack.i.b16 %v2736, %v2736
        %v2739 = vpack.i.b16 %v1879, %v1879
        %v2740 = vshrl.u32 %v1879, 16
        %v2741 = vpack.i.b16 %v2740, %v2740
        %v2743 = vpack.i.b16 %v1880, %v1880
        %v2744 = vshrl.u32 %v1880, 16
        %v2745 = vpack.i.b16 %v2744, %v2744
        %v2747 = vpack.i.b16 %v1881, %v1881
        %v2748 = vshrl.u32 %v1881, 16
        %v2749 = vpack.i.b16 %v2748, %v2748
        %v2751 = vpack.i.b16 %v1882, %v1882
        %v2752 = vshrl.u32 %v1882, 16
        %v2753 = vpack.i.b16 %v2752, %v2752
        %v2755 = vpack.i.b16 %v1883, %v1883
        %v2756 = vshrl.u32 %v1883, 16
        %v2757 = vpack.i.b16 %v2756, %v2756
        %v2759 = vpack.i.b16 %v1884, %v1884
        %v2760 = vshrl.u32 %v1884, 16
        %v2761 = vpack.i.b16 %v2760, %v2760
        %v2763 = vpack.i.b16 %v1885, %v1885
        %v2764 = vshrl.u32 %v1885, 16
        %v2765 = vpack.i.b16 %v2764, %v2764
        %v2767 = vpack.i.b16 %v2014, %v2014
        %v2768 = vshrl.u32 %v2014, 16
        %v2769 = vpack.i.b16 %v2768, %v2768
        %v2771 = vpack.i.b16 %v2015, %v2015
        %v2772 = vshrl.u32 %v2015, 16
        %v2773 = vpack.i.b16 %v2772, %v2772
        %v2775 = vpack.i.b16 %v2016, %v2016
        %v2776 = vshrl.u32 %v2016, 16
        %v2777 = vpack.i.b16 %v2776, %v2776
        %v2779 = vpack.i.b16 %v2017, %v2017
        %v2780 = vshrl.u32 %v2017, 16
        %v2781 = vpack.i.b16 %v2780, %v2780
        %v2783 = vpack.i.b16 %v2018, %v2018
        %v2784 = vshrl.u32 %v2018, 16
        %v2785 = vpack.i.b16 %v2784, %v2784
        %v2787 = vpack.i.b16 %v2019, %v2019
        %v2788 = vshrl.u32 %v2019, 16
        %v2789 = vpack.i.b16 %v2788, %v2788
        %v2791 = vpack.i.b16 %v2020, %v2020
        %v2792 = vshrl.u32 %v2020, 16
        %v2793 = vpack.i.b16 %v2792, %v2792
        %v2795 = vpack.i.b16 %v2021, %v2021
        %v2796 = vshrl.u32 %v2021, 16
        %v2797 = vpack.i.b16 %v2796, %v2796
        %v2799 = vpack.i.b16 %v2150, %v2150
        %v2800 = vshrl.u32 %v2150, 16
        %v2801 = vpack.i.b16 %v2800, %v2800
        %v2803 = vpack.i.b16 %v2151, %v2151
        %v2804 = vshrl.u32 %v2151, 16
        %v2805 = vpack.i.b16 %v2804, %v2804
        %v2807 = vpack.i.b16 %v2152, %v2152
        %v2808 = vshrl.u32 %v2152, 16
        %v2809 = vpack.i.b16 %v2808, %v2808
        %v2811 = vpack.i.b16 %v2153, %v2153
        %v2812 = vshrl.u32 %v2153, 16
        %v2813 = vpack.i.b16 %v2812, %v2812
        %v2815 = vpack.i.b16 %v2154, %v2154
        %v2816 = vshrl.u32 %v2154, 16
        %v2817 = vpack.i.b16 %v2816, %v2816
        %v2819 = vpack.i.b16 %v2155, %v2155
        %v2820 = vshrl.u32 %v2155, 16
        %v2821 = vpack.i.b16 %v2820, %v2820
        %v2823 = vpack.i.b16 %v2156, %v2156
        %v2824 = vshrl.u32 %v2156, 16
        %v2825 = vpack.i.b16 %v2824, %v2824
        %v2827 = vpack.i.b16 %v2157, %v2157
        %v2828 = vshrl.u32 %v2157, 16
        %v2829 = vpack.i.b16 %v2828, %v2828
        %v2831 = vpack.i.b16 %v2286, %v2286
        %v2832 = vshrl.u32 %v2286, 16
        %v2833 = vpack.i.b16 %v2832, %v2832
        %v2835 = vpack.i.b16 %v2287, %v2287
        %v2836 = vshrl.u32 %v2287, 16
        %v2837 = vpack.i.b16 %v2836, %v2836
        %v2839 = vpack.i.b16 %v2288, %v2288
        %v2840 = vshrl.u32 %v2288, 16
        %v2841 = vpack.i.b16 %v2840, %v2840
        %v2843 = vpack.i.b16 %v2289, %v2289
        %v2844 = vshrl.u32 %v2289, 16
        %v2845 = vpack.i.b16 %v2844, %v2844
        %v2847 = vpack.i.b16 %v2290, %v2290
        %v2848 = vshrl.u32 %v2290, 16
        %v2849 = vpack.i.b16 %v2848, %v2848
        %v2851 = vpack.i.b16 %v2291, %v2291
        %v2852 = vshrl.u32 %v2291, 16
        %v2853 = vpack.i.b16 %v2852, %v2852
        %v2855 = vpack.i.b16 %v2292, %v2292
        %v2856 = vshrl.u32 %v2292, 16
        %v2857 = vpack.i.b16 %v2856, %v2856
        %v2859 = vpack.i.b16 %v2293, %v2293
        %v2860 = vshrl.u32 %v2293, 16
        %v2861 = vpack.i.b16 %v2860, %v2860
        %v2863 = vpack.i.b16 %v2422, %v2422
        %v2864 = vshrl.u32 %v2422, 16
        %v2865 = vpack.i.b16 %v2864, %v2864
        %v2867 = vpack.i.b16 %v2423, %v2423
        %v2868 = vshrl.u32 %v2423, 16
        %v2869 = vpack.i.b16 %v2868, %v2868
        %v2871 = vpack.i.b16 %v2424, %v2424
        %v2872 = vshrl.u32 %v2424, 16
        %v2873 = vpack.i.b16 %v2872, %v2872
        %v2875 = vpack.i.b16 %v2425, %v2425
        %v2876 = vshrl.u32 %v2425, 16
        %v2877 = vpack.i.b16 %v2876, %v2876
        %v2879 = vpack.i.b16 %v2426, %v2426
        %v2880 = vshrl.u32 %v2426, 16
        %v2881 = vpack.i.b16 %v2880, %v2880
        %v2883 = vpack.i.b16 %v2427, %v2427
        %v2884 = vshrl.u32 %v2427, 16
        %v2885 = vpack.i.b16 %v2884, %v2884
        %v2887 = vpack.i.b16 %v2428, %v2428
        %v2888 = vshrl.u32 %v2428, 16
        %v2889 = vpack.i.b16 %v2888, %v2888
        %v2891 = vpack.i.b16 %v2429, %v2429
        %v2892 = vshrl.u32 %v2429, 16
        %v2893 = vpack.i.b16 %v2892, %v2892
        %v2895 = vpack.i.b16 %v2558, %v2558
        %v2896 = vshrl.u32 %v2558, 16
        %v2897 = vpack.i.b16 %v2896, %v2896
        %v2899 = vpack.i.b16 %v2559, %v2559
        %v2900 = vshrl.u32 %v2559, 16
        %v2901 = vpack.i.b16 %v2900, %v2900
        %v2903 = vpack.i.b16 %v2560, %v2560
        %v2904 = vshrl.u32 %v2560, 16
        %v2905 = vpack.i.b16 %v2904, %v2904
        %v2907 = vpack.i.b16 %v2561, %v2561
        %v2908 = vshrl.u32 %v2561, 16
        %v2909 = vpack.i.b16 %v2908, %v2908
        %v2911 = vpack.i.b16 %v2562, %v2562
        %v2912 = vshrl.u32 %v2562, 16
        %v2913 = vpack.i.b16 %v2912, %v2912
        %v2915 = vpack.i.b16 %v2563, %v2563
        %v2916 = vshrl.u32 %v2563, 16
        %v2917 = vpack.i.b16 %v2916, %v2916
        %v2919 = vpack.i.b16 %v2564, %v2564
        %v2920 = vshrl.u32 %v2564, 16
        %v2921 = vpack.i.b16 %v2920, %v2920
        %v2923 = vpack.i.b16 %v2565, %v2565
        %v2924 = vshrl.u32 %v2565, 16
        %v2925 = vpack.i.b16 %v2924, %v2924
        %v2927 = vpack.i.b16 %v2694, %v2694
        %v2928 = vshrl.u32 %v2694, 16
        %v2929 = vpack.i.b16 %v2928, %v2928
        %v2931 = vpack.i.b16 %v2695, %v2695
        %v2932 = vshrl.u32 %v2695, 16
        %v2933 = vpack.i.b16 %v2932, %v2932
        %v2935 = vpack.i.b16 %v2696, %v2696
        %v2936 = vshrl.u32 %v2696, 16
        %v2937 = vpack.i.b16 %v2936, %v2936
        %v2939 = vpack.i.b16 %v2697, %v2697
        %v2940 = vshrl.u32 %v2697, 16
        %v2941 = vpack.i.b16 %v2940, %v2940
        %v2943 = vpack.i.b16 %v2698, %v2698
        %v2944 = vshrl.u32 %v2698, 16
        %v2945 = vpack.i.b16 %v2944, %v2944
        %v2947 = vpack.i.b16 %v2699, %v2699
        %v2948 = vshrl.u32 %v2699, 16
        %v2949 = vpack.i.b16 %v2948, %v2948
        %v2951 = vpack.i.b16 %v2700, %v2700
        %v2952 = vshrl.u32 %v2700, 16
        %v2953 = vpack.i.b16 %v2952, %v2952
        %v2955 = vpack.i.b16 %v2701, %v2701
        %v2956 = vshrl.u32 %v2701, 16
        %v2957 = vpack.i.b16 %v2956, %v2956
        %2958 = vrot.lane.b32.xlu0 %v2705, 2
        %v2959 = vpop.permute.xlu0 %2958
        %2960 = vrot.lane.b32.xlu0 %v2737, 2
        %v2961 = vpop.permute.xlu0 %2960
        %2962 = vrot.lane.b32.xlu0 %v2769, 2
        %v2963 = vpop.permute.xlu0 %2962
        %2964 = vrot.lane.b32.xlu0 %v2801, 2
        %v2965 = vpop.permute.xlu0 %2964
        %2966 = vrot.lane.b32.xlu0 %v2833, 2
        %v2967 = vpop.permute.xlu0 %2966
        %2968 = vrot.lane.b32.xlu0 %v2865, 2
        %v2969 = vpop.permute.xlu0 %2968
        %2970 = vrot.lane.b32.xlu0 %v2897, 2
        %v2971 = vpop.permute.xlu0 %2970
        %2972 = vrot.lane.b32.xlu0 %v2929, 2
        %v2973 = vpop.permute.xlu0 %2972
        %2974 = vrot.lane.b32.xlu0 %v2707, 4
        %v2975 = vpop.permute.xlu0 %2974
        %2976 = vrot.lane.b32.xlu0 %v2739, 4
        %v2977 = vpop.permute.xlu0 %2976
        %2978 = vrot.lane.b32.xlu0 %v2771, 4
        %v2979 = vpop.permute.xlu0 %2978
        %2980 = vrot.lane.b32.xlu0 %v2803, 4
        %v2981 = vpop.permute.xlu0 %2980
        %2982 = vrot.lane.b32.xlu0 %v2835, 4
        %v2983 = vpop.permute.xlu0 %2982
        %2984 = vrot.lane.b32.xlu0 %v2867, 4
        %v2985 = vpop.permute.xlu0 %2984
        %2986 = vrot.lane.b32.xlu0 %v2899, 4
        %v2987 = vpop.permute.xlu0 %2986
        %2988 = vrot.lane.b32.xlu0 %v2931, 4
        %v2989 = vpop.permute.xlu0 %2988
        %2990 = vrot.lane.b32.xlu0 %v2709, 6
        %v2991 = vpop.permute.xlu0 %2990
        %2992 = vrot.lane.b32.xlu0 %v2741, 6
        %v2993 = vpop.permute.xlu0 %2992
        %2994 = vrot.lane.b32.xlu0 %v2773, 6
        %v2995 = vpop.permute.xlu0 %2994
        %2996 = vrot.lane.b32.xlu0 %v2805, 6
        %v2997 = vpop.permute.xlu0 %2996
        %2998 = vrot.lane.b32.xlu0 %v2837, 6
        %v2999 = vpop.permute.xlu0 %2998
        %3000 = vrot.lane.b32.xlu0 %v2869, 6
        %v3001 = vpop.permute.xlu0 %3000
        %3002 = vrot.lane.b32.xlu0 %v2901, 6
        %v3003 = vpop.permute.xlu0 %3002
        %3004 = vrot.lane.b32.xlu0 %v2933, 6
        %v3005 = vpop.permute.xlu0 %3004
        %3006 = vrot.lane.b32.xlu0 %v2711, 8
        %v3007 = vpop.permute.xlu0 %3006
        %3008 = vrot.lane.b32.xlu0 %v2743, 8
        %v3009 = vpop.permute.xlu0 %3008
        %3010 = vrot.lane.b32.xlu0 %v2775, 8
        %v3011 = vpop.permute.xlu0 %3010
        %3012 = vrot.lane.b32.xlu0 %v2807, 8
        %v3013 = vpop.permute.xlu0 %3012
        %3014 = vrot.lane.b32.xlu0 %v2839, 8
        %v3015 = vpop.permute.xlu0 %3014
        %3016 = vrot.lane.b32.xlu0 %v2871, 8
        %v3017 = vpop.permute.xlu0 %3016
        %3018 = vrot.lane.b32.xlu0 %v2903, 8
        %v3019 = vpop.permute.xlu0 %3018
        %3020 = vrot.lane.b32.xlu0 %v2935, 8
        %v3021 = vpop.permute.xlu0 %3020
        %3022 = vrot.lane.b32.xlu0 %v2713, 10
        %v3023 = vpop.permute.xlu0 %3022
        %3024 = vrot.lane.b32.xlu0 %v2745, 10
        %v3025 = vpop.permute.xlu0 %3024
        %3026 = vrot.lane.b32.xlu0 %v2777, 10
        %v3027 = vpop.permute.xlu0 %3026
        %3028 = vrot.lane.b32.xlu0 %v2809, 10
        %v3029 = vpop.permute.xlu0 %3028
        %3030 = vrot.lane.b32.xlu0 %v2841, 10
        %v3031 = vpop.permute.xlu0 %3030
        %3032 = vrot.lane.b32.xlu0 %v2873, 10
        %v3033 = vpop.permute.xlu0 %3032
        %3034 = vrot.lane.b32.xlu0 %v2905, 10
        %v3035 = vpop.permute.xlu0 %3034
        %3036 = vrot.lane.b32.xlu0 %v2937, 10
        %v3037 = vpop.permute.xlu0 %3036
        %3038 = vrot.lane.b32.xlu0 %v2715, 12
        %v3039 = vpop.permute.xlu0 %3038
        %3040 = vrot.lane.b32.xlu0 %v2747, 12
        %v3041 = vpop.permute.xlu0 %3040
        %3042 = vrot.lane.b32.xlu0 %v2779, 12
        %v3043 = vpop.permute.xlu0 %3042
        %3044 = vrot.lane.b32.xlu0 %v2811, 12
        %v3045 = vpop.permute.xlu0 %3044
        %3046 = vrot.lane.b32.xlu0 %v2843, 12
        %v3047 = vpop.permute.xlu0 %3046
        %3048 = vrot.lane.b32.xlu0 %v2875, 12
        %v3049 = vpop.permute.xlu0 %3048
        %3050 = vrot.lane.b32.xlu0 %v2907, 12
        %v3051 = vpop.permute.xlu0 %3050
        %3052 = vrot.lane.b32.xlu0 %v2939, 12
        %v3053 = vpop.permute.xlu0 %3052
        %3054 = vrot.lane.b32.xlu0 %v2717, 14
        %v3055 = vpop.permute.xlu0 %3054
        %3056 = vrot.lane.b32.xlu0 %v2749, 14
        %v3057 = vpop.permute.xlu0 %3056
        %3058 = vrot.lane.b32.xlu0 %v2781, 14
        %v3059 = vpop.permute.xlu0 %3058
        %3060 = vrot.lane.b32.xlu0 %v2813, 14
        %v3061 = vpop.permute.xlu0 %3060
        %3062 = vrot.lane.b32.xlu0 %v2845, 14
        %v3063 = vpop.permute.xlu0 %3062
        %3064 = vrot.lane.b32.xlu0 %v2877, 14
        %v3065 = vpop.permute.xlu0 %3064
        %3066 = vrot.lane.b32.xlu0 %v2909, 14
        %v3067 = vpop.permute.xlu0 %3066
        %3068 = vrot.lane.b32.xlu0 %v2941, 14
        %v3069 = vpop.permute.xlu0 %3068
        %3070 = vrot.lane.b32.xlu0 %v2719, 16
        %v3071 = vpop.permute.xlu0 %3070
        %3072 = vrot.lane.b32.xlu0 %v2751, 16
        %v3073 = vpop.permute.xlu0 %3072
        %3074 = vrot.lane.b32.xlu0 %v2783, 16
        %v3075 = vpop.permute.xlu0 %3074
        %3076 = vrot.lane.b32.xlu0 %v2815, 16
        %v3077 = vpop.permute.xlu0 %3076
        %3078 = vrot.lane.b32.xlu0 %v2847, 16
        %v3079 = vpop.permute.xlu0 %3078
        %3080 = vrot.lane.b32.xlu0 %v2879, 16
        %v3081 = vpop.permute.xlu0 %3080
        %3082 = vrot.lane.b32.xlu0 %v2911, 16
        %v3083 = vpop.permute.xlu0 %3082
        %3084 = vrot.lane.b32.xlu0 %v2943, 16
        %v3085 = vpop.permute.xlu0 %3084
        %3086 = vrot.lane.b32.xlu0 %v2721, 18
        %v3087 = vpop.permute.xlu0 %3086
        %3088 = vrot.lane.b32.xlu0 %v2753, 18
        %v3089 = vpop.permute.xlu0 %3088
        %3090 = vrot.lane.b32.xlu0 %v2785, 18
        %v3091 = vpop.permute.xlu0 %3090
        %3092 = vrot.lane.b32.xlu0 %v2817, 18
        %v3093 = vpop.permute.xlu0 %3092
        %3094 = vrot.lane.b32.xlu0 %v2849, 18
        %v3095 = vpop.permute.xlu0 %3094
        %3096 = vrot.lane.b32.xlu0 %v2881, 18
        %v3097 = vpop.permute.xlu0 %3096
        %3098 = vrot.lane.b32.xlu0 %v2913, 18
        %v3099 = vpop.permute.xlu0 %3098
        %3100 = vrot.lane.b32.xlu0 %v2945, 18
        %v3101 = vpop.permute.xlu0 %3100
        %3102 = vrot.lane.b32.xlu0 %v2723, 20
        %v3103 = vpop.permute.xlu0 %3102
        %3104 = vrot.lane.b32.xlu0 %v2755, 20
        %v3105 = vpop.permute.xlu0 %3104
        %3106 = vrot.lane.b32.xlu0 %v2787, 20
        %v3107 = vpop.permute.xlu0 %3106
        %3108 = vrot.lane.b32.xlu0 %v2819, 20
        %v3109 = vpop.permute.xlu0 %3108
        %3110 = vrot.lane.b32.xlu0 %v2851, 20
        %v3111 = vpop.permute.xlu0 %3110
        %3112 = vrot.lane.b32.xlu0 %v2883, 20
        %v3113 = vpop.permute.xlu0 %3112
        %3114 = vrot.lane.b32.xlu0 %v2915, 20
        %v3115 = vpop.permute.xlu0 %3114
        %3116 = vrot.lane.b32.xlu0 %v2947, 20
        %v3117 = vpop.permute.xlu0 %3116
        %3118 = vrot.lane.b32.xlu0 %v2725, 22
        %v3119 = vpop.permute.xlu0 %3118
        %3120 = vrot.lane.b32.xlu0 %v2757, 22
        %v3121 = vpop.permute.xlu0 %3120
        %3122 = vrot.lane.b32.xlu0 %v2789, 22
        %v3123 = vpop.permute.xlu0 %3122
        %3124 = vrot.lane.b32.xlu0 %v2821, 22
        %v3125 = vpop.permute.xlu0 %3124
        %3126 = vrot.lane.b32.xlu0 %v2853, 22
        %v3127 = vpop.permute.xlu0 %3126
        %3128 = vrot.lane.b32.xlu0 %v2885, 22
        %v3129 = vpop.permute.xlu0 %3128
        %3130 = vrot.lane.b32.xlu0 %v2917, 22
        %v3131 = vpop.permute.xlu0 %3130
        %3132 = vrot.lane.b32.xlu0 %v2949, 22
        %v3133 = vpop.permute.xlu0 %3132
        %3134 = vrot.lane.b32.xlu0 %v2727, 24
        %v3135 = vpop.permute.xlu0 %3134
        %3136 = vrot.lane.b32.xlu0 %v2759, 24
        %v3137 = vpop.permute.xlu0 %3136
        %3138 = vrot.lane.b32.xlu0 %v2791, 24
        %v3139 = vpop.permute.xlu0 %3138
        %3140 = vrot.lane.b32.xlu0 %v2823, 24
        %v3141 = vpop.permute.xlu0 %3140
        %3142 = vrot.lane.b32.xlu0 %v2855, 24
        %v3143 = vpop.permute.xlu0 %3142
        %3144 = vrot.lane.b32.xlu0 %v2887, 24
        %v3145 = vpop.permute.xlu0 %3144
        %3146 = vrot.lane.b32.xlu0 %v2919, 24
        %v3147 = vpop.permute.xlu0 %3146
        %3148 = vrot.lane.b32.xlu0 %v2951, 24
        %v3149 = vpop.permute.xlu0 %3148
        %3150 = vrot.lane.b32.xlu0 %v2729, 26
        %v3151 = vpop.permute.xlu0 %3150
        %3152 = vrot.lane.b32.xlu0 %v2761, 26
        %v3153 = vpop.permute.xlu0 %3152
        %3154 = vrot.lane.b32.xlu0 %v2793, 26
        %v3155 = vpop.permute.xlu0 %3154
        %3156 = vrot.lane.b32.xlu0 %v2825, 26
        %v3157 = vpop.permute.xlu0 %3156
        %3158 = vrot.lane.b32.xlu0 %v2857, 26
        %v3159 = vpop.permute.xlu0 %3158
        %3160 = vrot.lane.b32.xlu0 %v2889, 26
        %v3161 = vpop.permute.xlu0 %3160
        %3162 = vrot.lane.b32.xlu0 %v2921, 26
        %v3163 = vpop.permute.xlu0 %3162
        %3164 = vrot.lane.b32.xlu0 %v2953, 26
        %v3165 = vpop.permute.xlu0 %3164
        %3166 = vrot.lane.b32.xlu0 %v2731, 28
        %v3167 = vpop.permute.xlu0 %3166
        %3168 = vrot.lane.b32.xlu0 %v2763, 28
        %v3169 = vpop.permute.xlu0 %3168
        %3170 = vrot.lane.b32.xlu0 %v2795, 28
        %v3171 = vpop.permute.xlu0 %3170
        %3172 = vrot.lane.b32.xlu0 %v2827, 28
        %v3173 = vpop.permute.xlu0 %3172
        %3174 = vrot.lane.b32.xlu0 %v2859, 28
        %v3175 = vpop.permute.xlu0 %3174
        %3176 = vrot.lane.b32.xlu0 %v2891, 28
        %v3177 = vpop.permute.xlu0 %3176
        %3178 = vrot.lane.b32.xlu0 %v2923, 28
        %v3179 = vpop.permute.xlu0 %3178
        %3180 = vrot.lane.b32.xlu0 %v2955, 28
        %v3181 = vpop.permute.xlu0 %3180
        %3182 = vrot.lane.b32.xlu0 %v2733, 30
        %v3183 = vpop.permute.xlu0 %3182
        %3184 = vrot.lane.b32.xlu0 %v2765, 30
        %v3185 = vpop.permute.xlu0 %3184
        %3186 = vrot.lane.b32.xlu0 %v2797, 30
        %v3187 = vpop.permute.xlu0 %3186
        %3188 = vrot.lane.b32.xlu0 %v2829, 30
        %v3189 = vpop.permute.xlu0 %3188
        %3190 = vrot.lane.b32.xlu0 %v2861, 30
        %v3191 = vpop.permute.xlu0 %3190
        %3192 = vrot.lane.b32.xlu0 %v2893, 30
        %v3193 = vpop.permute.xlu0 %3192
        %3194 = vrot.lane.b32.xlu0 %v2925, 30
        %v3195 = vpop.permute.xlu0 %3194
        %3196 = vrot.lane.b32.xlu0 %v2957, 30
        %v3197 = vpop.permute.xlu0 %3196
        %vm3198 = vcmask 15360
        %v3201 = vsel %vm3198, %v2703, %v2959
        %v3204 = vsel %vm3198, %v2735, %v2961
        %v3207 = vsel %vm3198, %v2767, %v2963
        %v3210 = vsel %vm3198, %v2799, %v2965
        %v3213 = vsel %vm3198, %v2831, %v2967
        %v3216 = vsel %vm3198, %v2863, %v2969
        %v3219 = vsel %vm3198, %v2895, %v2971
        %v3222 = vsel %vm3198, %v2927, %v2973
        %vm3223 = vcmask 31744
        %v3225 = vsel %vm3223, %v3201, %v2975
        %v3227 = vsel %vm3223, %v3204, %v2977
        %v3229 = vsel %vm3223, %v3207, %v2979
        %v3231 = vsel %vm3223, %v3210, %v2981
        %v3233 = vsel %vm3223, %v3213, %v2983
        %v3235 = vsel %vm3223, %v3216, %v2985
        %v3237 = vsel %vm3223, %v3219, %v2987
        %v3239 = vsel %vm3223, %v3222, %v2989
        %vm3240 = vcmask 48128
        %v3242 = vsel %vm3240, %v3225, %v2991
        %v3244 = vsel %vm3240, %v3227, %v2993
        %v3246 = vsel %vm3240, %v3229, %v2995
        %v3248 = vsel %vm3240, %v3231, %v2997
        %v3250 = vsel %vm3240, %v3233, %v2999
        %v3252 = vsel %vm3240, %v3235, %v3001
        %v3254 = vsel %vm3240, %v3237, %v3003
        %v3256 = vsel %vm3240, %v3239, %v3005
        %vm3257 = vcmask 64512
        %v3259 = vsel %vm3257, %v3242, %v3007
        %v3261 = vsel %vm3257, %v3244, %v3009
        %v3263 = vsel %vm3257, %v3246, %v3011
        %v3265 = vsel %vm3257, %v3248, %v3013
        %v3267 = vsel %vm3257, %v3250, %v3015
        %v3269 = vsel %vm3257, %v3252, %v3017
        %v3271 = vsel %vm3257, %v3254, %v3019
        %v3273 = vsel %vm3257, %v3256, %v3021
        %vm3274 = vcmask 80896
        %v3276 = vsel %vm3274, %v3259, %v3023
        %v3278 = vsel %vm3274, %v3261, %v3025
        %v3280 = vsel %vm3274, %v3263, %v3027
        %v3282 = vsel %vm3274, %v3265, %v3029
        %v3284 = vsel %vm3274, %v3267, %v3031
        %v3286 = vsel %vm3274, %v3269, %v3033
        %v3288 = vsel %vm3274, %v3271, %v3035
        %v3290 = vsel %vm3274, %v3273, %v3037
        %vm3291 = vcmask 97280
        %v3293 = vsel %vm3291, %v3276, %v3039
        %v3295 = vsel %vm3291, %v3278, %v3041
        %v3297 = vsel %vm3291, %v3280, %v3043
        %v3299 = vsel %vm3291, %v3282, %v3045
        %v3301 = vsel %vm3291, %v3284, %v3047
        %v3303 = vsel %vm3291, %v3286, %v3049
        %v3305 = vsel %vm3291, %v3288, %v3051
        %v3307 = vsel %vm3291, %v3290, %v3053
        %vm3308 = vcmask 113664
        %v3310 = vsel %vm3308, %v3293, %v3055
        %v3312 = vsel %vm3308, %v3295, %v3057
        %v3314 = vsel %vm3308, %v3297, %v3059
        %v3316 = vsel %vm3308, %v3299, %v3061
        %v3318 = vsel %vm3308, %v3301, %v3063
        %v3320 = vsel %vm3308, %v3303, %v3065
        %v3322 = vsel %vm3308, %v3305, %v3067
        %v3324 = vsel %vm3308, %v3307, %v3069
        %vm3325 = vcmask 130048
        %v3327 = vsel %vm3325, %v3310, %v3071
        %v3329 = vsel %vm3325, %v3312, %v3073
        %v3331 = vsel %vm3325, %v3314, %v3075
        %v3333 = vsel %vm3325, %v3316, %v3077
        %v3335 = vsel %vm3325, %v3318, %v3079
        %v3337 = vsel %vm3325, %v3320, %v3081
        %v3339 = vsel %vm3325, %v3322, %v3083
        %v3341 = vsel %vm3325, %v3324, %v3085
        %vm3342 = vcmask 146432
        %v3344 = vsel %vm3342, %v3327, %v3087
        %v3346 = vsel %vm3342, %v3329, %v3089
        %v3348 = vsel %vm3342, %v3331, %v3091
        %v3350 = vsel %vm3342, %v3333, %v3093
        %v3352 = vsel %vm3342, %v3335, %v3095
        %v3354 = vsel %vm3342, %v3337, %v3097
        %v3356 = vsel %vm3342, %v3339, %v3099
        %v3358 = vsel %vm3342, %v3341, %v3101
        %vm3359 = vcmask 162816
        %v3361 = vsel %vm3359, %v3344, %v3103
        %v3363 = vsel %vm3359, %v3346, %v3105
        %v3365 = vsel %vm3359, %v3348, %v3107
        %v3367 = vsel %vm3359, %v3350, %v3109
        %v3369 = vsel %vm3359, %v3352, %v3111
        %v3371 = vsel %vm3359, %v3354, %v3113
        %v3373 = vsel %vm3359, %v3356, %v3115
        %v3375 = vsel %vm3359, %v3358, %v3117
        %vm3376 = vcmask 179200
        %v3378 = vsel %vm3376, %v3361, %v3119
        %v3380 = vsel %vm3376, %v3363, %v3121
        %v3382 = vsel %vm3376, %v3365, %v3123
        %v3384 = vsel %vm3376, %v3367, %v3125
        %v3386 = vsel %vm3376, %v3369, %v3127
        %v3388 = vsel %vm3376, %v3371, %v3129
        %v3390 = vsel %vm3376, %v3373, %v3131
        %v3392 = vsel %vm3376, %v3375, %v3133
        %vm3393 = vcmask 195584
        %v3395 = vsel %vm3393, %v3378, %v3135
        %v3397 = vsel %vm3393, %v3380, %v3137
        %v3399 = vsel %vm3393, %v3382, %v3139
        %v3401 = vsel %vm3393, %v3384, %v3141
        %v3403 = vsel %vm3393, %v3386, %v3143
        %v3405 = vsel %vm3393, %v3388, %v3145
        %v3407 = vsel %vm3393, %v3390, %v3147
        %v3409 = vsel %vm3393, %v3392, %v3149
        %vm3410 = vcmask 211968
        %v3412 = vsel %vm3410, %v3395, %v3151
        %v3414 = vsel %vm3410, %v3397, %v3153
        %v3416 = vsel %vm3410, %v3399, %v3155
        %v3418 = vsel %vm3410, %v3401, %v3157
        %v3420 = vsel %vm3410, %v3403, %v3159
        %v3422 = vsel %vm3410, %v3405, %v3161
        %v3424 = vsel %vm3410, %v3407, %v3163
        %v3426 = vsel %vm3410, %v3409, %v3165
        %vm3427 = vcmask 228352
        %v3429 = vsel %vm3427, %v3412, %v3167
        %v3431 = vsel %vm3427, %v3414, %v3169
        %v3433 = vsel %vm3427, %v3416, %v3171
        %v3435 = vsel %vm3427, %v3418, %v3173
        %v3437 = vsel %vm3427, %v3420, %v3175
        %v3439 = vsel %vm3427, %v3422, %v3177
        %v3441 = vsel %vm3427, %v3424, %v3179
        %v3443 = vsel %vm3427, %v3426, %v3181
        %vm3444 = vcmask 244736
        %v3446 = vsel %vm3444, %v3429, %v3183
        %v3448 = vsel %vm3444, %v3431, %v3185
        %v3450 = vsel %vm3444, %v3433, %v3187
        %v3452 = vsel %vm3444, %v3435, %v3189
        %v3454 = vsel %vm3444, %v3437, %v3191
        %v3456 = vsel %vm3444, %v3439, %v3193
        %v3458 = vsel %vm3444, %v3441, %v3195
        %v3460 = vsel %vm3444, %v3443, %v3197
        %v3461 = vshrl.u32 %v3446, 16
        %v3463 = vshrl.u32 %v3450, 16
        %v3465 = vshrl.u32 %v3454, 16
        %v3467 = vshrl.u32 %v3458, 16
        %vm3473 = vsmask.f32 256
        %v3474 = vrot.slane %v3461, 7
        %v3475 = vshll.u32 %v3446, 16
        %v3477 = vor.u32 %v3474, %v3475
        %v3478 = vshrl.u32 %v3448, 16
        %v3480 = vrot.slane %v3478, 7
        %v3481 = vshll.u32 %v3448, 16
        %v3483 = vor.u32 %v3480, %v3481
        %v3484 = vsel %vm3473, %v3474, %v3483
        %v3485 = vrot.slane %v3463, 7
        %v3486 = vshll.u32 %v3450, 16
        %v3488 = vor.u32 %v3485, %v3486
        %v3489 = vshrl.u32 %v3452, 16
        %v3491 = vrot.slane %v3489, 7
        %v3492 = vshll.u32 %v3452, 16
        %v3494 = vor.u32 %v3491, %v3492
        %v3495 = vsel %vm3473, %v3485, %v3494
        %v3496 = vrot.slane %v3465, 7
        %v3497 = vshll.u32 %v3454, 16
        %v3499 = vor.u32 %v3496, %v3497
        %v3500 = vshrl.u32 %v3456, 16
        %v3502 = vrot.slane %v3500, 7
        %v3503 = vshll.u32 %v3456, 16
        %v3505 = vor.u32 %v3502, %v3503
        %v3506 = vsel %vm3473, %v3496, %v3505
        %v3507 = vrot.slane %v3467, 7
        %v3508 = vshll.u32 %v3458, 16
        %v3510 = vor.u32 %v3507, %v3508
        %v3511 = vshrl.u32 %v3460, 16
        %v3513 = vrot.slane %v3511, 7
        %v3514 = vshll.u32 %v3460, 16
        %v3516 = vor.u32 %v3513, %v3514
        %v3517 = vsel %vm3473, %v3507, %v3516
        %v3526 = vrot.slane %v3481, 7
        %v3527 = vrot.slane %v3492, 7
        %v3528 = vrot.slane %v3503, 7
        %v3529 = vrot.slane %v3514, 7
        %vm3534 = vcmask 1040384
        %vm3535 = vmand %vm3534, %vm3473
        %v3536 = vsel %vm3535, %v3461, %v3477
        %v3537 = vsel %vm3535, %v3463, %v3488
        %v3538 = vsel %vm3535, %v3465, %v3499
        %v3539 = vsel %vm3535, %v3467, %v3510
        %v3540 = vsel %vm3535, %v3480, %v3526
        %v3541 = vsel %vm3535, %v3491, %v3527
        %v3542 = vsel %vm3535, %v3502, %v3528
        %v3543 = vsel %vm3535, %v3513, %v3529
        %3552 = vrot.lane.b32.xlu0 %v3536, 127
        %v3553 = vpop.permute.xlu0 %3552
        %3554 = vrot.lane.b32.xlu0 %v3484, 127
        %v3555 = vpop.permute.xlu0 %3554
        %3556 = vrot.lane.b32.xlu0 %v3540, 127
        %v3557 = vpop.permute.xlu0 %3556
        %3558 = vrot.lane.b32.xlu0 %v3537, 127
        %v3559 = vpop.permute.xlu0 %3558
        %3560 = vrot.lane.b32.xlu0 %v3495, 127
        %v3561 = vpop.permute.xlu0 %3560
        %3562 = vrot.lane.b32.xlu0 %v3541, 127
        %v3563 = vpop.permute.xlu0 %3562
        %3564 = vrot.lane.b32.xlu0 %v3538, 127
        %v3565 = vpop.permute.xlu0 %3564
        %3566 = vrot.lane.b32.xlu0 %v3506, 127
        %v3567 = vpop.permute.xlu0 %3566
        %3568 = vrot.lane.b32.xlu0 %v3542, 127
        %v3569 = vpop.permute.xlu0 %3568
        %3570 = vrot.lane.b32.xlu0 %v3539, 127
        %v3571 = vpop.permute.xlu0 %3570
        %3572 = vrot.lane.b32.xlu0 %v3517, 127
        %v3573 = vpop.permute.xlu0 %3572
        %3574 = vrot.lane.b32.xlu0 %v3543, 127
        %v3575 = vpop.permute.xlu0 %3574
        %3576 = vrot.lane.b32.xlu0 %v3536, 1
        %v3577 = vpop.permute.xlu0 %3576
        %3578 = vrot.lane.b32.xlu0 %v3484, 1
        %v3579 = vpop.permute.xlu0 %3578
        %3580 = vrot.lane.b32.xlu0 %v3540, 1
        %v3581 = vpop.permute.xlu0 %3580
        %3582 = vrot.lane.b32.xlu0 %v3537, 1
        %v3583 = vpop.permute.xlu0 %3582
        %3584 = vrot.lane.b32.xlu0 %v3495, 1
        %v3585 = vpop.permute.xlu0 %3584
        %3586 = vrot.lane.b32.xlu0 %v3541, 1
        %v3587 = vpop.permute.xlu0 %3586
        %3588 = vrot.lane.b32.xlu0 %v3538, 1
        %v3589 = vpop.permute.xlu0 %3588
        %3590 = vrot.lane.b32.xlu0 %v3506, 1
        %v3591 = vpop.permute.xlu0 %3590
        %3592 = vrot.lane.b32.xlu0 %v3542, 1
        %v3593 = vpop.permute.xlu0 %3592
        %3594 = vrot.lane.b32.xlu0 %v3539, 1
        %v3595 = vpop.permute.xlu0 %3594
        %3596 = vrot.lane.b32.xlu0 %v3517, 1
        %v3597 = vpop.permute.xlu0 %3596
        %3598 = vrot.lane.b32.xlu0 %v3543, 1
        %v3599 = vpop.permute.xlu0 %3598
        %3600 = vrot.lane.b32.xlu0 %v3536, 3
        %v3601 = vpop.permute.xlu0 %3600
        %3602 = vrot.lane.b32.xlu0 %v3484, 3
        %v3603 = vpop.permute.xlu0 %3602
        %3604 = vrot.lane.b32.xlu0 %v3540, 3
        %v3605 = vpop.permute.xlu0 %3604
        %3606 = vrot.lane.b32.xlu0 %v3537, 3
        %v3607 = vpop.permute.xlu0 %3606
        %3608 = vrot.lane.b32.xlu0 %v3495, 3
        %v3609 = vpop.permute.xlu0 %3608
        %3610 = vrot.lane.b32.xlu0 %v3541, 3
        %v3611 = vpop.permute.xlu0 %3610
        %3612 = vrot.lane.b32.xlu0 %v3538, 3
        %v3613 = vpop.permute.xlu0 %3612
        %3614 = vrot.lane.b32.xlu0 %v3506, 3
        %v3615 = vpop.permute.xlu0 %3614
        %3616 = vrot.lane.b32.xlu0 %v3542, 3
        %v3617 = vpop.permute.xlu0 %3616
        %3618 = vrot.lane.b32.xlu0 %v3539, 3
        %v3619 = vpop.permute.xlu0 %3618
        %3620 = vrot.lane.b32.xlu0 %v3517, 3
        %v3621 = vpop.permute.xlu0 %3620
        %3622 = vrot.lane.b32.xlu0 %v3543, 3
        %v3623 = vpop.permute.xlu0 %3622
        %vm3624 = vcmask 7168
        %v3627 = vsel %vm3624, %v3553, %v3577
        %v3630 = vsel %vm3624, %v3555, %v3579
        %v3633 = vsel %vm3624, %v3557, %v3581
        %v3636 = vsel %vm3624, %v3559, %v3583
        %v3639 = vsel %vm3624, %v3561, %v3585
        %v3642 = vsel %vm3624, %v3563, %v3587
        %v3645 = vsel %vm3624, %v3565, %v3589
        %v3648 = vsel %vm3624, %v3567, %v3591
        %v3651 = vsel %vm3624, %v3569, %v3593
        %v3654 = vsel %vm3624, %v3571, %v3595
        %v3657 = vsel %vm3624, %v3573, %v3597
        %v3660 = vsel %vm3624, %v3575, %v3599
        %vm3661 = vcmask 269312
        %v3663 = vsel %vm3661, %v3627, %v3601
        %v3665 = vsel %vm3661, %v3630, %v3603
        %v3667 = vsel %vm3661, %v3633, %v3605
        %v3669 = vsel %vm3661, %v3636, %v3607
        %v3671 = vsel %vm3661, %v3639, %v3609
        %v3673 = vsel %vm3661, %v3642, %v3611
        %v3675 = vsel %vm3661, %v3645, %v3613
        %v3677 = vsel %vm3661, %v3648, %v3615
        %v3679 = vsel %vm3661, %v3651, %v3617
        %v3681 = vsel %vm3661, %v3654, %v3619
        %v3683 = vsel %vm3661, %v3657, %v3621
        %v3685 = vsel %vm3661, %v3660, %v3623
        %v3686 = vpack.i.b16 %v3669, %v3663
        %v3688 = vshrl.u32 %v3663, 16
        %v3689 = vshrl.u32 %v3669, 16
        %v3690 = vpack.i.b16 %v3689, %v3688
        %v3692 = vpack.i.b16 %v3681, %v3675
        %v3694 = vshrl.u32 %v3675, 16
        %v3695 = vshrl.u32 %v3681, 16
        %v3696 = vpack.i.b16 %v3695, %v3694
        %v3699 = vpack.i.b16 0, 0
        %v3701 = vshrl.u32 0, 16
        %v3702 = vpack.i.b16 %v3701, %v3701
        %v3704 = vpack.i.b16 %v3671, %v3665
        %v3706 = vshrl.u32 %v3665, 16
        %v3707 = vshrl.u32 %v3671, 16
        %v3708 = vpack.i.b16 %v3707, %v3706
        %v3710 = vpack.i.b16 %v3683, %v3677
        %v3712 = vshrl.u32 %v3677, 16
        %v3713 = vshrl.u32 %v3683, 16
        %v3714 = vpack.i.b16 %v3713, %v3712
        %v3716 = vcombine.high %v3686, %v3699
        %v3718 = vunpack.c.l.s4 1983009808
        %v3719 = vunpack.c.0.s8 %v3718
        %v3720 = vlaneseq
        %v3721 = vshrl.u32 %v3720, 7
        %v3722 = vsub.s32 %v3719, %v3721
        %v3723 = vrot.slane %v3686, %v3722
        %v3725 = vunpack.c.l.s4 1983009808
        %v3726 = vunpack.c.0.s8 %v3725
        %v3727 = vlaneseq
        %v3728 = vshrl.u32 %v3727, 7
        %v3729 = vsub.s32 %v3726, %v3728
        %v3730 = vrot.slane %v3716, %v3729
        %v3731 = vcombine.high %v3692, %v3699
        %v3733 = vunpack.c.l.s4 1983009808
        %v3734 = vunpack.c.0.s8 %v3733
        %v3735 = vlaneseq
        %v3736 = vshrl.u32 %v3735, 7
        %v3737 = vsub.s32 %v3734, %v3736
        %v3738 = vrot.slane %v3692, %v3737
        %v3740 = vunpack.c.l.s4 1983009808
        %v3741 = vunpack.c.0.s8 %v3740
        %v3742 = vlaneseq
        %v3743 = vshrl.u32 %v3742, 7
        %v3744 = vsub.s32 %v3741, %v3743
        %v3745 = vrot.slane %v3731, %v3744
        %v3746 = vcombine.low %v3723, %v3738
        %v3747 = vcombine.high %v3723, %v3738
        %v3749 = vunpack.c.l.s4 1934713408
        %v3750 = vunpack.c.0.s8 %v3749
        %v3751 = vlaneseq
        %v3752 = vshrl.u32 %v3751, 7
        %v3753 = vsub.s32 %v3750, %v3752
        %v3754 = vrot.slane %v3746, %v3753
        %v3756 = vunpack.c.l.s4 1934713408
        %v3757 = vunpack.c.0.s8 %v3756
        %v3758 = vlaneseq
        %v3759 = vshrl.u32 %v3758, 7
        %v3760 = vsub.s32 %v3757, %v3759
        %v3761 = vrot.slane %v3747, %v3760
        %v3762 = vcombine.low %v3730, %v3745
        %v3763 = vcombine.high %v3730, %v3745
        %v3765 = vunpack.c.l.s4 1934713408
        %v3766 = vunpack.c.0.s8 %v3765
        %v3767 = vlaneseq
        %v3768 = vshrl.u32 %v3767, 7
        %v3769 = vsub.s32 %v3766, %v3768
        %v3770 = vrot.slane %v3762, %v3769
        %v3772 = vunpack.c.l.s4 1934713408
        %v3773 = vunpack.c.0.s8 %v3772
        %v3774 = vlaneseq
        %v3775 = vshrl.u32 %v3774, 7
        %v3776 = vsub.s32 %v3773, %v3775
        %v3777 = vrot.slane %v3763, %v3776
        %v3778 = vcombine.high %v3754, 0
        %v3779 = vcombine.high %v3761, 0
        %v3780 = vcombine.high %v3770, 0
        %v3781 = vcombine.high %v3777, 0
        %v3782 = vcombine.high %v3690, %v3702
        %v3784 = vunpack.c.l.s4 1983009808
        %v3785 = vunpack.c.0.s8 %v3784
        %v3786 = vlaneseq
        %v3787 = vshrl.u32 %v3786, 7
        %v3788 = vsub.s32 %v3785, %v3787
        %v3789 = vrot.slane %v3690, %v3788
        %v3791 = vunpack.c.l.s4 1983009808
        %v3792 = vunpack.c.0.s8 %v3791
        %v3793 = vlaneseq
        %v3794 = vshrl.u32 %v3793, 7
        %v3795 = vsub.s32 %v3792, %v3794
        %v3796 = vrot.slane %v3782, %v3795
        %v3797 = vcombine.high %v3696, %v3702
        %v3799 = vunpack.c.l.s4 1983009808
        %v3800 = vunpack.c.0.s8 %v3799
        %v3801 = vlaneseq
        %v3802 = vshrl.u32 %v3801, 7
        %v3803 = vsub.s32 %v3800, %v3802
        %v3804 = vrot.slane %v3696, %v3803
        %v3806 = vunpack.c.l.s4 1983009808
        %v3807 = vunpack.c.0.s8 %v3806
        %v3808 = vlaneseq
        %v3809 = vshrl.u32 %v3808, 7
        %v3810 = vsub.s32 %v3807, %v3809
        %v3811 = vrot.slane %v3797, %v3810
        %v3812 = vcombine.low %v3789, %v3804
        %v3813 = vcombine.high %v3789, %v3804
        %v3815 = vunpack.c.l.s4 1934713408
        %v3816 = vunpack.c.0.s8 %v3815
        %v3817 = vlaneseq
        %v3818 = vshrl.u32 %v3817, 7
        %v3819 = vsub.s32 %v3816, %v3818
        %v3820 = vrot.slane %v3812, %v3819
        %v3822 = vunpack.c.l.s4 1934713408
        %v3823 = vunpack.c.0.s8 %v3822
        %v3824 = vlaneseq
        %v3825 = vshrl.u32 %v3824, 7
        %v3826 = vsub.s32 %v3823, %v3825
        %v3827 = vrot.slane %v3813, %v3826
        %v3828 = vcombine.low %v3796, %v3811
        %v3829 = vcombine.high %v3796, %v3811
        %v3831 = vunpack.c.l.s4 1934713408
        %v3832 = vunpack.c.0.s8 %v3831
        %v3833 = vlaneseq
        %v3834 = vshrl.u32 %v3833, 7
        %v3835 = vsub.s32 %v3832, %v3834
        %v3836 = vrot.slane %v3828, %v3835
        %v3838 = vunpack.c.l.s4 1934713408
        %v3839 = vunpack.c.0.s8 %v3838
        %v3840 = vlaneseq
        %v3841 = vshrl.u32 %v3840, 7
        %v3842 = vsub.s32 %v3839, %v3841
        %v3843 = vrot.slane %v3829, %v3842
        %v3844 = vcombine.high %v3820, 0
        %v3845 = vcombine.high %v3827, 0
        %v3846 = vcombine.high %v3836, 0
        %v3847 = vcombine.high %v3843, 0
        %v3848 = vcombine.high %v3704, %v3699
        %v3850 = vunpack.c.l.s4 1983009808
        %v3851 = vunpack.c.0.s8 %v3850
        %v3852 = vlaneseq
        %v3853 = vshrl.u32 %v3852, 7
        %v3854 = vsub.s32 %v3851, %v3853
        %v3855 = vrot.slane %v3704, %v3854
        %v3857 = vunpack.c.l.s4 1983009808
        %v3858 = vunpack.c.0.s8 %v3857
        %v3859 = vlaneseq
        %v3860 = vshrl.u32 %v3859, 7
        %v3861 = vsub.s32 %v3858, %v3860
        %v3862 = vrot.slane %v3848, %v3861
        %v3863 = vcombine.high %v3710, %v3699
        %v3865 = vunpack.c.l.s4 1983009808
        %v3866 = vunpack.c.0.s8 %v3865
        %v3867 = vlaneseq
        %v3868 = vshrl.u32 %v3867, 7
        %v3869 = vsub.s32 %v3866, %v3868
        %v3870 = vrot.slane %v3710, %v3869
        %v3872 = vunpack.c.l.s4 1983009808
        %v3873 = vunpack.c.0.s8 %v3872
        %v3874 = vlaneseq
        %v3875 = vshrl.u32 %v3874, 7
        %v3876 = vsub.s32 %v3873, %v3875
        %v3877 = vrot.slane %v3863, %v3876
        %v3878 = vcombine.low %v3855, %v3870
        %v3879 = vcombine.high %v3855, %v3870
        %v3881 = vunpack.c.l.s4 1934713408
        %v3882 = vunpack.c.0.s8 %v3881
        %v3883 = vlaneseq
        %v3884 = vshrl.u32 %v3883, 7
        %v3885 = vsub.s32 %v3882, %v3884
        %v3886 = vrot.slane %v3878, %v3885
        %v3888 = vunpack.c.l.s4 1934713408
        %v3889 = vunpack.c.0.s8 %v3888
        %v3890 = vlaneseq
        %v3891 = vshrl.u32 %v3890, 7
        %v3892 = vsub.s32 %v3889, %v3891
        %v3893 = vrot.slane %v3879, %v3892
        %v3894 = vcombine.low %v3862, %v3877
        %v3895 = vcombine.high %v3862, %v3877
        %v3897 = vunpack.c.l.s4 1934713408
        %v3898 = vunpack.c.0.s8 %v3897
        %v3899 = vlaneseq
        %v3900 = vshrl.u32 %v3899, 7
        %v3901 = vsub.s32 %v3898, %v3900
        %v3902 = vrot.slane %v3894, %v3901
        %v3904 = vunpack.c.l.s4 1934713408
        %v3905 = vunpack.c.0.s8 %v3904
        %v3906 = vlaneseq
        %v3907 = vshrl.u32 %v3906, 7
        %v3908 = vsub.s32 %v3905, %v3907
        %v3909 = vrot.slane %v3895, %v3908
        %v3910 = vcombine.high %v3886, 0
        %v3911 = vcombine.high %v3893, 0
        %v3912 = vcombine.high %v3902, 0
        %v3913 = vcombine.high %v3909, 0
        %v3914 = vcombine.high %v3708, %v3702
        %v3916 = vunpack.c.l.s4 1983009808
        %v3917 = vunpack.c.0.s8 %v3916
        %v3918 = vlaneseq
        %v3919 = vshrl.u32 %v3918, 7
        %v3920 = vsub.s32 %v3917, %v3919
        %v3921 = vrot.slane %v3708, %v3920
        %v3923 = vunpack.c.l.s4 1983009808
        %v3924 = vunpack.c.0.s8 %v3923
        %v3925 = vlaneseq
        %v3926 = vshrl.u32 %v3925, 7
        %v3927 = vsub.s32 %v3924, %v3926
        %v3928 = vrot.slane %v3914, %v3927
        %v3929 = vcombine.high %v3714, %v3702
        %v3931 = vunpack.c.l.s4 1983009808
        %v3932 = vunpack.c.0.s8 %v3931
        %v3933 = vlaneseq
        %v3934 = vshrl.u32 %v3933, 7
        %v3935 = vsub.s32 %v3932, %v3934
        %v3936 = vrot.slane %v3714, %v3935
        %v3938 = vunpack.c.l.s4 1983009808
        %v3939 = vunpack.c.0.s8 %v3938
        %v3940 = vlaneseq
        %v3941 = vshrl.u32 %v3940, 7
        %v3942 = vsub.s32 %v3939, %v3941
        %v3943 = vrot.slane %v3929, %v3942
        %v3944 = vcombine.low %v3921, %v3936
        %v3945 = vcombine.high %v3921, %v3936
        %v3947 = vunpack.c.l.s4 1934713408
        %v3948 = vunpack.c.0.s8 %v3947
        %v3949 = vlaneseq
        %v3950 = vshrl.u32 %v3949, 7
        %v3951 = vsub.s32 %v3948, %v3950
        %v3952 = vrot.slane %v3944, %v3951
        %v3954 = vunpack.c.l.s4 1934713408
        %v3955 = vunpack.c.0.s8 %v3954
        %v3956 = vlaneseq
        %v3957 = vshrl.u32 %v3956, 7
        %v3958 = vsub.s32 %v3955, %v3957
        %v3959 = vrot.slane %v3945, %v3958
        %v3960 = vcombine.low %v3928, %v3943
        %v3961 = vcombine.high %v3928, %v3943
        %v3963 = vunpack.c.l.s4 1934713408
        %v3964 = vunpack.c.0.s8 %v3963
        %v3965 = vlaneseq
        %v3966 = vshrl.u32 %v3965, 7
        %v3967 = vsub.s32 %v3964, %v3966
        %v3968 = vrot.slane %v3960, %v3967
        %v3970 = vunpack.c.l.s4 1934713408
        %v3971 = vunpack.c.0.s8 %v3970
        %v3972 = vlaneseq
        %v3973 = vshrl.u32 %v3972, 7
        %v3974 = vsub.s32 %v3971, %v3973
        %v3975 = vrot.slane %v3961, %v3974
        %v3976 = vcombine.high %v3952, 0
        %v3977 = vcombine.high %v3959, 0
        %v3978 = vcombine.high %v3968, 0
        %v3979 = vcombine.high %v3975, 0
        %3981 = vrot.lane.b32.xlu0 %v3820, 32
        %v3982 = vpop.permute.xlu0 %3981
        %3984 = vrot.lane.b32.xlu0 %v3778, 64
        %v3985 = vpop.permute.xlu0 %3984
        %3987 = vrot.lane.b32.xlu0 %v3844, 96
        %v3988 = vpop.permute.xlu0 %3987
        %3990 = vrot.lane.b32.xlu0 %v3827, 32
        %v3991 = vpop.permute.xlu0 %3990
        %3993 = vrot.lane.b32.xlu0 %v3779, 64
        %v3994 = vpop.permute.xlu0 %3993
        %3996 = vrot.lane.b32.xlu0 %v3845, 96
        %v3997 = vpop.permute.xlu0 %3996
        %3999 = vrot.lane.b32.xlu0 %v3836, 32
        %v4000 = vpop.permute.xlu0 %3999
        %4002 = vrot.lane.b32.xlu0 %v3780, 64
        %v4003 = vpop.permute.xlu0 %4002
        %4005 = vrot.lane.b32.xlu0 %v3846, 96
        %v4006 = vpop.permute.xlu0 %4005
        %4008 = vrot.lane.b32.xlu0 %v3843, 32
        %v4009 = vpop.permute.xlu0 %4008
        %4011 = vrot.lane.b32.xlu0 %v3781, 64
        %v4012 = vpop.permute.xlu0 %4011
        %4014 = vrot.lane.b32.xlu0 %v3847, 96
        %v4015 = vpop.permute.xlu0 %4014
        %4017 = vrot.lane.b32.xlu0 %v3952, 32
        %v4018 = vpop.permute.xlu0 %4017
        %4020 = vrot.lane.b32.xlu0 %v3910, 64
        %v4021 = vpop.permute.xlu0 %4020
        %4023 = vrot.lane.b32.xlu0 %v3976, 96
        %v4024 = vpop.permute.xlu0 %4023
        %4026 = vrot.lane.b32.xlu0 %v3959, 32
        %v4027 = vpop.permute.xlu0 %4026
        %4029 = vrot.lane.b32.xlu0 %v3911, 64
        %v4030 = vpop.permute.xlu0 %4029
        %4032 = vrot.lane.b32.xlu0 %v3977, 96
        %v4033 = vpop.permute.xlu0 %4032
        %4035 = vrot.lane.b32.xlu0 %v3968, 32
        %v4036 = vpop.permute.xlu0 %4035
        %4038 = vrot.lane.b32.xlu0 %v3912, 64
        %v4039 = vpop.permute.xlu0 %4038
        %4041 = vrot.lane.b32.xlu0 %v3978, 96
        %v4042 = vpop.permute.xlu0 %4041
        %4044 = vrot.lane.b32.xlu0 %v3975, 32
        %v4045 = vpop.permute.xlu0 %4044
        %4047 = vrot.lane.b32.xlu0 %v3913, 64
        %v4048 = vpop.permute.xlu0 %4047
        %4050 = vrot.lane.b32.xlu0 %v3979, 96
        %v4051 = vpop.permute.xlu0 %4050
        %vm4052 = vcmask 261120
        %v4055 = vsel %vm4052, %v3754, %v3982
        %vm4056 = vcmask 523264
        %v4058 = vsel %vm4056, %v4055, %v3985
        %vm4059 = vcmask 785408
        %v4061 = vsel %vm4059, %v4058, %v3988
        %v4064 = vsel %vm4052, %v3761, %v3991
        %v4066 = vsel %vm4056, %v4064, %v3994
        %v4068 = vsel %vm4059, %v4066, %v3997
        %v4071 = vsel %vm4052, %v3770, %v4000
        %v4073 = vsel %vm4056, %v4071, %v4003
        %v4075 = vsel %vm4059, %v4073, %v4006
        %v4078 = vsel %vm4052, %v3777, %v4009
        %v4080 = vsel %vm4056, %v4078, %v4012
        %v4082 = vsel %vm4059, %v4080, %v4015
        %v4085 = vsel %vm4052, %v3886, %v4018
        %v4087 = vsel %vm4056, %v4085, %v4021
        %v4089 = vsel %vm4059, %v4087, %v4024
        %v4092 = vsel %vm4052, %v3893, %v4027
        %v4094 = vsel %vm4056, %v4092, %v4030
        %v4096 = vsel %vm4059, %v4094, %v4033
        %v4099 = vsel %vm4052, %v3902, %v4036
        %v4101 = vsel %vm4056, %v4099, %v4039
        %v4103 = vsel %vm4059, %v4101, %v4042
        %v4106 = vsel %vm4052, %v3909, %v4045
        %v4108 = vsel %vm4056, %v4106, %v4048
        %v4110 = vsel %vm4059, %v4108, %v4051
        %4119 = vrot.lane.b32.xlu0 %v3663, 127
        %v4120 = vpop.permute.xlu0 %4119
        %4121 = vrot.lane.b32.xlu0 %v3665, 127
        %v4122 = vpop.permute.xlu0 %4121
        %4123 = vrot.lane.b32.xlu0 %v3669, 127
        %v4124 = vpop.permute.xlu0 %4123
        %4125 = vrot.lane.b32.xlu0 %v3671, 127
        %v4126 = vpop.permute.xlu0 %4125
        %4127 = vrot.lane.b32.xlu0 %v3675, 127
        %v4128 = vpop.permute.xlu0 %4127
        %4129 = vrot.lane.b32.xlu0 %v3677, 127
        %v4130 = vpop.permute.xlu0 %4129
        %4131 = vrot.lane.b32.xlu0 %v3681, 127
        %v4132 = vpop.permute.xlu0 %4131
        %4133 = vrot.lane.b32.xlu0 %v3683, 127
        %v4134 = vpop.permute.xlu0 %4133
        %v4137 = vpack.i.b16 %v4124, %v4120
        %v4139 = vshrl.u32 %v4120, 16
        %v4140 = vshrl.u32 %v4124, 16
        %v4141 = vpack.i.b16 %v4140, %v4139
        %v4145 = vpack.i.b16 %v4132, %v4128
        %v4147 = vshrl.u32 %v4128, 16
        %v4148 = vshrl.u32 %v4132, 16
        %v4149 = vpack.i.b16 %v4148, %v4147
        %v4153 = vpack.i.b16 %v4126, %v4122
        %v4155 = vshrl.u32 %v4122, 16
        %v4156 = vshrl.u32 %v4126, 16
        %v4157 = vpack.i.b16 %v4156, %v4155
        %v4161 = vpack.i.b16 %v4134, %v4130
        %v4163 = vshrl.u32 %v4130, 16
        %v4164 = vshrl.u32 %v4134, 16
        %v4165 = vpack.i.b16 %v4164, %v4163
        %v4167 = vcombine.high %v4137, %v3699
        %v4169 = vunpack.c.l.s4 1983009808
        %v4170 = vunpack.c.0.s8 %v4169
        %v4171 = vlaneseq
        %v4172 = vshrl.u32 %v4171, 7
        %v4173 = vsub.s32 %v4170, %v4172
        %v4174 = vrot.slane %v4137, %v4173
        %v4176 = vunpack.c.l.s4 1983009808
        %v4177 = vunpack.c.0.s8 %v4176
        %v4178 = vlaneseq
        %v4179 = vshrl.u32 %v4178, 7
        %v4180 = vsub.s32 %v4177, %v4179
        %v4181 = vrot.slane %v4167, %v4180
        %v4182 = vcombine.high %v4145, %v3699
        %v4184 = vunpack.c.l.s4 1983009808
        %v4185 = vunpack.c.0.s8 %v4184
        %v4186 = vlaneseq
        %v4187 = vshrl.u32 %v4186, 7
        %v4188 = vsub.s32 %v4185, %v4187
        %v4189 = vrot.slane %v4145, %v4188
        %v4191 = vunpack.c.l.s4 1983009808
        %v4192 = vunpack.c.0.s8 %v4191
        %v4193 = vlaneseq
        %v4194 = vshrl.u32 %v4193, 7
        %v4195 = vsub.s32 %v4192, %v4194
        %v4196 = vrot.slane %v4182, %v4195
        %v4197 = vcombine.low %v4174, %v4189
        %v4198 = vcombine.high %v4174, %v4189
        %v4200 = vunpack.c.l.s4 1934713408
        %v4201 = vunpack.c.0.s8 %v4200
        %v4202 = vlaneseq
        %v4203 = vshrl.u32 %v4202, 7
        %v4204 = vsub.s32 %v4201, %v4203
        %v4205 = vrot.slane %v4197, %v4204
        %v4207 = vunpack.c.l.s4 1934713408
        %v4208 = vunpack.c.0.s8 %v4207
        %v4209 = vlaneseq
        %v4210 = vshrl.u32 %v4209, 7
        %v4211 = vsub.s32 %v4208, %v4210
        %v4212 = vrot.slane %v4198, %v4211
        %v4213 = vcombine.low %v4181, %v4196
        %v4214 = vcombine.high %v4181, %v4196
        %v4216 = vunpack.c.l.s4 1934713408
        %v4217 = vunpack.c.0.s8 %v4216
        %v4218 = vlaneseq
        %v4219 = vshrl.u32 %v4218, 7
        %v4220 = vsub.s32 %v4217, %v4219
        %v4221 = vrot.slane %v4213, %v4220
        %v4223 = vunpack.c.l.s4 1934713408
        %v4224 = vunpack.c.0.s8 %v4223
        %v4225 = vlaneseq
        %v4226 = vshrl.u32 %v4225, 7
        %v4227 = vsub.s32 %v4224, %v4226
        %v4228 = vrot.slane %v4214, %v4227
        %v4229 = vcombine.high %v4205, 0
        %v4230 = vcombine.high %v4212, 0
        %v4231 = vcombine.high %v4221, 0
        %v4232 = vcombine.high %v4228, 0
        %v4233 = vcombine.high %v4141, %v3702
        %v4235 = vunpack.c.l.s4 1983009808
        %v4236 = vunpack.c.0.s8 %v4235
        %v4237 = vlaneseq
        %v4238 = vshrl.u32 %v4237, 7
        %v4239 = vsub.s32 %v4236, %v4238
        %v4240 = vrot.slane %v4141, %v4239
        %v4242 = vunpack.c.l.s4 1983009808
        %v4243 = vunpack.c.0.s8 %v4242
        %v4244 = vlaneseq
        %v4245 = vshrl.u32 %v4244, 7
        %v4246 = vsub.s32 %v4243, %v4245
        %v4247 = vrot.slane %v4233, %v4246
        %v4248 = vcombine.high %v4149, %v3702
        %v4250 = vunpack.c.l.s4 1983009808
        %v4251 = vunpack.c.0.s8 %v4250
        %v4252 = vlaneseq
        %v4253 = vshrl.u32 %v4252, 7
        %v4254 = vsub.s32 %v4251, %v4253
        %v4255 = vrot.slane %v4149, %v4254
        %v4257 = vunpack.c.l.s4 1983009808
        %v4258 = vunpack.c.0.s8 %v4257
        %v4259 = vlaneseq
        %v4260 = vshrl.u32 %v4259, 7
        %v4261 = vsub.s32 %v4258, %v4260
        %v4262 = vrot.slane %v4248, %v4261
        %v4263 = vcombine.low %v4240, %v4255
        %v4264 = vcombine.high %v4240, %v4255
        %v4266 = vunpack.c.l.s4 1934713408
        %v4267 = vunpack.c.0.s8 %v4266
        %v4268 = vlaneseq
        %v4269 = vshrl.u32 %v4268, 7
        %v4270 = vsub.s32 %v4267, %v4269
        %v4271 = vrot.slane %v4263, %v4270
        %v4273 = vunpack.c.l.s4 1934713408
        %v4274 = vunpack.c.0.s8 %v4273
        %v4275 = vlaneseq
        %v4276 = vshrl.u32 %v4275, 7
        %v4277 = vsub.s32 %v4274, %v4276
        %v4278 = vrot.slane %v4264, %v4277
        %v4279 = vcombine.low %v4247, %v4262
        %v4280 = vcombine.high %v4247, %v4262
        %v4282 = vunpack.c.l.s4 1934713408
        %v4283 = vunpack.c.0.s8 %v4282
        %v4284 = vlaneseq
        %v4285 = vshrl.u32 %v4284, 7
        %v4286 = vsub.s32 %v4283, %v4285
        %v4287 = vrot.slane %v4279, %v4286
        %v4289 = vunpack.c.l.s4 1934713408
        %v4290 = vunpack.c.0.s8 %v4289
        %v4291 = vlaneseq
        %v4292 = vshrl.u32 %v4291, 7
        %v4293 = vsub.s32 %v4290, %v4292
        %v4294 = vrot.slane %v4280, %v4293
        %v4295 = vcombine.high %v4271, 0
        %v4296 = vcombine.high %v4278, 0
        %v4297 = vcombine.high %v4287, 0
        %v4298 = vcombine.high %v4294, 0
        %v4299 = vcombine.high %v4153, %v3699
        %v4301 = vunpack.c.l.s4 1983009808
        %v4302 = vunpack.c.0.s8 %v4301
        %v4303 = vlaneseq
        %v4304 = vshrl.u32 %v4303, 7
        %v4305 = vsub.s32 %v4302, %v4304
        %v4306 = vrot.slane %v4153, %v4305
        %v4308 = vunpack.c.l.s4 1983009808
        %v4309 = vunpack.c.0.s8 %v4308
        %v4310 = vlaneseq
        %v4311 = vshrl.u32 %v4310, 7
        %v4312 = vsub.s32 %v4309, %v4311
        %v4313 = vrot.slane %v4299, %v4312
        %v4314 = vcombine.high %v4161, %v3699
        %v4316 = vunpack.c.l.s4 1983009808
        %v4317 = vunpack.c.0.s8 %v4316
        %v4318 = vlaneseq
        %v4319 = vshrl.u32 %v4318, 7
        %v4320 = vsub.s32 %v4317, %v4319
        %v4321 = vrot.slane %v4161, %v4320
        %v4323 = vunpack.c.l.s4 1983009808
        %v4324 = vunpack.c.0.s8 %v4323
        %v4325 = vlaneseq
        %v4326 = vshrl.u32 %v4325, 7
        %v4327 = vsub.s32 %v4324, %v4326
        %v4328 = vrot.slane %v4314, %v4327
        %v4329 = vcombine.low %v4306, %v4321
        %v4330 = vcombine.high %v4306, %v4321
        %v4332 = vunpack.c.l.s4 1934713408
        %v4333 = vunpack.c.0.s8 %v4332
        %v4334 = vlaneseq
        %v4335 = vshrl.u32 %v4334, 7
        %v4336 = vsub.s32 %v4333, %v4335
        %v4337 = vrot.slane %v4329, %v4336
        %v4339 = vunpack.c.l.s4 1934713408
        %v4340 = vunpack.c.0.s8 %v4339
        %v4341 = vlaneseq
        %v4342 = vshrl.u32 %v4341, 7
        %v4343 = vsub.s32 %v4340, %v4342
        %v4344 = vrot.slane %v4330, %v4343
        %v4345 = vcombine.low %v4313, %v4328
        %v4346 = vcombine.high %v4313, %v4328
        %v4348 = vunpack.c.l.s4 1934713408
        %v4349 = vunpack.c.0.s8 %v4348
        %v4350 = vlaneseq
        %v4351 = vshrl.u32 %v4350, 7
        %v4352 = vsub.s32 %v4349, %v4351
        %v4353 = vrot.slane %v4345, %v4352
        %v4355 = vunpack.c.l.s4 1934713408
        %v4356 = vunpack.c.0.s8 %v4355
        %v4357 = vlaneseq
        %v4358 = vshrl.u32 %v4357, 7
        %v4359 = vsub.s32 %v4356, %v4358
        %v4360 = vrot.slane %v4346, %v4359
        %v4361 = vcombine.high %v4337, 0
        %v4362 = vcombine.high %v4344, 0
        %v4363 = vcombine.high %v4353, 0
        %v4364 = vcombine.high %v4360, 0
        %v4365 = vcombine.high %v4157, %v3702
        %v4367 = vunpack.c.l.s4 1983009808
        %v4368 = vunpack.c.0.s8 %v4367
        %v4369 = vlaneseq
        %v4370 = vshrl.u32 %v4369, 7
        %v4371 = vsub.s32 %v4368, %v4370
        %v4372 = vrot.slane %v4157, %v4371
        %v4374 = vunpack.c.l.s4 1983009808
        %v4375 = vunpack.c.0.s8 %v4374
        %v4376 = vlaneseq
        %v4377 = vshrl.u32 %v4376, 7
        %v4378 = vsub.s32 %v4375, %v4377
        %v4379 = vrot.slane %v4365, %v4378
        %v4380 = vcombine.high %v4165, %v3702
        %v4382 = vunpack.c.l.s4 1983009808
        %v4383 = vunpack.c.0.s8 %v4382
        %v4384 = vlaneseq
        %v4385 = vshrl.u32 %v4384, 7
        %v4386 = vsub.s32 %v4383, %v4385
        %v4387 = vrot.slane %v4165, %v4386
        %v4389 = vunpack.c.l.s4 1983009808
        %v4390 = vunpack.c.0.s8 %v4389
        %v4391 = vlaneseq
        %v4392 = vshrl.u32 %v4391, 7
        %v4393 = vsub.s32 %v4390, %v4392
        %v4394 = vrot.slane %v4380, %v4393
        %v4395 = vcombine.low %v4372, %v4387
        %v4396 = vcombine.high %v4372, %v4387
        %v4398 = vunpack.c.l.s4 1934713408
        %v4399 = vunpack.c.0.s8 %v4398
        %v4400 = vlaneseq
        %v4401 = vshrl.u32 %v4400, 7
        %v4402 = vsub.s32 %v4399, %v4401
        %v4403 = vrot.slane %v4395, %v4402
        %v4405 = vunpack.c.l.s4 1934713408
        %v4406 = vunpack.c.0.s8 %v4405
        %v4407 = vlaneseq
        %v4408 = vshrl.u32 %v4407, 7
        %v4409 = vsub.s32 %v4406, %v4408
        %v4410 = vrot.slane %v4396, %v4409
        %v4411 = vcombine.low %v4379, %v4394
        %v4412 = vcombine.high %v4379, %v4394
        %v4414 = vunpack.c.l.s4 1934713408
        %v4415 = vunpack.c.0.s8 %v4414
        %v4416 = vlaneseq
        %v4417 = vshrl.u32 %v4416, 7
        %v4418 = vsub.s32 %v4415, %v4417
        %v4419 = vrot.slane %v4411, %v4418
        %v4421 = vunpack.c.l.s4 1934713408
        %v4422 = vunpack.c.0.s8 %v4421
        %v4423 = vlaneseq
        %v4424 = vshrl.u32 %v4423, 7
        %v4425 = vsub.s32 %v4422, %v4424
        %v4426 = vrot.slane %v4412, %v4425
        %v4427 = vcombine.high %v4403, 0
        %v4428 = vcombine.high %v4410, 0
        %v4429 = vcombine.high %v4419, 0
        %v4430 = vcombine.high %v4426, 0
        %4432 = vrot.lane.b32.xlu0 %v4271, 32
        %v4433 = vpop.permute.xlu0 %4432
        %4435 = vrot.lane.b32.xlu0 %v4229, 64
        %v4436 = vpop.permute.xlu0 %4435
        %4438 = vrot.lane.b32.xlu0 %v4295, 96
        %v4439 = vpop.permute.xlu0 %4438
        %4441 = vrot.lane.b32.xlu0 %v4278, 32
        %v4442 = vpop.permute.xlu0 %4441
        %4444 = vrot.lane.b32.xlu0 %v4230, 64
        %v4445 = vpop.permute.xlu0 %4444
        %4447 = vrot.lane.b32.xlu0 %v4296, 96
        %v4448 = vpop.permute.xlu0 %4447
        %4450 = vrot.lane.b32.xlu0 %v4287, 32
        %v4451 = vpop.permute.xlu0 %4450
        %4453 = vrot.lane.b32.xlu0 %v4231, 64
        %v4454 = vpop.permute.xlu0 %4453
        %4456 = vrot.lane.b32.xlu0 %v4297, 96
        %v4457 = vpop.permute.xlu0 %4456
        %4459 = vrot.lane.b32.xlu0 %v4294, 32
        %v4460 = vpop.permute.xlu0 %4459
        %4462 = vrot.lane.b32.xlu0 %v4232, 64
        %v4463 = vpop.permute.xlu0 %4462
        %4465 = vrot.lane.b32.xlu0 %v4298, 96
        %v4466 = vpop.permute.xlu0 %4465
        %4468 = vrot.lane.b32.xlu0 %v4403, 32
        %v4469 = vpop.permute.xlu0 %4468
        %4471 = vrot.lane.b32.xlu0 %v4361, 64
        %v4472 = vpop.permute.xlu0 %4471
        %4474 = vrot.lane.b32.xlu0 %v4427, 96
        %v4475 = vpop.permute.xlu0 %4474
        %4477 = vrot.lane.b32.xlu0 %v4410, 32
        %v4478 = vpop.permute.xlu0 %4477
        %4480 = vrot.lane.b32.xlu0 %v4362, 64
        %v4481 = vpop.permute.xlu0 %4480
        %4483 = vrot.lane.b32.xlu0 %v4428, 96
        %v4484 = vpop.permute.xlu0 %4483
        %4486 = vrot.lane.b32.xlu0 %v4419, 32
        %v4487 = vpop.permute.xlu0 %4486
        %4489 = vrot.lane.b32.xlu0 %v4363, 64
        %v4490 = vpop.permute.xlu0 %4489
        %4492 = vrot.lane.b32.xlu0 %v4429, 96
        %v4493 = vpop.permute.xlu0 %4492
        %4495 = vrot.lane.b32.xlu0 %v4426, 32
        %v4496 = vpop.permute.xlu0 %4495
        %4498 = vrot.lane.b32.xlu0 %v4364, 64
        %v4499 = vpop.permute.xlu0 %4498
        %4501 = vrot.lane.b32.xlu0 %v4430, 96
        %v4502 = vpop.permute.xlu0 %4501
        %v4505 = vsel %vm4052, %v4205, %v4433
        %v4507 = vsel %vm4056, %v4505, %v4436
        %v4509 = vsel %vm4059, %v4507, %v4439
        %v4512 = vsel %vm4052, %v4212, %v4442
        %v4514 = vsel %vm4056, %v4512, %v4445
        %v4516 = vsel %vm4059, %v4514, %v4448
        %v4519 = vsel %vm4052, %v4221, %v4451
        %v4521 = vsel %vm4056, %v4519, %v4454
        %v4523 = vsel %vm4059, %v4521, %v4457
        %v4526 = vsel %vm4052, %v4228, %v4460
        %v4528 = vsel %vm4056, %v4526, %v4463
        %v4530 = vsel %vm4059, %v4528, %v4466
        %v4533 = vsel %vm4052, %v4337, %v4469
        %v4535 = vsel %vm4056, %v4533, %v4472
        %v4537 = vsel %vm4059, %v4535, %v4475
        %v4540 = vsel %vm4052, %v4344, %v4478
        %v4542 = vsel %vm4056, %v4540, %v4481
        %v4544 = vsel %vm4059, %v4542, %v4484
        %v4547 = vsel %vm4052, %v4353, %v4487
        %v4549 = vsel %vm4056, %v4547, %v4490
        %v4551 = vsel %vm4059, %v4549, %v4493
        %v4554 = vsel %vm4052, %v4360, %v4496
        %v4556 = vsel %vm4056, %v4554, %v4499
        %v4558 = vsel %vm4059, %v4556, %v4502
        %4559 = vrot.lane.b32.xlu0 %v3663, 126
        %v4560 = vpop.permute.xlu0 %4559
        %4561 = vrot.lane.b32.xlu0 %v3665, 126
        %v4562 = vpop.permute.xlu0 %4561
        %4563 = vrot.lane.b32.xlu0 %v3669, 126
        %v4564 = vpop.permute.xlu0 %4563
        %4565 = vrot.lane.b32.xlu0 %v3671, 126
        %v4566 = vpop.permute.xlu0 %4565
        %4567 = vrot.lane.b32.xlu0 %v3675, 126
        %v4568 = vpop.permute.xlu0 %4567
        %4569 = vrot.lane.b32.xlu0 %v3677, 126
        %v4570 = vpop.permute.xlu0 %4569
        %4571 = vrot.lane.b32.xlu0 %v3681, 126
        %v4572 = vpop.permute.xlu0 %4571
        %4573 = vrot.lane.b32.xlu0 %v3683, 126
        %v4574 = vpop.permute.xlu0 %4573
        %v4577 = vpack.i.b16 %v4564, %v4560
        %v4579 = vshrl.u32 %v4560, 16
        %v4580 = vshrl.u32 %v4564, 16
        %v4581 = vpack.i.b16 %v4580, %v4579
        %v4585 = vpack.i.b16 %v4572, %v4568
        %v4587 = vshrl.u32 %v4568, 16
        %v4588 = vshrl.u32 %v4572, 16
        %v4589 = vpack.i.b16 %v4588, %v4587
        %v4593 = vpack.i.b16 %v4566, %v4562
        %v4595 = vshrl.u32 %v4562, 16
        %v4596 = vshrl.u32 %v4566, 16
        %v4597 = vpack.i.b16 %v4596, %v4595
        %v4601 = vpack.i.b16 %v4574, %v4570
        %v4603 = vshrl.u32 %v4570, 16
        %v4604 = vshrl.u32 %v4574, 16
        %v4605 = vpack.i.b16 %v4604, %v4603
        %v4607 = vcombine.high %v4577, %v3699
        %v4609 = vunpack.c.l.s4 1983009808
        %v4610 = vunpack.c.0.s8 %v4609
        %v4611 = vlaneseq
        %v4612 = vshrl.u32 %v4611, 7
        %v4613 = vsub.s32 %v4610, %v4612
        %v4614 = vrot.slane %v4577, %v4613
        %v4616 = vunpack.c.l.s4 1983009808
        %v4617 = vunpack.c.0.s8 %v4616
        %v4618 = vlaneseq
        %v4619 = vshrl.u32 %v4618, 7
        %v4620 = vsub.s32 %v4617, %v4619
        %v4621 = vrot.slane %v4607, %v4620
        %v4622 = vcombine.high %v4585, %v3699
        %v4624 = vunpack.c.l.s4 1983009808
        %v4625 = vunpack.c.0.s8 %v4624
        %v4626 = vlaneseq
        %v4627 = vshrl.u32 %v4626, 7
        %v4628 = vsub.s32 %v4625, %v4627
        %v4629 = vrot.slane %v4585, %v4628
        %v4631 = vunpack.c.l.s4 1983009808
        %v4632 = vunpack.c.0.s8 %v4631
        %v4633 = vlaneseq
        %v4634 = vshrl.u32 %v4633, 7
        %v4635 = vsub.s32 %v4632, %v4634
        %v4636 = vrot.slane %v4622, %v4635
        %v4637 = vcombine.low %v4614, %v4629
        %v4638 = vcombine.high %v4614, %v4629
        %v4640 = vunpack.c.l.s4 1934713408
        %v4641 = vunpack.c.0.s8 %v4640
        %v4642 = vlaneseq
        %v4643 = vshrl.u32 %v4642, 7
        %v4644 = vsub.s32 %v4641, %v4643
        %v4645 = vrot.slane %v4637, %v4644
        %v4647 = vunpack.c.l.s4 1934713408
        %v4648 = vunpack.c.0.s8 %v4647
        %v4649 = vlaneseq
        %v4650 = vshrl.u32 %v4649, 7
        %v4651 = vsub.s32 %v4648, %v4650
        %v4652 = vrot.slane %v4638, %v4651
        %v4653 = vcombine.low %v4621, %v4636
        %v4654 = vcombine.high %v4621, %v4636
        %v4656 = vunpack.c.l.s4 1934713408
        %v4657 = vunpack.c.0.s8 %v4656
        %v4658 = vlaneseq
        %v4659 = vshrl.u32 %v4658, 7
        %v4660 = vsub.s32 %v4657, %v4659
        %v4661 = vrot.slane %v4653, %v4660
        %v4663 = vunpack.c.l.s4 1934713408
        %v4664 = vunpack.c.0.s8 %v4663
        %v4665 = vlaneseq
        %v4666 = vshrl.u32 %v4665, 7
        %v4667 = vsub.s32 %v4664, %v4666
        %v4668 = vrot.slane %v4654, %v4667
        %v4669 = vcombine.high %v4645, 0
        %v4670 = vcombine.high %v4652, 0
        %v4671 = vcombine.high %v4661, 0
        %v4672 = vcombine.high %v4668, 0
        %v4673 = vcombine.high %v4581, %v3702
        %v4675 = vunpack.c.l.s4 1983009808
        %v4676 = vunpack.c.0.s8 %v4675
        %v4677 = vlaneseq
        %v4678 = vshrl.u32 %v4677, 7
        %v4679 = vsub.s32 %v4676, %v4678
        %v4680 = vrot.slane %v4581, %v4679
        %v4682 = vunpack.c.l.s4 1983009808
        %v4683 = vunpack.c.0.s8 %v4682
        %v4684 = vlaneseq
        %v4685 = vshrl.u32 %v4684, 7
        %v4686 = vsub.s32 %v4683, %v4685
        %v4687 = vrot.slane %v4673, %v4686
        %v4688 = vcombine.high %v4589, %v3702
        %v4690 = vunpack.c.l.s4 1983009808
        %v4691 = vunpack.c.0.s8 %v4690
        %v4692 = vlaneseq
        %v4693 = vshrl.u32 %v4692, 7
        %v4694 = vsub.s32 %v4691, %v4693
        %v4695 = vrot.slane %v4589, %v4694
        %v4697 = vunpack.c.l.s4 1983009808
        %v4698 = vunpack.c.0.s8 %v4697
        %v4699 = vlaneseq
        %v4700 = vshrl.u32 %v4699, 7
        %v4701 = vsub.s32 %v4698, %v4700
        %v4702 = vrot.slane %v4688, %v4701
        %v4703 = vcombine.low %v4680, %v4695
        %v4704 = vcombine.high %v4680, %v4695
        %v4706 = vunpack.c.l.s4 1934713408
        %v4707 = vunpack.c.0.s8 %v4706
        %v4708 = vlaneseq
        %v4709 = vshrl.u32 %v4708, 7
        %v4710 = vsub.s32 %v4707, %v4709
        %v4711 = vrot.slane %v4703, %v4710
        %v4713 = vunpack.c.l.s4 1934713408
        %v4714 = vunpack.c.0.s8 %v4713
        %v4715 = vlaneseq
        %v4716 = vshrl.u32 %v4715, 7
        %v4717 = vsub.s32 %v4714, %v4716
        %v4718 = vrot.slane %v4704, %v4717
        %v4719 = vcombine.low %v4687, %v4702
        %v4720 = vcombine.high %v4687, %v4702
        %v4722 = vunpack.c.l.s4 1934713408
        %v4723 = vunpack.c.0.s8 %v4722
        %v4724 = vlaneseq
        %v4725 = vshrl.u32 %v4724, 7
        %v4726 = vsub.s32 %v4723, %v4725
        %v4727 = vrot.slane %v4719, %v4726
        %v4729 = vunpack.c.l.s4 1934713408
        %v4730 = vunpack.c.0.s8 %v4729
        %v4731 = vlaneseq
        %v4732 = vshrl.u32 %v4731, 7
        %v4733 = vsub.s32 %v4730, %v4732
        %v4734 = vrot.slane %v4720, %v4733
        %v4735 = vcombine.high %v4711, 0
        %v4736 = vcombine.high %v4718, 0
        %v4737 = vcombine.high %v4727, 0
        %v4738 = vcombine.high %v4734, 0
        %v4739 = vcombine.high %v4593, %v3699
        %v4741 = vunpack.c.l.s4 1983009808
        %v4742 = vunpack.c.0.s8 %v4741
        %v4743 = vlaneseq
        %v4744 = vshrl.u32 %v4743, 7
        %v4745 = vsub.s32 %v4742, %v4744
        %v4746 = vrot.slane %v4593, %v4745
        %v4748 = vunpack.c.l.s4 1983009808
        %v4749 = vunpack.c.0.s8 %v4748
        %v4750 = vlaneseq
        %v4751 = vshrl.u32 %v4750, 7
        %v4752 = vsub.s32 %v4749, %v4751
        %v4753 = vrot.slane %v4739, %v4752
        %v4754 = vcombine.high %v4601, %v3699
        %v4756 = vunpack.c.l.s4 1983009808
        %v4757 = vunpack.c.0.s8 %v4756
        %v4758 = vlaneseq
        %v4759 = vshrl.u32 %v4758, 7
        %v4760 = vsub.s32 %v4757, %v4759
        %v4761 = vrot.slane %v4601, %v4760
        %v4763 = vunpack.c.l.s4 1983009808
        %v4764 = vunpack.c.0.s8 %v4763
        %v4765 = vlaneseq
        %v4766 = vshrl.u32 %v4765, 7
        %v4767 = vsub.s32 %v4764, %v4766
        %v4768 = vrot.slane %v4754, %v4767
        %v4769 = vcombine.low %v4746, %v4761
        %v4770 = vcombine.high %v4746, %v4761
        %v4772 = vunpack.c.l.s4 1934713408
        %v4773 = vunpack.c.0.s8 %v4772
        %v4774 = vlaneseq
        %v4775 = vshrl.u32 %v4774, 7
        %v4776 = vsub.s32 %v4773, %v4775
        %v4777 = vrot.slane %v4769, %v4776
        %v4779 = vunpack.c.l.s4 1934713408
        %v4780 = vunpack.c.0.s8 %v4779
        %v4781 = vlaneseq
        %v4782 = vshrl.u32 %v4781, 7
        %v4783 = vsub.s32 %v4780, %v4782
        %v4784 = vrot.slane %v4770, %v4783
        %v4785 = vcombine.low %v4753, %v4768
        %v4786 = vcombine.high %v4753, %v4768
        %v4788 = vunpack.c.l.s4 1934713408
        %v4789 = vunpack.c.0.s8 %v4788
        %v4790 = vlaneseq
        %v4791 = vshrl.u32 %v4790, 7
        %v4792 = vsub.s32 %v4789, %v4791
        %v4793 = vrot.slane %v4785, %v4792
        %v4795 = vunpack.c.l.s4 1934713408
        %v4796 = vunpack.c.0.s8 %v4795
        %v4797 = vlaneseq
        %v4798 = vshrl.u32 %v4797, 7
        %v4799 = vsub.s32 %v4796, %v4798
        %v4800 = vrot.slane %v4786, %v4799
        %v4801 = vcombine.high %v4777, 0
        %v4802 = vcombine.high %v4784, 0
        %v4803 = vcombine.high %v4793, 0
        %v4804 = vcombine.high %v4800, 0
        %v4805 = vcombine.high %v4597, %v3702
        %v4807 = vunpack.c.l.s4 1983009808
        %v4808 = vunpack.c.0.s8 %v4807
        %v4809 = vlaneseq
        %v4810 = vshrl.u32 %v4809, 7
        %v4811 = vsub.s32 %v4808, %v4810
        %v4812 = vrot.slane %v4597, %v4811
        %v4814 = vunpack.c.l.s4 1983009808
        %v4815 = vunpack.c.0.s8 %v4814
        %v4816 = vlaneseq
        %v4817 = vshrl.u32 %v4816, 7
        %v4818 = vsub.s32 %v4815, %v4817
        %v4819 = vrot.slane %v4805, %v4818
        %v4820 = vcombine.high %v4605, %v3702
        %v4822 = vunpack.c.l.s4 1983009808
        %v4823 = vunpack.c.0.s8 %v4822
        %v4824 = vlaneseq
        %v4825 = vshrl.u32 %v4824, 7
        %v4826 = vsub.s32 %v4823, %v4825
        %v4827 = vrot.slane %v4605, %v4826
        %v4829 = vunpack.c.l.s4 1983009808
        %v4830 = vunpack.c.0.s8 %v4829
        %v4831 = vlaneseq
        %v4832 = vshrl.u32 %v4831, 7
        %v4833 = vsub.s32 %v4830, %v4832
        %v4834 = vrot.slane %v4820, %v4833
        %v4835 = vcombine.low %v4812, %v4827
        %v4836 = vcombine.high %v4812, %v4827
        %v4838 = vunpack.c.l.s4 1934713408
        %v4839 = vunpack.c.0.s8 %v4838
        %v4840 = vlaneseq
        %v4841 = vshrl.u32 %v4840, 7
        %v4842 = vsub.s32 %v4839, %v4841
        %v4843 = vrot.slane %v4835, %v4842
        %v4845 = vunpack.c.l.s4 1934713408
        %v4846 = vunpack.c.0.s8 %v4845
        %v4847 = vlaneseq
        %v4848 = vshrl.u32 %v4847, 7
        %v4849 = vsub.s32 %v4846, %v4848
        %v4850 = vrot.slane %v4836, %v4849
        %v4851 = vcombine.low %v4819, %v4834
        %v4852 = vcombine.high %v4819, %v4834
        %v4854 = vunpack.c.l.s4 1934713408
        %v4855 = vunpack.c.0.s8 %v4854
        %v4856 = vlaneseq
        %v4857 = vshrl.u32 %v4856, 7
        %v4858 = vsub.s32 %v4855, %v4857
        %v4859 = vrot.slane %v4851, %v4858
        %v4861 = vunpack.c.l.s4 1934713408
        %v4862 = vunpack.c.0.s8 %v4861
        %v4863 = vlaneseq
        %v4864 = vshrl.u32 %v4863, 7
        %v4865 = vsub.s32 %v4862, %v4864
        %v4866 = vrot.slane %v4852, %v4865
        %v4867 = vcombine.high %v4843, 0
        %v4868 = vcombine.high %v4850, 0
        %v4869 = vcombine.high %v4859, 0
        %v4870 = vcombine.high %v4866, 0
        %4872 = vrot.lane.b32.xlu0 %v4711, 32
        %v4873 = vpop.permute.xlu0 %4872
        %4875 = vrot.lane.b32.xlu0 %v4669, 64
        %v4876 = vpop.permute.xlu0 %4875
        %4878 = vrot.lane.b32.xlu0 %v4735, 96
        %v4879 = vpop.permute.xlu0 %4878
        %4881 = vrot.lane.b32.xlu0 %v4718, 32
        %v4882 = vpop.permute.xlu0 %4881
        %4884 = vrot.lane.b32.xlu0 %v4670, 64
        %v4885 = vpop.permute.xlu0 %4884
        %4887 = vrot.lane.b32.xlu0 %v4736, 96
        %v4888 = vpop.permute.xlu0 %4887
        %4890 = vrot.lane.b32.xlu0 %v4727, 32
        %v4891 = vpop.permute.xlu0 %4890
        %4893 = vrot.lane.b32.xlu0 %v4671, 64
        %v4894 = vpop.permute.xlu0 %4893
        %4896 = vrot.lane.b32.xlu0 %v4737, 96
        %v4897 = vpop.permute.xlu0 %4896
        %4899 = vrot.lane.b32.xlu0 %v4734, 32
        %v4900 = vpop.permute.xlu0 %4899
        %4902 = vrot.lane.b32.xlu0 %v4672, 64
        %v4903 = vpop.permute.xlu0 %4902
        %4905 = vrot.lane.b32.xlu0 %v4738, 96
        %v4906 = vpop.permute.xlu0 %4905
        %4908 = vrot.lane.b32.xlu0 %v4843, 32
        %v4909 = vpop.permute.xlu0 %4908
        %4911 = vrot.lane.b32.xlu0 %v4801, 64
        %v4912 = vpop.permute.xlu0 %4911
        %4914 = vrot.lane.b32.xlu0 %v4867, 96
        %v4915 = vpop.permute.xlu0 %4914
        %4917 = vrot.lane.b32.xlu0 %v4850, 32
        %v4918 = vpop.permute.xlu0 %4917
        %4920 = vrot.lane.b32.xlu0 %v4802, 64
        %v4921 = vpop.permute.xlu0 %4920
        %4923 = vrot.lane.b32.xlu0 %v4868, 96
        %v4924 = vpop.permute.xlu0 %4923
        %4926 = vrot.lane.b32.xlu0 %v4859, 32
        %v4927 = vpop.permute.xlu0 %4926
        %4929 = vrot.lane.b32.xlu0 %v4803, 64
        %v4930 = vpop.permute.xlu0 %4929
        %4932 = vrot.lane.b32.xlu0 %v4869, 96
        %v4933 = vpop.permute.xlu0 %4932
        %4935 = vrot.lane.b32.xlu0 %v4866, 32
        %v4936 = vpop.permute.xlu0 %4935
        %4938 = vrot.lane.b32.xlu0 %v4804, 64
        %v4939 = vpop.permute.xlu0 %4938
        %4941 = vrot.lane.b32.xlu0 %v4870, 96
        %v4942 = vpop.permute.xlu0 %4941
        %v4945 = vsel %vm4052, %v4645, %v4873
        %v4947 = vsel %vm4056, %v4945, %v4876
        %v4949 = vsel %vm4059, %v4947, %v4879
        %v4952 = vsel %vm4052, %v4652, %v4882
        %v4954 = vsel %vm4056, %v4952, %v4885
        %v4956 = vsel %vm4059, %v4954, %v4888
        %v4959 = vsel %vm4052, %v4661, %v4891
        %v4961 = vsel %vm4056, %v4959, %v4894
        %v4963 = vsel %vm4059, %v4961, %v4897
        %v4966 = vsel %vm4052, %v4668, %v4900
        %v4968 = vsel %vm4056, %v4966, %v4903
        %v4970 = vsel %vm4059, %v4968, %v4906
        %v4973 = vsel %vm4052, %v4777, %v4909
        %v4975 = vsel %vm4056, %v4973, %v4912
        %v4977 = vsel %vm4059, %v4975, %v4915
        %v4980 = vsel %vm4052, %v4784, %v4918
        %v4982 = vsel %vm4056, %v4980, %v4921
        %v4984 = vsel %vm4059, %v4982, %v4924
        %v4987 = vsel %vm4052, %v4793, %v4927
        %v4989 = vsel %vm4056, %v4987, %v4930
        %v4991 = vsel %vm4059, %v4989, %v4933
        %v4994 = vsel %vm4052, %v4800, %v4936
        %v4996 = vsel %vm4056, %v4994, %v4939
        %v4998 = vsel %vm4059, %v4996, %v4942
        %vm4999 = vsmask.f32 7424
        %v5001 = vshll.u32 %v3663, 16
        %v5003 = vrot.slane %v5001, 1
        %v5004 = vor.u32 %v3688, %v5003
        %v5005 = vshll.u32 %v3665, 16
        %v5007 = vrot.slane %v5005, 1
        %v5008 = vsel %vm4999, %v5004, %v5007
        %v5010 = vor.u32 %v3706, %v5007
        %v5011 = vshll.u32 %v3667, 16
        %v5013 = vrot.slane %v5011, 1
        %v5014 = vsel %vm4999, %v5010, %v5013
        %v5016 = vshll.u32 %v3669, 16
        %v5018 = vrot.slane %v5016, 1
        %v5019 = vor.u32 %v3689, %v5018
        %v5020 = vshll.u32 %v3671, 16
        %v5022 = vrot.slane %v5020, 1
        %v5023 = vsel %vm4999, %v5019, %v5022
        %v5025 = vor.u32 %v3707, %v5022
        %v5026 = vshll.u32 %v3673, 16
        %v5028 = vrot.slane %v5026, 1
        %v5029 = vsel %vm4999, %v5025, %v5028
        %v5031 = vshll.u32 %v3675, 16
        %v5033 = vrot.slane %v5031, 1
        %v5034 = vor.u32 %v3694, %v5033
        %v5035 = vshll.u32 %v3677, 16
        %v5037 = vrot.slane %v5035, 1
        %v5038 = vsel %vm4999, %v5034, %v5037
        %v5040 = vor.u32 %v3712, %v5037
        %v5041 = vshll.u32 %v3679, 16
        %v5043 = vrot.slane %v5041, 1
        %v5044 = vsel %vm4999, %v5040, %v5043
        %v5046 = vshll.u32 %v3681, 16
        %v5048 = vrot.slane %v5046, 1
        %v5049 = vor.u32 %v3695, %v5048
        %v5050 = vshll.u32 %v3683, 16
        %v5052 = vrot.slane %v5050, 1
        %v5053 = vsel %vm4999, %v5049, %v5052
        %v5055 = vor.u32 %v3713, %v5052
        %v5056 = vshll.u32 %v3685, 16
        %v5058 = vrot.slane %v5056, 1
        %v5059 = vsel %vm4999, %v5055, %v5058
        %v5062 = vpack.i.b16 %v5023, %v5008
        %v5064 = vshrl.u32 %v5008, 16
        %v5065 = vshrl.u32 %v5023, 16
        %v5066 = vpack.i.b16 %v5065, %v5064
        %v5070 = vpack.i.b16 %v5053, %v5038
        %v5072 = vshrl.u32 %v5038, 16
        %v5073 = vshrl.u32 %v5053, 16
        %v5074 = vpack.i.b16 %v5073, %v5072
        %v5078 = vpack.i.b16 %v5029, %v5014
        %v5080 = vshrl.u32 %v5014, 16
        %v5081 = vshrl.u32 %v5029, 16
        %v5082 = vpack.i.b16 %v5081, %v5080
        %v5086 = vpack.i.b16 %v5059, %v5044
        %v5088 = vshrl.u32 %v5044, 16
        %v5089 = vshrl.u32 %v5059, 16
        %v5090 = vpack.i.b16 %v5089, %v5088
        %v5092 = vcombine.high %v5062, %v3699
        %v5094 = vunpack.c.l.s4 1983009808
        %v5095 = vunpack.c.0.s8 %v5094
        %v5096 = vlaneseq
        %v5097 = vshrl.u32 %v5096, 7
        %v5098 = vsub.s32 %v5095, %v5097
        %v5099 = vrot.slane %v5062, %v5098
        %v5101 = vunpack.c.l.s4 1983009808
        %v5102 = vunpack.c.0.s8 %v5101
        %v5103 = vlaneseq
        %v5104 = vshrl.u32 %v5103, 7
        %v5105 = vsub.s32 %v5102, %v5104
        %v5106 = vrot.slane %v5092, %v5105
        %v5107 = vcombine.high %v5070, %v3699
        %v5109 = vunpack.c.l.s4 1983009808
        %v5110 = vunpack.c.0.s8 %v5109
        %v5111 = vlaneseq
        %v5112 = vshrl.u32 %v5111, 7
        %v5113 = vsub.s32 %v5110, %v5112
        %v5114 = vrot.slane %v5070, %v5113
        %v5116 = vunpack.c.l.s4 1983009808
        %v5117 = vunpack.c.0.s8 %v5116
        %v5118 = vlaneseq
        %v5119 = vshrl.u32 %v5118, 7
        %v5120 = vsub.s32 %v5117, %v5119
        %v5121 = vrot.slane %v5107, %v5120
        %v5122 = vcombine.low %v5099, %v5114
        %v5123 = vcombine.high %v5099, %v5114
        %v5125 = vunpack.c.l.s4 1934713408
        %v5126 = vunpack.c.0.s8 %v5125
        %v5127 = vlaneseq
        %v5128 = vshrl.u32 %v5127, 7
        %v5129 = vsub.s32 %v5126, %v5128
        %v5130 = vrot.slane %v5122, %v5129
        %v5132 = vunpack.c.l.s4 1934713408
        %v5133 = vunpack.c.0.s8 %v5132
        %v5134 = vlaneseq
        %v5135 = vshrl.u32 %v5134, 7
        %v5136 = vsub.s32 %v5133, %v5135
        %v5137 = vrot.slane %v5123, %v5136
        %v5138 = vcombine.low %v5106, %v5121
        %v5139 = vcombine.high %v5106, %v5121
        %v5141 = vunpack.c.l.s4 1934713408
        %v5142 = vunpack.c.0.s8 %v5141
        %v5143 = vlaneseq
        %v5144 = vshrl.u32 %v5143, 7
        %v5145 = vsub.s32 %v5142, %v5144
        %v5146 = vrot.slane %v5138, %v5145
        %v5148 = vunpack.c.l.s4 1934713408
        %v5149 = vunpack.c.0.s8 %v5148
        %v5150 = vlaneseq
        %v5151 = vshrl.u32 %v5150, 7
        %v5152 = vsub.s32 %v5149, %v5151
        %v5153 = vrot.slane %v5139, %v5152
        %v5154 = vcombine.high %v5130, 0
        %v5155 = vcombine.high %v5137, 0
        %v5156 = vcombine.high %v5146, 0
        %v5157 = vcombine.high %v5153, 0
        %v5158 = vcombine.high %v5066, %v3702
        %v5160 = vunpack.c.l.s4 1983009808
        %v5161 = vunpack.c.0.s8 %v5160
        %v5162 = vlaneseq
        %v5163 = vshrl.u32 %v5162, 7
        %v5164 = vsub.s32 %v5161, %v5163
        %v5165 = vrot.slane %v5066, %v5164
        %v5167 = vunpack.c.l.s4 1983009808
        %v5168 = vunpack.c.0.s8 %v5167
        %v5169 = vlaneseq
        %v5170 = vshrl.u32 %v5169, 7
        %v5171 = vsub.s32 %v5168, %v5170
        %v5172 = vrot.slane %v5158, %v5171
        %v5173 = vcombine.high %v5074, %v3702
        %v5175 = vunpack.c.l.s4 1983009808
        %v5176 = vunpack.c.0.s8 %v5175
        %v5177 = vlaneseq
        %v5178 = vshrl.u32 %v5177, 7
        %v5179 = vsub.s32 %v5176, %v5178
        %v5180 = vrot.slane %v5074, %v5179
        %v5182 = vunpack.c.l.s4 1983009808
        %v5183 = vunpack.c.0.s8 %v5182
        %v5184 = vlaneseq
        %v5185 = vshrl.u32 %v5184, 7
        %v5186 = vsub.s32 %v5183, %v5185
        %v5187 = vrot.slane %v5173, %v5186
        %v5188 = vcombine.low %v5165, %v5180
        %v5189 = vcombine.high %v5165, %v5180
        %v5191 = vunpack.c.l.s4 1934713408
        %v5192 = vunpack.c.0.s8 %v5191
        %v5193 = vlaneseq
        %v5194 = vshrl.u32 %v5193, 7
        %v5195 = vsub.s32 %v5192, %v5194
        %v5196 = vrot.slane %v5188, %v5195
        %v5198 = vunpack.c.l.s4 1934713408
        %v5199 = vunpack.c.0.s8 %v5198
        %v5200 = vlaneseq
        %v5201 = vshrl.u32 %v5200, 7
        %v5202 = vsub.s32 %v5199, %v5201
        %v5203 = vrot.slane %v5189, %v5202
        %v5204 = vcombine.low %v5172, %v5187
        %v5205 = vcombine.high %v5172, %v5187
        %v5207 = vunpack.c.l.s4 1934713408
        %v5208 = vunpack.c.0.s8 %v5207
        %v5209 = vlaneseq
        %v5210 = vshrl.u32 %v5209, 7
        %v5211 = vsub.s32 %v5208, %v5210
        %v5212 = vrot.slane %v5204, %v5211
        %v5214 = vunpack.c.l.s4 1934713408
        %v5215 = vunpack.c.0.s8 %v5214
        %v5216 = vlaneseq
        %v5217 = vshrl.u32 %v5216, 7
        %v5218 = vsub.s32 %v5215, %v5217
        %v5219 = vrot.slane %v5205, %v5218
        %v5220 = vcombine.high %v5196, 0
        %v5221 = vcombine.high %v5203, 0
        %v5222 = vcombine.high %v5212, 0
        %v5223 = vcombine.high %v5219, 0
        %v5224 = vcombine.high %v5078, %v3699
        %v5226 = vunpack.c.l.s4 1983009808
        %v5227 = vunpack.c.0.s8 %v5226
        %v5228 = vlaneseq
        %v5229 = vshrl.u32 %v5228, 7
        %v5230 = vsub.s32 %v5227, %v5229
        %v5231 = vrot.slane %v5078, %v5230
        %v5233 = vunpack.c.l.s4 1983009808
        %v5234 = vunpack.c.0.s8 %v5233
        %v5235 = vlaneseq
        %v5236 = vshrl.u32 %v5235, 7
        %v5237 = vsub.s32 %v5234, %v5236
        %v5238 = vrot.slane %v5224, %v5237
        %v5239 = vcombine.high %v5086, %v3699
        %v5241 = vunpack.c.l.s4 1983009808
        %v5242 = vunpack.c.0.s8 %v5241
        %v5243 = vlaneseq
        %v5244 = vshrl.u32 %v5243, 7
        %v5245 = vsub.s32 %v5242, %v5244
        %v5246 = vrot.slane %v5086, %v5245
        %v5248 = vunpack.c.l.s4 1983009808
        %v5249 = vunpack.c.0.s8 %v5248
        %v5250 = vlaneseq
        %v5251 = vshrl.u32 %v5250, 7
        %v5252 = vsub.s32 %v5249, %v5251
        %v5253 = vrot.slane %v5239, %v5252
        %v5254 = vcombine.low %v5231, %v5246
        %v5255 = vcombine.high %v5231, %v5246
        %v5257 = vunpack.c.l.s4 1934713408
        %v5258 = vunpack.c.0.s8 %v5257
        %v5259 = vlaneseq
        %v5260 = vshrl.u32 %v5259, 7
        %v5261 = vsub.s32 %v5258, %v5260
        %v5262 = vrot.slane %v5254, %v5261
        %v5264 = vunpack.c.l.s4 1934713408
        %v5265 = vunpack.c.0.s8 %v5264
        %v5266 = vlaneseq
        %v5267 = vshrl.u32 %v5266, 7
        %v5268 = vsub.s32 %v5265, %v5267
        %v5269 = vrot.slane %v5255, %v5268
        %v5270 = vcombine.low %v5238, %v5253
        %v5271 = vcombine.high %v5238, %v5253
        %v5273 = vunpack.c.l.s4 1934713408
        %v5274 = vunpack.c.0.s8 %v5273
        %v5275 = vlaneseq
        %v5276 = vshrl.u32 %v5275, 7
        %v5277 = vsub.s32 %v5274, %v5276
        %v5278 = vrot.slane %v5270, %v5277
        %v5280 = vunpack.c.l.s4 1934713408
        %v5281 = vunpack.c.0.s8 %v5280
        %v5282 = vlaneseq
        %v5283 = vshrl.u32 %v5282, 7
        %v5284 = vsub.s32 %v5281, %v5283
        %v5285 = vrot.slane %v5271, %v5284
        %v5286 = vcombine.high %v5262, 0
        %v5287 = vcombine.high %v5269, 0
        %v5288 = vcombine.high %v5278, 0
        %v5289 = vcombine.high %v5285, 0
        %v5290 = vcombine.high %v5082, %v3702
        %v5292 = vunpack.c.l.s4 1983009808
        %v5293 = vunpack.c.0.s8 %v5292
        %v5294 = vlaneseq
        %v5295 = vshrl.u32 %v5294, 7
        %v5296 = vsub.s32 %v5293, %v5295
        %v5297 = vrot.slane %v5082, %v5296
        %v5299 = vunpack.c.l.s4 1983009808
        %v5300 = vunpack.c.0.s8 %v5299
        %v5301 = vlaneseq
        %v5302 = vshrl.u32 %v5301, 7
        %v5303 = vsub.s32 %v5300, %v5302
        %v5304 = vrot.slane %v5290, %v5303
        %v5305 = vcombine.high %v5090, %v3702
        %v5307 = vunpack.c.l.s4 1983009808
        %v5308 = vunpack.c.0.s8 %v5307
        %v5309 = vlaneseq
        %v5310 = vshrl.u32 %v5309, 7
        %v5311 = vsub.s32 %v5308, %v5310
        %v5312 = vrot.slane %v5090, %v5311
        %v5314 = vunpack.c.l.s4 1983009808
        %v5315 = vunpack.c.0.s8 %v5314
        %v5316 = vlaneseq
        %v5317 = vshrl.u32 %v5316, 7
        %v5318 = vsub.s32 %v5315, %v5317
        %v5319 = vrot.slane %v5305, %v5318
        %v5320 = vcombine.low %v5297, %v5312
        %v5321 = vcombine.high %v5297, %v5312
        %v5323 = vunpack.c.l.s4 1934713408
        %v5324 = vunpack.c.0.s8 %v5323
        %v5325 = vlaneseq
        %v5326 = vshrl.u32 %v5325, 7
        %v5327 = vsub.s32 %v5324, %v5326
        %v5328 = vrot.slane %v5320, %v5327
        %v5330 = vunpack.c.l.s4 1934713408
        %v5331 = vunpack.c.0.s8 %v5330
        %v5332 = vlaneseq
        %v5333 = vshrl.u32 %v5332, 7
        %v5334 = vsub.s32 %v5331, %v5333
        %v5335 = vrot.slane %v5321, %v5334
        %v5336 = vcombine.low %v5304, %v5319
        %v5337 = vcombine.high %v5304, %v5319
        %v5339 = vunpack.c.l.s4 1934713408
        %v5340 = vunpack.c.0.s8 %v5339
        %v5341 = vlaneseq
        %v5342 = vshrl.u32 %v5341, 7
        %v5343 = vsub.s32 %v5340, %v5342
        %v5344 = vrot.slane %v5336, %v5343
        %v5346 = vunpack.c.l.s4 1934713408
        %v5347 = vunpack.c.0.s8 %v5346
        %v5348 = vlaneseq
        %v5349 = vshrl.u32 %v5348, 7
        %v5350 = vsub.s32 %v5347, %v5349
        %v5351 = vrot.slane %v5337, %v5350
        %v5352 = vcombine.high %v5328, 0
        %v5353 = vcombine.high %v5335, 0
        %v5354 = vcombine.high %v5344, 0
        %v5355 = vcombine.high %v5351, 0
        %5357 = vrot.lane.b32.xlu0 %v5196, 32
        %v5358 = vpop.permute.xlu0 %5357
        %5360 = vrot.lane.b32.xlu0 %v5154, 64
        %v5361 = vpop.permute.xlu0 %5360
        %5363 = vrot.lane.b32.xlu0 %v5220, 96
        %v5364 = vpop.permute.xlu0 %5363
        %5366 = vrot.lane.b32.xlu0 %v5203, 32
        %v5367 = vpop.permute.xlu0 %5366
        %5369 = vrot.lane.b32.xlu0 %v5155, 64
        %v5370 = vpop.permute.xlu0 %5369
        %5372 = vrot.lane.b32.xlu0 %v5221, 96
        %v5373 = vpop.permute.xlu0 %5372
        %5375 = vrot.lane.b32.xlu0 %v5212, 32
        %v5376 = vpop.permute.xlu0 %5375
        %5378 = vrot.lane.b32.xlu0 %v5156, 64
        %v5379 = vpop.permute.xlu0 %5378
        %5381 = vrot.lane.b32.xlu0 %v5222, 96
        %v5382 = vpop.permute.xlu0 %5381
        %5384 = vrot.lane.b32.xlu0 %v5219, 32
        %v5385 = vpop.permute.xlu0 %5384
        %5387 = vrot.lane.b32.xlu0 %v5157, 64
        %v5388 = vpop.permute.xlu0 %5387
        %5390 = vrot.lane.b32.xlu0 %v5223, 96
        %v5391 = vpop.permute.xlu0 %5390
        %5393 = vrot.lane.b32.xlu0 %v5328, 32
        %v5394 = vpop.permute.xlu0 %5393
        %5396 = vrot.lane.b32.xlu0 %v5286, 64
        %v5397 = vpop.permute.xlu0 %5396
        %5399 = vrot.lane.b32.xlu0 %v5352, 96
        %v5400 = vpop.permute.xlu0 %5399
        %5402 = vrot.lane.b32.xlu0 %v5335, 32
        %v5403 = vpop.permute.xlu0 %5402
        %5405 = vrot.lane.b32.xlu0 %v5287, 64
        %v5406 = vpop.permute.xlu0 %5405
        %5408 = vrot.lane.b32.xlu0 %v5353, 96
        %v5409 = vpop.permute.xlu0 %5408
        %5411 = vrot.lane.b32.xlu0 %v5344, 32
        %v5412 = vpop.permute.xlu0 %5411
        %5414 = vrot.lane.b32.xlu0 %v5288, 64
        %v5415 = vpop.permute.xlu0 %5414
        %5417 = vrot.lane.b32.xlu0 %v5354, 96
        %v5418 = vpop.permute.xlu0 %5417
        %5420 = vrot.lane.b32.xlu0 %v5351, 32
        %v5421 = vpop.permute.xlu0 %5420
        %5423 = vrot.lane.b32.xlu0 %v5289, 64
        %v5424 = vpop.permute.xlu0 %5423
        %5426 = vrot.lane.b32.xlu0 %v5355, 96
        %v5427 = vpop.permute.xlu0 %5426
        %v5430 = vsel %vm4052, %v5130, %v5358
        %v5432 = vsel %vm4056, %v5430, %v5361
        %v5434 = vsel %vm4059, %v5432, %v5364
        %v5437 = vsel %vm4052, %v5137, %v5367
        %v5439 = vsel %vm4056, %v5437, %v5370
        %v5441 = vsel %vm4059, %v5439, %v5373
        %v5444 = vsel %vm4052, %v5146, %v5376
        %v5446 = vsel %vm4056, %v5444, %v5379
        %v5448 = vsel %vm4059, %v5446, %v5382
        %v5451 = vsel %vm4052, %v5153, %v5385
        %v5453 = vsel %vm4056, %v5451, %v5388
        %v5455 = vsel %vm4059, %v5453, %v5391
        %v5458 = vsel %vm4052, %v5262, %v5394
        %v5460 = vsel %vm4056, %v5458, %v5397
        %v5462 = vsel %vm4059, %v5460, %v5400
        %v5465 = vsel %vm4052, %v5269, %v5403
        %v5467 = vsel %vm4056, %v5465, %v5406
        %v5469 = vsel %vm4059, %v5467, %v5409
        %v5472 = vsel %vm4052, %v5278, %v5412
        %v5474 = vsel %vm4056, %v5472, %v5415
        %v5476 = vsel %vm4059, %v5474, %v5418
        %v5479 = vsel %vm4052, %v5285, %v5421
        %v5481 = vsel %vm4056, %v5479, %v5424
        %v5483 = vsel %vm4059, %v5481, %v5427
        %5484 = vrot.lane.b32.xlu0 %v5008, 127
        %v5485 = vpop.permute.xlu0 %5484
        %5486 = vrot.lane.b32.xlu0 %v5014, 127
        %v5487 = vpop.permute.xlu0 %5486
        %5488 = vrot.lane.b32.xlu0 %v5023, 127
        %v5489 = vpop.permute.xlu0 %5488
        %5490 = vrot.lane.b32.xlu0 %v5029, 127
        %v5491 = vpop.permute.xlu0 %5490
        %5492 = vrot.lane.b32.xlu0 %v5038, 127
        %v5493 = vpop.permute.xlu0 %5492
        %5494 = vrot.lane.b32.xlu0 %v5044, 127
        %v5495 = vpop.permute.xlu0 %5494
        %5496 = vrot.lane.b32.xlu0 %v5053, 127
        %v5497 = vpop.permute.xlu0 %5496
        %5498 = vrot.lane.b32.xlu0 %v5059, 127
        %v5499 = vpop.permute.xlu0 %5498
        %v5502 = vpack.i.b16 %v5489, %v5485
        %v5504 = vshrl.u32 %v5485, 16
        %v5505 = vshrl.u32 %v5489, 16
        %v5506 = vpack.i.b16 %v5505, %v5504
        %v5510 = vpack.i.b16 %v5497, %v5493
        %v5512 = vshrl.u32 %v5493, 16
        %v5513 = vshrl.u32 %v5497, 16
        %v5514 = vpack.i.b16 %v5513, %v5512
        %v5518 = vpack.i.b16 %v5491, %v5487
        %v5520 = vshrl.u32 %v5487, 16
        %v5521 = vshrl.u32 %v5491, 16
        %v5522 = vpack.i.b16 %v5521, %v5520
        %v5526 = vpack.i.b16 %v5499, %v5495
        %v5528 = vshrl.u32 %v5495, 16
        %v5529 = vshrl.u32 %v5499, 16
        %v5530 = vpack.i.b16 %v5529, %v5528
        %v5532 = vcombine.high %v5502, %v3699
        %v5534 = vunpack.c.l.s4 1983009808
        %v5535 = vunpack.c.0.s8 %v5534
        %v5536 = vlaneseq
        %v5537 = vshrl.u32 %v5536, 7
        %v5538 = vsub.s32 %v5535, %v5537
        %v5539 = vrot.slane %v5502, %v5538
        %v5541 = vunpack.c.l.s4 1983009808
        %v5542 = vunpack.c.0.s8 %v5541
        %v5543 = vlaneseq
        %v5544 = vshrl.u32 %v5543, 7
        %v5545 = vsub.s32 %v5542, %v5544
        %v5546 = vrot.slane %v5532, %v5545
        %v5547 = vcombine.high %v5510, %v3699
        %v5549 = vunpack.c.l.s4 1983009808
        %v5550 = vunpack.c.0.s8 %v5549
        %v5551 = vlaneseq
        %v5552 = vshrl.u32 %v5551, 7
        %v5553 = vsub.s32 %v5550, %v5552
        %v5554 = vrot.slane %v5510, %v5553
        %v5556 = vunpack.c.l.s4 1983009808
        %v5557 = vunpack.c.0.s8 %v5556
        %v5558 = vlaneseq
        %v5559 = vshrl.u32 %v5558, 7
        %v5560 = vsub.s32 %v5557, %v5559
        %v5561 = vrot.slane %v5547, %v5560
        %v5562 = vcombine.low %v5539, %v5554
        %v5563 = vcombine.high %v5539, %v5554
        %v5565 = vunpack.c.l.s4 1934713408
        %v5566 = vunpack.c.0.s8 %v5565
        %v5567 = vlaneseq
        %v5568 = vshrl.u32 %v5567, 7
        %v5569 = vsub.s32 %v5566, %v5568
        %v5570 = vrot.slane %v5562, %v5569
        %v5572 = vunpack.c.l.s4 1934713408
        %v5573 = vunpack.c.0.s8 %v5572
        %v5574 = vlaneseq
        %v5575 = vshrl.u32 %v5574, 7
        %v5576 = vsub.s32 %v5573, %v5575
        %v5577 = vrot.slane %v5563, %v5576
        %v5578 = vcombine.low %v5546, %v5561
        %v5579 = vcombine.high %v5546, %v5561
        %v5581 = vunpack.c.l.s4 1934713408
        %v5582 = vunpack.c.0.s8 %v5581
        %v5583 = vlaneseq
        %v5584 = vshrl.u32 %v5583, 7
        %v5585 = vsub.s32 %v5582, %v5584
        %v5586 = vrot.slane %v5578, %v5585
        %v5588 = vunpack.c.l.s4 1934713408
        %v5589 = vunpack.c.0.s8 %v5588
        %v5590 = vlaneseq
        %v5591 = vshrl.u32 %v5590, 7
        %v5592 = vsub.s32 %v5589, %v5591
        %v5593 = vrot.slane %v5579, %v5592
        %v5594 = vcombine.high %v5570, 0
        %v5595 = vcombine.high %v5577, 0
        %v5596 = vcombine.high %v5586, 0
        %v5597 = vcombine.high %v5593, 0
        %v5598 = vcombine.high %v5506, %v3702
        %v5600 = vunpack.c.l.s4 1983009808
        %v5601 = vunpack.c.0.s8 %v5600
        %v5602 = vlaneseq
        %v5603 = vshrl.u32 %v5602, 7
        %v5604 = vsub.s32 %v5601, %v5603
        %v5605 = vrot.slane %v5506, %v5604
        %v5607 = vunpack.c.l.s4 1983009808
        %v5608 = vunpack.c.0.s8 %v5607
        %v5609 = vlaneseq
        %v5610 = vshrl.u32 %v5609, 7
        %v5611 = vsub.s32 %v5608, %v5610
        %v5612 = vrot.slane %v5598, %v5611
        %v5613 = vcombine.high %v5514, %v3702
        %v5615 = vunpack.c.l.s4 1983009808
        %v5616 = vunpack.c.0.s8 %v5615
        %v5617 = vlaneseq
        %v5618 = vshrl.u32 %v5617, 7
        %v5619 = vsub.s32 %v5616, %v5618
        %v5620 = vrot.slane %v5514, %v5619
        %v5622 = vunpack.c.l.s4 1983009808
        %v5623 = vunpack.c.0.s8 %v5622
        %v5624 = vlaneseq
        %v5625 = vshrl.u32 %v5624, 7
        %v5626 = vsub.s32 %v5623, %v5625
        %v5627 = vrot.slane %v5613, %v5626
        %v5628 = vcombine.low %v5605, %v5620
        %v5629 = vcombine.high %v5605, %v5620
        %v5631 = vunpack.c.l.s4 1934713408
        %v5632 = vunpack.c.0.s8 %v5631
        %v5633 = vlaneseq
        %v5634 = vshrl.u32 %v5633, 7
        %v5635 = vsub.s32 %v5632, %v5634
        %v5636 = vrot.slane %v5628, %v5635
        %v5638 = vunpack.c.l.s4 1934713408
        %v5639 = vunpack.c.0.s8 %v5638
        %v5640 = vlaneseq
        %v5641 = vshrl.u32 %v5640, 7
        %v5642 = vsub.s32 %v5639, %v5641
        %v5643 = vrot.slane %v5629, %v5642
        %v5644 = vcombine.low %v5612, %v5627
        %v5645 = vcombine.high %v5612, %v5627
        %v5647 = vunpack.c.l.s4 1934713408
        %v5648 = vunpack.c.0.s8 %v5647
        %v5649 = vlaneseq
        %v5650 = vshrl.u32 %v5649, 7
        %v5651 = vsub.s32 %v5648, %v5650
        %v5652 = vrot.slane %v5644, %v5651
        %v5654 = vunpack.c.l.s4 1934713408
        %v5655 = vunpack.c.0.s8 %v5654
        %v5656 = vlaneseq
        %v5657 = vshrl.u32 %v5656, 7
        %v5658 = vsub.s32 %v5655, %v5657
        %v5659 = vrot.slane %v5645, %v5658
        %v5660 = vcombine.high %v5636, 0
        %v5661 = vcombine.high %v5643, 0
        %v5662 = vcombine.high %v5652, 0
        %v5663 = vcombine.high %v5659, 0
        %v5664 = vcombine.high %v5518, %v3699
        %v5666 = vunpack.c.l.s4 1983009808
        %v5667 = vunpack.c.0.s8 %v5666
        %v5668 = vlaneseq
        %v5669 = vshrl.u32 %v5668, 7
        %v5670 = vsub.s32 %v5667, %v5669
        %v5671 = vrot.slane %v5518, %v5670
        %v5673 = vunpack.c.l.s4 1983009808
        %v5674 = vunpack.c.0.s8 %v5673
        %v5675 = vlaneseq
        %v5676 = vshrl.u32 %v5675, 7
        %v5677 = vsub.s32 %v5674, %v5676
        %v5678 = vrot.slane %v5664, %v5677
        %v5679 = vcombine.high %v5526, %v3699
        %v5681 = vunpack.c.l.s4 1983009808
        %v5682 = vunpack.c.0.s8 %v5681
        %v5683 = vlaneseq
        %v5684 = vshrl.u32 %v5683, 7
        %v5685 = vsub.s32 %v5682, %v5684
        %v5686 = vrot.slane %v5526, %v5685
        %v5688 = vunpack.c.l.s4 1983009808
        %v5689 = vunpack.c.0.s8 %v5688
        %v5690 = vlaneseq
        %v5691 = vshrl.u32 %v5690, 7
        %v5692 = vsub.s32 %v5689, %v5691
        %v5693 = vrot.slane %v5679, %v5692
        %v5694 = vcombine.low %v5671, %v5686
        %v5695 = vcombine.high %v5671, %v5686
        %v5697 = vunpack.c.l.s4 1934713408
        %v5698 = vunpack.c.0.s8 %v5697
        %v5699 = vlaneseq
        %v5700 = vshrl.u32 %v5699, 7
        %v5701 = vsub.s32 %v5698, %v5700
        %v5702 = vrot.slane %v5694, %v5701
        %v5704 = vunpack.c.l.s4 1934713408
        %v5705 = vunpack.c.0.s8 %v5704
        %v5706 = vlaneseq
        %v5707 = vshrl.u32 %v5706, 7
        %v5708 = vsub.s32 %v5705, %v5707
        %v5709 = vrot.slane %v5695, %v5708
        %v5710 = vcombine.low %v5678, %v5693
        %v5711 = vcombine.high %v5678, %v5693
        %v5713 = vunpack.c.l.s4 1934713408
        %v5714 = vunpack.c.0.s8 %v5713
        %v5715 = vlaneseq
        %v5716 = vshrl.u32 %v5715, 7
        %v5717 = vsub.s32 %v5714, %v5716
        %v5718 = vrot.slane %v5710, %v5717
        %v5720 = vunpack.c.l.s4 1934713408
        %v5721 = vunpack.c.0.s8 %v5720
        %v5722 = vlaneseq
        %v5723 = vshrl.u32 %v5722, 7
        %v5724 = vsub.s32 %v5721, %v5723
        %v5725 = vrot.slane %v5711, %v5724
        %v5726 = vcombine.high %v5702, 0
        %v5727 = vcombine.high %v5709, 0
        %v5728 = vcombine.high %v5718, 0
        %v5729 = vcombine.high %v5725, 0
        %v5730 = vcombine.high %v5522, %v3702
        %v5732 = vunpack.c.l.s4 1983009808
        %v5733 = vunpack.c.0.s8 %v5732
        %v5734 = vlaneseq
        %v5735 = vshrl.u32 %v5734, 7
        %v5736 = vsub.s32 %v5733, %v5735
        %v5737 = vrot.slane %v5522, %v5736
        %v5739 = vunpack.c.l.s4 1983009808
        %v5740 = vunpack.c.0.s8 %v5739
        %v5741 = vlaneseq
        %v5742 = vshrl.u32 %v5741, 7
        %v5743 = vsub.s32 %v5740, %v5742
        %v5744 = vrot.slane %v5730, %v5743
        %v5745 = vcombine.high %v5530, %v3702
        %v5747 = vunpack.c.l.s4 1983009808
        %v5748 = vunpack.c.0.s8 %v5747
        %v5749 = vlaneseq
        %v5750 = vshrl.u32 %v5749, 7
        %v5751 = vsub.s32 %v5748, %v5750
        %v5752 = vrot.slane %v5530, %v5751
        %v5754 = vunpack.c.l.s4 1983009808
        %v5755 = vunpack.c.0.s8 %v5754
        %v5756 = vlaneseq
        %v5757 = vshrl.u32 %v5756, 7
        %v5758 = vsub.s32 %v5755, %v5757
        %v5759 = vrot.slane %v5745, %v5758
        %v5760 = vcombine.low %v5737, %v5752
        %v5761 = vcombine.high %v5737, %v5752
        %v5763 = vunpack.c.l.s4 1934713408
        %v5764 = vunpack.c.0.s8 %v5763
        %v5765 = vlaneseq
        %v5766 = vshrl.u32 %v5765, 7
        %v5767 = vsub.s32 %v5764, %v5766
        %v5768 = vrot.slane %v5760, %v5767
        %v5770 = vunpack.c.l.s4 1934713408
        %v5771 = vunpack.c.0.s8 %v5770
        %v5772 = vlaneseq
        %v5773 = vshrl.u32 %v5772, 7
        %v5774 = vsub.s32 %v5771, %v5773
        %v5775 = vrot.slane %v5761, %v5774
        %v5776 = vcombine.low %v5744, %v5759
        %v5777 = vcombine.high %v5744, %v5759
        %v5779 = vunpack.c.l.s4 1934713408
        %v5780 = vunpack.c.0.s8 %v5779
        %v5781 = vlaneseq
        %v5782 = vshrl.u32 %v5781, 7
        %v5783 = vsub.s32 %v5780, %v5782
        %v5784 = vrot.slane %v5776, %v5783
        %v5786 = vunpack.c.l.s4 1934713408
        %v5787 = vunpack.c.0.s8 %v5786
        %v5788 = vlaneseq
        %v5789 = vshrl.u32 %v5788, 7
        %v5790 = vsub.s32 %v5787, %v5789
        %v5791 = vrot.slane %v5777, %v5790
        %v5792 = vcombine.high %v5768, 0
        %v5793 = vcombine.high %v5775, 0
        %v5794 = vcombine.high %v5784, 0
        %v5795 = vcombine.high %v5791, 0
        %5797 = vrot.lane.b32.xlu0 %v5636, 32
        %v5798 = vpop.permute.xlu0 %5797
        %5800 = vrot.lane.b32.xlu0 %v5594, 64
        %v5801 = vpop.permute.xlu0 %5800
        %5803 = vrot.lane.b32.xlu0 %v5660, 96
        %v5804 = vpop.permute.xlu0 %5803
        %5806 = vrot.lane.b32.xlu0 %v5643, 32
        %v5807 = vpop.permute.xlu0 %5806
        %5809 = vrot.lane.b32.xlu0 %v5595, 64
        %v5810 = vpop.permute.xlu0 %5809
        %5812 = vrot.lane.b32.xlu0 %v5661, 96
        %v5813 = vpop.permute.xlu0 %5812
        %5815 = vrot.lane.b32.xlu0 %v5652, 32
        %v5816 = vpop.permute.xlu0 %5815
        %5818 = vrot.lane.b32.xlu0 %v5596, 64
        %v5819 = vpop.permute.xlu0 %5818
        %5821 = vrot.lane.b32.xlu0 %v5662, 96
        %v5822 = vpop.permute.xlu0 %5821
        %5824 = vrot.lane.b32.xlu0 %v5659, 32
        %v5825 = vpop.permute.xlu0 %5824
        %5827 = vrot.lane.b32.xlu0 %v5597, 64
        %v5828 = vpop.permute.xlu0 %5827
        %5830 = vrot.lane.b32.xlu0 %v5663, 96
        %v5831 = vpop.permute.xlu0 %5830
        %5833 = vrot.lane.b32.xlu0 %v5768, 32
        %v5834 = vpop.permute.xlu0 %5833
        %5836 = vrot.lane.b32.xlu0 %v5726, 64
        %v5837 = vpop.permute.xlu0 %5836
        %5839 = vrot.lane.b32.xlu0 %v5792, 96
        %v5840 = vpop.permute.xlu0 %5839
        %5842 = vrot.lane.b32.xlu0 %v5775, 32
        %v5843 = vpop.permute.xlu0 %5842
        %5845 = vrot.lane.b32.xlu0 %v5727, 64
        %v5846 = vpop.permute.xlu0 %5845
        %5848 = vrot.lane.b32.xlu0 %v5793, 96
        %v5849 = vpop.permute.xlu0 %5848
        %5851 = vrot.lane.b32.xlu0 %v5784, 32
        %v5852 = vpop.permute.xlu0 %5851
        %5854 = vrot.lane.b32.xlu0 %v5728, 64
        %v5855 = vpop.permute.xlu0 %5854
        %5857 = vrot.lane.b32.xlu0 %v5794, 96
        %v5858 = vpop.permute.xlu0 %5857
        %5860 = vrot.lane.b32.xlu0 %v5791, 32
        %v5861 = vpop.permute.xlu0 %5860
        %5863 = vrot.lane.b32.xlu0 %v5729, 64
        %v5864 = vpop.permute.xlu0 %5863
        %5866 = vrot.lane.b32.xlu0 %v5795, 96
        %v5867 = vpop.permute.xlu0 %5866
        %v5870 = vsel %vm4052, %v5570, %v5798
        %v5872 = vsel %vm4056, %v5870, %v5801
        %v5874 = vsel %vm4059, %v5872, %v5804
        %v5877 = vsel %vm4052, %v5577, %v5807
        %v5879 = vsel %vm4056, %v5877, %v5810
        %v5881 = vsel %vm4059, %v5879, %v5813
        %v5884 = vsel %vm4052, %v5586, %v5816
        %v5886 = vsel %vm4056, %v5884, %v5819
        %v5888 = vsel %vm4059, %v5886, %v5822
        %v5891 = vsel %vm4052, %v5593, %v5825
        %v5893 = vsel %vm4056, %v5891, %v5828
        %v5895 = vsel %vm4059, %v5893, %v5831
        %v5898 = vsel %vm4052, %v5702, %v5834
        %v5900 = vsel %vm4056, %v5898, %v5837
        %v5902 = vsel %vm4059, %v5900, %v5840
        %v5905 = vsel %vm4052, %v5709, %v5843
        %v5907 = vsel %vm4056, %v5905, %v5846
        %v5909 = vsel %vm4059, %v5907, %v5849
        %v5912 = vsel %vm4052, %v5718, %v5852
        %v5914 = vsel %vm4056, %v5912, %v5855
        %v5916 = vsel %vm4059, %v5914, %v5858
        %v5919 = vsel %vm4052, %v5725, %v5861
        %v5921 = vsel %vm4056, %v5919, %v5864
        %v5923 = vsel %vm4059, %v5921, %v5867
        %5924 = vrot.lane.b32.xlu0 %v5008, 126
        %v5925 = vpop.permute.xlu0 %5924
        %5926 = vrot.lane.b32.xlu0 %v5014, 126
        %v5927 = vpop.permute.xlu0 %5926
        %5928 = vrot.lane.b32.xlu0 %v5023, 126
        %v5929 = vpop.permute.xlu0 %5928
        %5930 = vrot.lane.b32.xlu0 %v5029, 126
        %v5931 = vpop.permute.xlu0 %5930
        %5932 = vrot.lane.b32.xlu0 %v5038, 126
        %v5933 = vpop.permute.xlu0 %5932
        %5934 = vrot.lane.b32.xlu0 %v5044, 126
        %v5935 = vpop.permute.xlu0 %5934
        %5936 = vrot.lane.b32.xlu0 %v5053, 126
        %v5937 = vpop.permute.xlu0 %5936
        %5938 = vrot.lane.b32.xlu0 %v5059, 126
        %v5939 = vpop.permute.xlu0 %5938
        %v5942 = vpack.i.b16 %v5929, %v5925
        %v5944 = vshrl.u32 %v5925, 16
        %v5945 = vshrl.u32 %v5929, 16
        %v5946 = vpack.i.b16 %v5945, %v5944
        %v5950 = vpack.i.b16 %v5937, %v5933
        %v5952 = vshrl.u32 %v5933, 16
        %v5953 = vshrl.u32 %v5937, 16
        %v5954 = vpack.i.b16 %v5953, %v5952
        %v5958 = vpack.i.b16 %v5931, %v5927
        %v5960 = vshrl.u32 %v5927, 16
        %v5961 = vshrl.u32 %v5931, 16
        %v5962 = vpack.i.b16 %v5961, %v5960
        %v5966 = vpack.i.b16 %v5939, %v5935
        %v5968 = vshrl.u32 %v5935, 16
        %v5969 = vshrl.u32 %v5939, 16
        %v5970 = vpack.i.b16 %v5969, %v5968
        %v5972 = vcombine.high %v5942, %v3699
        %v5974 = vunpack.c.l.s4 1983009808
        %v5975 = vunpack.c.0.s8 %v5974
        %v5976 = vlaneseq
        %v5977 = vshrl.u32 %v5976, 7
        %v5978 = vsub.s32 %v5975, %v5977
        %v5979 = vrot.slane %v5942, %v5978
        %v5981 = vunpack.c.l.s4 1983009808
        %v5982 = vunpack.c.0.s8 %v5981
        %v5983 = vlaneseq
        %v5984 = vshrl.u32 %v5983, 7
        %v5985 = vsub.s32 %v5982, %v5984
        %v5986 = vrot.slane %v5972, %v5985
        %v5987 = vcombine.high %v5950, %v3699
        %v5989 = vunpack.c.l.s4 1983009808
        %v5990 = vunpack.c.0.s8 %v5989
        %v5991 = vlaneseq
        %v5992 = vshrl.u32 %v5991, 7
        %v5993 = vsub.s32 %v5990, %v5992
        %v5994 = vrot.slane %v5950, %v5993
        %v5996 = vunpack.c.l.s4 1983009808
        %v5997 = vunpack.c.0.s8 %v5996
        %v5998 = vlaneseq
        %v5999 = vshrl.u32 %v5998, 7
        %v6000 = vsub.s32 %v5997, %v5999
        %v6001 = vrot.slane %v5987, %v6000
        %v6002 = vcombine.low %v5979, %v5994
        %v6003 = vcombine.high %v5979, %v5994
        %v6005 = vunpack.c.l.s4 1934713408
        %v6006 = vunpack.c.0.s8 %v6005
        %v6007 = vlaneseq
        %v6008 = vshrl.u32 %v6007, 7
        %v6009 = vsub.s32 %v6006, %v6008
        %v6010 = vrot.slane %v6002, %v6009
        %v6012 = vunpack.c.l.s4 1934713408
        %v6013 = vunpack.c.0.s8 %v6012
        %v6014 = vlaneseq
        %v6015 = vshrl.u32 %v6014, 7
        %v6016 = vsub.s32 %v6013, %v6015
        %v6017 = vrot.slane %v6003, %v6016
        %v6018 = vcombine.low %v5986, %v6001
        %v6019 = vcombine.high %v5986, %v6001
        %v6021 = vunpack.c.l.s4 1934713408
        %v6022 = vunpack.c.0.s8 %v6021
        %v6023 = vlaneseq
        %v6024 = vshrl.u32 %v6023, 7
        %v6025 = vsub.s32 %v6022, %v6024
        %v6026 = vrot.slane %v6018, %v6025
        %v6028 = vunpack.c.l.s4 1934713408
        %v6029 = vunpack.c.0.s8 %v6028
        %v6030 = vlaneseq
        %v6031 = vshrl.u32 %v6030, 7
        %v6032 = vsub.s32 %v6029, %v6031
        %v6033 = vrot.slane %v6019, %v6032
        %v6034 = vcombine.high %v6010, 0
        %v6035 = vcombine.high %v6017, 0
        %v6036 = vcombine.high %v6026, 0
        %v6037 = vcombine.high %v6033, 0
        %v6038 = vcombine.high %v5946, %v3702
        %v6040 = vunpack.c.l.s4 1983009808
        %v6041 = vunpack.c.0.s8 %v6040
        %v6042 = vlaneseq
        %v6043 = vshrl.u32 %v6042, 7
        %v6044 = vsub.s32 %v6041, %v6043
        %v6045 = vrot.slane %v5946, %v6044
        %v6047 = vunpack.c.l.s4 1983009808
        %v6048 = vunpack.c.0.s8 %v6047
        %v6049 = vlaneseq
        %v6050 = vshrl.u32 %v6049, 7
        %v6051 = vsub.s32 %v6048, %v6050
        %v6052 = vrot.slane %v6038, %v6051
        %v6053 = vcombine.high %v5954, %v3702
        %v6055 = vunpack.c.l.s4 1983009808
        %v6056 = vunpack.c.0.s8 %v6055
        %v6057 = vlaneseq
        %v6058 = vshrl.u32 %v6057, 7
        %v6059 = vsub.s32 %v6056, %v6058
        %v6060 = vrot.slane %v5954, %v6059
        %v6062 = vunpack.c.l.s4 1983009808
        %v6063 = vunpack.c.0.s8 %v6062
        %v6064 = vlaneseq
        %v6065 = vshrl.u32 %v6064, 7
        %v6066 = vsub.s32 %v6063, %v6065
        %v6067 = vrot.slane %v6053, %v6066
        %v6068 = vcombine.low %v6045, %v6060
        %v6069 = vcombine.high %v6045, %v6060
        %v6071 = vunpack.c.l.s4 1934713408
        %v6072 = vunpack.c.0.s8 %v6071
        %v6073 = vlaneseq
        %v6074 = vshrl.u32 %v6073, 7
        %v6075 = vsub.s32 %v6072, %v6074
        %v6076 = vrot.slane %v6068, %v6075
        %v6078 = vunpack.c.l.s4 1934713408
        %v6079 = vunpack.c.0.s8 %v6078
        %v6080 = vlaneseq
        %v6081 = vshrl.u32 %v6080, 7
        %v6082 = vsub.s32 %v6079, %v6081
        %v6083 = vrot.slane %v6069, %v6082
        %v6084 = vcombine.low %v6052, %v6067
        %v6085 = vcombine.high %v6052, %v6067
        %v6087 = vunpack.c.l.s4 1934713408
        %v6088 = vunpack.c.0.s8 %v6087
        %v6089 = vlaneseq
        %v6090 = vshrl.u32 %v6089, 7
        %v6091 = vsub.s32 %v6088, %v6090
        %v6092 = vrot.slane %v6084, %v6091
        %v6094 = vunpack.c.l.s4 1934713408
        %v6095 = vunpack.c.0.s8 %v6094
        %v6096 = vlaneseq
        %v6097 = vshrl.u32 %v6096, 7
        %v6098 = vsub.s32 %v6095, %v6097
        %v6099 = vrot.slane %v6085, %v6098
        %v6100 = vcombine.high %v6076, 0
        %v6101 = vcombine.high %v6083, 0
        %v6102 = vcombine.high %v6092, 0
        %v6103 = vcombine.high %v6099, 0
        %v6104 = vcombine.high %v5958, %v3699
        %v6106 = vunpack.c.l.s4 1983009808
        %v6107 = vunpack.c.0.s8 %v6106
        %v6108 = vlaneseq
        %v6109 = vshrl.u32 %v6108, 7
        %v6110 = vsub.s32 %v6107, %v6109
        %v6111 = vrot.slane %v5958, %v6110
        %v6113 = vunpack.c.l.s4 1983009808
        %v6114 = vunpack.c.0.s8 %v6113
        %v6115 = vlaneseq
        %v6116 = vshrl.u32 %v6115, 7
        %v6117 = vsub.s32 %v6114, %v6116
        %v6118 = vrot.slane %v6104, %v6117
        %v6119 = vcombine.high %v5966, %v3699
        %v6121 = vunpack.c.l.s4 1983009808
        %v6122 = vunpack.c.0.s8 %v6121
        %v6123 = vlaneseq
        %v6124 = vshrl.u32 %v6123, 7
        %v6125 = vsub.s32 %v6122, %v6124
        %v6126 = vrot.slane %v5966, %v6125
        %v6128 = vunpack.c.l.s4 1983009808
        %v6129 = vunpack.c.0.s8 %v6128
        %v6130 = vlaneseq
        %v6131 = vshrl.u32 %v6130, 7
        %v6132 = vsub.s32 %v6129, %v6131
        %v6133 = vrot.slane %v6119, %v6132
        %v6134 = vcombine.low %v6111, %v6126
        %v6135 = vcombine.high %v6111, %v6126
        %v6137 = vunpack.c.l.s4 1934713408
        %v6138 = vunpack.c.0.s8 %v6137
        %v6139 = vlaneseq
        %v6140 = vshrl.u32 %v6139, 7
        %v6141 = vsub.s32 %v6138, %v6140
        %v6142 = vrot.slane %v6134, %v6141
        %v6144 = vunpack.c.l.s4 1934713408
        %v6145 = vunpack.c.0.s8 %v6144
        %v6146 = vlaneseq
        %v6147 = vshrl.u32 %v6146, 7
        %v6148 = vsub.s32 %v6145, %v6147
        %v6149 = vrot.slane %v6135, %v6148
        %v6150 = vcombine.low %v6118, %v6133
        %v6151 = vcombine.high %v6118, %v6133
        %v6153 = vunpack.c.l.s4 1934713408
        %v6154 = vunpack.c.0.s8 %v6153
        %v6155 = vlaneseq
        %v6156 = vshrl.u32 %v6155, 7
        %v6157 = vsub.s32 %v6154, %v6156
        %v6158 = vrot.slane %v6150, %v6157
        %v6160 = vunpack.c.l.s4 1934713408
        %v6161 = vunpack.c.0.s8 %v6160
        %v6162 = vlaneseq
        %v6163 = vshrl.u32 %v6162, 7
        %v6164 = vsub.s32 %v6161, %v6163
        %v6165 = vrot.slane %v6151, %v6164
        %v6166 = vcombine.high %v6142, 0
        %v6167 = vcombine.high %v6149, 0
        %v6168 = vcombine.high %v6158, 0
        %v6169 = vcombine.high %v6165, 0
        %v6170 = vcombine.high %v5962, %v3702
        %v6172 = vunpack.c.l.s4 1983009808
        %v6173 = vunpack.c.0.s8 %v6172
        %v6174 = vlaneseq
        %v6175 = vshrl.u32 %v6174, 7
        %v6176 = vsub.s32 %v6173, %v6175
        %v6177 = vrot.slane %v5962, %v6176
        %v6179 = vunpack.c.l.s4 1983009808
        %v6180 = vunpack.c.0.s8 %v6179
        %v6181 = vlaneseq
        %v6182 = vshrl.u32 %v6181, 7
        %v6183 = vsub.s32 %v6180, %v6182
        %v6184 = vrot.slane %v6170, %v6183
        %v6185 = vcombine.high %v5970, %v3702
        %v6187 = vunpack.c.l.s4 1983009808
        %v6188 = vunpack.c.0.s8 %v6187
        %v6189 = vlaneseq
        %v6190 = vshrl.u32 %v6189, 7
        %v6191 = vsub.s32 %v6188, %v6190
        %v6192 = vrot.slane %v5970, %v6191
        %v6194 = vunpack.c.l.s4 1983009808
        %v6195 = vunpack.c.0.s8 %v6194
        %v6196 = vlaneseq
        %v6197 = vshrl.u32 %v6196, 7
        %v6198 = vsub.s32 %v6195, %v6197
        %v6199 = vrot.slane %v6185, %v6198
        %v6200 = vcombine.low %v6177, %v6192
        %v6201 = vcombine.high %v6177, %v6192
        %v6203 = vunpack.c.l.s4 1934713408
        %v6204 = vunpack.c.0.s8 %v6203
        %v6205 = vlaneseq
        %v6206 = vshrl.u32 %v6205, 7
        %v6207 = vsub.s32 %v6204, %v6206
        %v6208 = vrot.slane %v6200, %v6207
        %v6210 = vunpack.c.l.s4 1934713408
        %v6211 = vunpack.c.0.s8 %v6210
        %v6212 = vlaneseq
        %v6213 = vshrl.u32 %v6212, 7
        %v6214 = vsub.s32 %v6211, %v6213
        %v6215 = vrot.slane %v6201, %v6214
        %v6216 = vcombine.low %v6184, %v6199
        %v6217 = vcombine.high %v6184, %v6199
        %v6219 = vunpack.c.l.s4 1934713408
        %v6220 = vunpack.c.0.s8 %v6219
        %v6221 = vlaneseq
        %v6222 = vshrl.u32 %v6221, 7
        %v6223 = vsub.s32 %v6220, %v6222
        %v6224 = vrot.slane %v6216, %v6223
        %v6226 = vunpack.c.l.s4 1934713408
        %v6227 = vunpack.c.0.s8 %v6226
        %v6228 = vlaneseq
        %v6229 = vshrl.u32 %v6228, 7
        %v6230 = vsub.s32 %v6227, %v6229
        %v6231 = vrot.slane %v6217, %v6230
        %v6232 = vcombine.high %v6208, 0
        %v6233 = vcombine.high %v6215, 0
        %v6234 = vcombine.high %v6224, 0
        %v6235 = vcombine.high %v6231, 0
        %6237 = vrot.lane.b32.xlu0 %v6076, 32
        %v6238 = vpop.permute.xlu0 %6237
        %6240 = vrot.lane.b32.xlu0 %v6034, 64
        %v6241 = vpop.permute.xlu0 %6240
        %6243 = vrot.lane.b32.xlu0 %v6100, 96
        %v6244 = vpop.permute.xlu0 %6243
        %6246 = vrot.lane.b32.xlu0 %v6083, 32
        %v6247 = vpop.permute.xlu0 %6246
        %6249 = vrot.lane.b32.xlu0 %v6035, 64
        %v6250 = vpop.permute.xlu0 %6249
        %6252 = vrot.lane.b32.xlu0 %v6101, 96
        %v6253 = vpop.permute.xlu0 %6252
        %6255 = vrot.lane.b32.xlu0 %v6092, 32
        %v6256 = vpop.permute.xlu0 %6255
        %6258 = vrot.lane.b32.xlu0 %v6036, 64
        %v6259 = vpop.permute.xlu0 %6258
        %6261 = vrot.lane.b32.xlu0 %v6102, 96
        %v6262 = vpop.permute.xlu0 %6261
        %6264 = vrot.lane.b32.xlu0 %v6099, 32
        %v6265 = vpop.permute.xlu0 %6264
        %6267 = vrot.lane.b32.xlu0 %v6037, 64
        %v6268 = vpop.permute.xlu0 %6267
        %6270 = vrot.lane.b32.xlu0 %v6103, 96
        %v6271 = vpop.permute.xlu0 %6270
        %6273 = vrot.lane.b32.xlu0 %v6208, 32
        %v6274 = vpop.permute.xlu0 %6273
        %6276 = vrot.lane.b32.xlu0 %v6166, 64
        %v6277 = vpop.permute.xlu0 %6276
        %6279 = vrot.lane.b32.xlu0 %v6232, 96
        %v6280 = vpop.permute.xlu0 %6279
        %6282 = vrot.lane.b32.xlu0 %v6215, 32
        %v6283 = vpop.permute.xlu0 %6282
        %6285 = vrot.lane.b32.xlu0 %v6167, 64
        %v6286 = vpop.permute.xlu0 %6285
        %6288 = vrot.lane.b32.xlu0 %v6233, 96
        %v6289 = vpop.permute.xlu0 %6288
        %6291 = vrot.lane.b32.xlu0 %v6224, 32
        %v6292 = vpop.permute.xlu0 %6291
        %6294 = vrot.lane.b32.xlu0 %v6168, 64
        %v6295 = vpop.permute.xlu0 %6294
        %6297 = vrot.lane.b32.xlu0 %v6234, 96
        %v6298 = vpop.permute.xlu0 %6297
        %6300 = vrot.lane.b32.xlu0 %v6231, 32
        %v6301 = vpop.permute.xlu0 %6300
        %6303 = vrot.lane.b32.xlu0 %v6169, 64
        %v6304 = vpop.permute.xlu0 %6303
        %6306 = vrot.lane.b32.xlu0 %v6235, 96
        %v6307 = vpop.permute.xlu0 %6306
        %v6310 = vsel %vm4052, %v6010, %v6238
        %v6312 = vsel %vm4056, %v6310, %v6241
        %v6314 = vsel %vm4059, %v6312, %v6244
        %v6317 = vsel %vm4052, %v6017, %v6247
        %v6319 = vsel %vm4056, %v6317, %v6250
        %v6321 = vsel %vm4059, %v6319, %v6253
        %v6324 = vsel %vm4052, %v6026, %v6256
        %v6326 = vsel %vm4056, %v6324, %v6259
        %v6328 = vsel %vm4059, %v6326, %v6262
        %v6331 = vsel %vm4052, %v6033, %v6265
        %v6333 = vsel %vm4056, %v6331, %v6268
        %v6335 = vsel %vm4059, %v6333, %v6271
        %v6338 = vsel %vm4052, %v6142, %v6274
        %v6340 = vsel %vm4056, %v6338, %v6277
        %v6342 = vsel %vm4059, %v6340, %v6280
        %v6345 = vsel %vm4052, %v6149, %v6283
        %v6347 = vsel %vm4056, %v6345, %v6286
        %v6349 = vsel %vm4059, %v6347, %v6289
        %v6352 = vsel %vm4052, %v6158, %v6292
        %v6354 = vsel %vm4056, %v6352, %v6295
        %v6356 = vsel %vm4059, %v6354, %v6298
        %v6359 = vsel %vm4052, %v6165, %v6301
        %v6361 = vsel %vm4056, %v6359, %v6304
        %v6363 = vsel %vm4059, %v6361, %v6307
        %vm6368 = vcmask 1046528
        %v6369 = vrot.slane %v3663, 1
        %v6370 = vrot.slane %v3665, 1
        %v6371 = vsel %vm6368, %v6369, %v6370
        %v6372 = vrot.slane %v3667, 1
        %v6373 = vsel %vm6368, %v6370, %v6372
        %v6374 = vrot.slane %v3669, 1
        %v6375 = vrot.slane %v3671, 1
        %v6376 = vsel %vm6368, %v6374, %v6375
        %v6377 = vrot.slane %v3673, 1
        %v6378 = vsel %vm6368, %v6375, %v6377
        %v6379 = vrot.slane %v3675, 1
        %v6380 = vrot.slane %v3677, 1
        %v6381 = vsel %vm6368, %v6379, %v6380
        %v6382 = vrot.slane %v3679, 1
        %v6383 = vsel %vm6368, %v6380, %v6382
        %v6384 = vrot.slane %v3681, 1
        %v6385 = vrot.slane %v3683, 1
        %v6386 = vsel %vm6368, %v6384, %v6385
        %v6387 = vrot.slane %v3685, 1
        %v6388 = vsel %vm6368, %v6385, %v6387
        %v6391 = vpack.i.b16 %v6376, %v6371
        %v6393 = vshrl.u32 %v6371, 16
        %v6394 = vshrl.u32 %v6376, 16
        %v6395 = vpack.i.b16 %v6394, %v6393
        %v6399 = vpack.i.b16 %v6386, %v6381
        %v6401 = vshrl.u32 %v6381, 16
        %v6402 = vshrl.u32 %v6386, 16
        %v6403 = vpack.i.b16 %v6402, %v6401
        %v6407 = vpack.i.b16 %v6378, %v6373
        %v6409 = vshrl.u32 %v6373, 16
        %v6410 = vshrl.u32 %v6378, 16
        %v6411 = vpack.i.b16 %v6410, %v6409
        %v6415 = vpack.i.b16 %v6388, %v6383
        %v6417 = vshrl.u32 %v6383, 16
        %v6418 = vshrl.u32 %v6388, 16
        %v6419 = vpack.i.b16 %v6418, %v6417
        %v6421 = vcombine.high %v6391, %v3699
        %v6423 = vunpack.c.l.s4 1983009808
        %v6424 = vunpack.c.0.s8 %v6423
        %v6425 = vlaneseq
        %v6426 = vshrl.u32 %v6425, 7
        %v6427 = vsub.s32 %v6424, %v6426
        %v6428 = vrot.slane %v6391, %v6427
        %v6430 = vunpack.c.l.s4 1983009808
        %v6431 = vunpack.c.0.s8 %v6430
        %v6432 = vlaneseq
        %v6433 = vshrl.u32 %v6432, 7
        %v6434 = vsub.s32 %v6431, %v6433
        %v6435 = vrot.slane %v6421, %v6434
        %v6436 = vcombine.high %v6399, %v3699
        %v6438 = vunpack.c.l.s4 1983009808
        %v6439 = vunpack.c.0.s8 %v6438
        %v6440 = vlaneseq
        %v6441 = vshrl.u32 %v6440, 7
        %v6442 = vsub.s32 %v6439, %v6441
        %v6443 = vrot.slane %v6399, %v6442
        %v6445 = vunpack.c.l.s4 1983009808
        %v6446 = vunpack.c.0.s8 %v6445
        %v6447 = vlaneseq
        %v6448 = vshrl.u32 %v6447, 7
        %v6449 = vsub.s32 %v6446, %v6448
        %v6450 = vrot.slane %v6436, %v6449
        %v6451 = vcombine.low %v6428, %v6443
        %v6452 = vcombine.high %v6428, %v6443
        %v6454 = vunpack.c.l.s4 1934713408
        %v6455 = vunpack.c.0.s8 %v6454
        %v6456 = vlaneseq
        %v6457 = vshrl.u32 %v6456, 7
        %v6458 = vsub.s32 %v6455, %v6457
        %v6459 = vrot.slane %v6451, %v6458
        %v6461 = vunpack.c.l.s4 1934713408
        %v6462 = vunpack.c.0.s8 %v6461
        %v6463 = vlaneseq
        %v6464 = vshrl.u32 %v6463, 7
        %v6465 = vsub.s32 %v6462, %v6464
        %v6466 = vrot.slane %v6452, %v6465
        %v6467 = vcombine.low %v6435, %v6450
        %v6468 = vcombine.high %v6435, %v6450
        %v6470 = vunpack.c.l.s4 1934713408
        %v6471 = vunpack.c.0.s8 %v6470
        %v6472 = vlaneseq
        %v6473 = vshrl.u32 %v6472, 7
        %v6474 = vsub.s32 %v6471, %v6473
        %v6475 = vrot.slane %v6467, %v6474
        %v6477 = vunpack.c.l.s4 1934713408
        %v6478 = vunpack.c.0.s8 %v6477
        %v6479 = vlaneseq
        %v6480 = vshrl.u32 %v6479, 7
        %v6481 = vsub.s32 %v6478, %v6480
        %v6482 = vrot.slane %v6468, %v6481
        %v6483 = vcombine.high %v6459, 0
        %v6484 = vcombine.high %v6466, 0
        %v6485 = vcombine.high %v6475, 0
        %v6486 = vcombine.high %v6482, 0
        %v6487 = vcombine.high %v6395, %v3702
        %v6489 = vunpack.c.l.s4 1983009808
        %v6490 = vunpack.c.0.s8 %v6489
        %v6491 = vlaneseq
        %v6492 = vshrl.u32 %v6491, 7
        %v6493 = vsub.s32 %v6490, %v6492
        %v6494 = vrot.slane %v6395, %v6493
        %v6496 = vunpack.c.l.s4 1983009808
        %v6497 = vunpack.c.0.s8 %v6496
        %v6498 = vlaneseq
        %v6499 = vshrl.u32 %v6498, 7
        %v6500 = vsub.s32 %v6497, %v6499
        %v6501 = vrot.slane %v6487, %v6500
        %v6502 = vcombine.high %v6403, %v3702
        %v6504 = vunpack.c.l.s4 1983009808
        %v6505 = vunpack.c.0.s8 %v6504
        %v6506 = vlaneseq
        %v6507 = vshrl.u32 %v6506, 7
        %v6508 = vsub.s32 %v6505, %v6507
        %v6509 = vrot.slane %v6403, %v6508
        %v6511 = vunpack.c.l.s4 1983009808
        %v6512 = vunpack.c.0.s8 %v6511
        %v6513 = vlaneseq
        %v6514 = vshrl.u32 %v6513, 7
        %v6515 = vsub.s32 %v6512, %v6514
        %v6516 = vrot.slane %v6502, %v6515
        %v6517 = vcombine.low %v6494, %v6509
        %v6518 = vcombine.high %v6494, %v6509
        %v6520 = vunpack.c.l.s4 1934713408
        %v6521 = vunpack.c.0.s8 %v6520
        %v6522 = vlaneseq
        %v6523 = vshrl.u32 %v6522, 7
        %v6524 = vsub.s32 %v6521, %v6523
        %v6525 = vrot.slane %v6517, %v6524
        %v6527 = vunpack.c.l.s4 1934713408
        %v6528 = vunpack.c.0.s8 %v6527
        %v6529 = vlaneseq
        %v6530 = vshrl.u32 %v6529, 7
        %v6531 = vsub.s32 %v6528, %v6530
        %v6532 = vrot.slane %v6518, %v6531
        %v6533 = vcombine.low %v6501, %v6516
        %v6534 = vcombine.high %v6501, %v6516
        %v6536 = vunpack.c.l.s4 1934713408
        %v6537 = vunpack.c.0.s8 %v6536
        %v6538 = vlaneseq
        %v6539 = vshrl.u32 %v6538, 7
        %v6540 = vsub.s32 %v6537, %v6539
        %v6541 = vrot.slane %v6533, %v6540
        %v6543 = vunpack.c.l.s4 1934713408
        %v6544 = vunpack.c.0.s8 %v6543
        %v6545 = vlaneseq
        %v6546 = vshrl.u32 %v6545, 7
        %v6547 = vsub.s32 %v6544, %v6546
        %v6548 = vrot.slane %v6534, %v6547
        %v6549 = vcombine.high %v6525, 0
        %v6550 = vcombine.high %v6532, 0
        %v6551 = vcombine.high %v6541, 0
        %v6552 = vcombine.high %v6548, 0
        %v6553 = vcombine.high %v6407, %v3699
        %v6555 = vunpack.c.l.s4 1983009808
        %v6556 = vunpack.c.0.s8 %v6555
        %v6557 = vlaneseq
        %v6558 = vshrl.u32 %v6557, 7
        %v6559 = vsub.s32 %v6556, %v6558
        %v6560 = vrot.slane %v6407, %v6559
        %v6562 = vunpack.c.l.s4 1983009808
        %v6563 = vunpack.c.0.s8 %v6562
        %v6564 = vlaneseq
        %v6565 = vshrl.u32 %v6564, 7
        %v6566 = vsub.s32 %v6563, %v6565
        %v6567 = vrot.slane %v6553, %v6566
        %v6568 = vcombine.high %v6415, %v3699
        %v6570 = vunpack.c.l.s4 1983009808
        %v6571 = vunpack.c.0.s8 %v6570
        %v6572 = vlaneseq
        %v6573 = vshrl.u32 %v6572, 7
        %v6574 = vsub.s32 %v6571, %v6573
        %v6575 = vrot.slane %v6415, %v6574
        %v6577 = vunpack.c.l.s4 1983009808
        %v6578 = vunpack.c.0.s8 %v6577
        %v6579 = vlaneseq
        %v6580 = vshrl.u32 %v6579, 7
        %v6581 = vsub.s32 %v6578, %v6580
        %v6582 = vrot.slane %v6568, %v6581
        %v6583 = vcombine.low %v6560, %v6575
        %v6584 = vcombine.high %v6560, %v6575
        %v6586 = vunpack.c.l.s4 1934713408
        %v6587 = vunpack.c.0.s8 %v6586
        %v6588 = vlaneseq
        %v6589 = vshrl.u32 %v6588, 7
        %v6590 = vsub.s32 %v6587, %v6589
        %v6591 = vrot.slane %v6583, %v6590
        %v6593 = vunpack.c.l.s4 1934713408
        %v6594 = vunpack.c.0.s8 %v6593
        %v6595 = vlaneseq
        %v6596 = vshrl.u32 %v6595, 7
        %v6597 = vsub.s32 %v6594, %v6596
        %v6598 = vrot.slane %v6584, %v6597
        %v6599 = vcombine.low %v6567, %v6582
        %v6600 = vcombine.high %v6567, %v6582
        %v6602 = vunpack.c.l.s4 1934713408
        %v6603 = vunpack.c.0.s8 %v6602
        %v6604 = vlaneseq
        %v6605 = vshrl.u32 %v6604, 7
        %v6606 = vsub.s32 %v6603, %v6605
        %v6607 = vrot.slane %v6599, %v6606
        %v6609 = vunpack.c.l.s4 1934713408
        %v6610 = vunpack.c.0.s8 %v6609
        %v6611 = vlaneseq
        %v6612 = vshrl.u32 %v6611, 7
        %v6613 = vsub.s32 %v6610, %v6612
        %v6614 = vrot.slane %v6600, %v6613
        %v6615 = vcombine.high %v6591, 0
        %v6616 = vcombine.high %v6598, 0
        %v6617 = vcombine.high %v6607, 0
        %v6618 = vcombine.high %v6614, 0
        %v6619 = vcombine.high %v6411, %v3702
        %v6621 = vunpack.c.l.s4 1983009808
        %v6622 = vunpack.c.0.s8 %v6621
        %v6623 = vlaneseq
        %v6624 = vshrl.u32 %v6623, 7
        %v6625 = vsub.s32 %v6622, %v6624
        %v6626 = vrot.slane %v6411, %v6625
        %v6628 = vunpack.c.l.s4 1983009808
        %v6629 = vunpack.c.0.s8 %v6628
        %v6630 = vlaneseq
        %v6631 = vshrl.u32 %v6630, 7
        %v6632 = vsub.s32 %v6629, %v6631
        %v6633 = vrot.slane %v6619, %v6632
        %v6634 = vcombine.high %v6419, %v3702
        %v6636 = vunpack.c.l.s4 1983009808
        %v6637 = vunpack.c.0.s8 %v6636
        %v6638 = vlaneseq
        %v6639 = vshrl.u32 %v6638, 7
        %v6640 = vsub.s32 %v6637, %v6639
        %v6641 = vrot.slane %v6419, %v6640
        %v6643 = vunpack.c.l.s4 1983009808
        %v6644 = vunpack.c.0.s8 %v6643
        %v6645 = vlaneseq
        %v6646 = vshrl.u32 %v6645, 7
        %v6647 = vsub.s32 %v6644, %v6646
        %v6648 = vrot.slane %v6634, %v6647
        %v6649 = vcombine.low %v6626, %v6641
        %v6650 = vcombine.high %v6626, %v6641
        %v6652 = vunpack.c.l.s4 1934713408
        %v6653 = vunpack.c.0.s8 %v6652
        %v6654 = vlaneseq
        %v6655 = vshrl.u32 %v6654, 7
        %v6656 = vsub.s32 %v6653, %v6655
        %v6657 = vrot.slane %v6649, %v6656
        %v6659 = vunpack.c.l.s4 1934713408
        %v6660 = vunpack.c.0.s8 %v6659
        %v6661 = vlaneseq
        %v6662 = vshrl.u32 %v6661, 7
        %v6663 = vsub.s32 %v6660, %v6662
        %v6664 = vrot.slane %v6650, %v6663
        %v6665 = vcombine.low %v6633, %v6648
        %v6666 = vcombine.high %v6633, %v6648
        %v6668 = vunpack.c.l.s4 1934713408
        %v6669 = vunpack.c.0.s8 %v6668
        %v6670 = vlaneseq
        %v6671 = vshrl.u32 %v6670, 7
        %v6672 = vsub.s32 %v6669, %v6671
        %v6673 = vrot.slane %v6665, %v6672
        %v6675 = vunpack.c.l.s4 1934713408
        %v6676 = vunpack.c.0.s8 %v6675
        %v6677 = vlaneseq
        %v6678 = vshrl.u32 %v6677, 7
        %v6679 = vsub.s32 %v6676, %v6678
        %v6680 = vrot.slane %v6666, %v6679
        %v6681 = vcombine.high %v6657, 0
        %v6682 = vcombine.high %v6664, 0
        %v6683 = vcombine.high %v6673, 0
        %v6684 = vcombine.high %v6680, 0
        %6686 = vrot.lane.b32.xlu0 %v6525, 32
        %v6687 = vpop.permute.xlu0 %6686
        %6689 = vrot.lane.b32.xlu0 %v6483, 64
        %v6690 = vpop.permute.xlu0 %6689
        %6692 = vrot.lane.b32.xlu0 %v6549, 96
        %v6693 = vpop.permute.xlu0 %6692
        %6695 = vrot.lane.b32.xlu0 %v6532, 32
        %v6696 = vpop.permute.xlu0 %6695
        %6698 = vrot.lane.b32.xlu0 %v6484, 64
        %v6699 = vpop.permute.xlu0 %6698
        %6701 = vrot.lane.b32.xlu0 %v6550, 96
        %v6702 = vpop.permute.xlu0 %6701
        %6704 = vrot.lane.b32.xlu0 %v6541, 32
        %v6705 = vpop.permute.xlu0 %6704
        %6707 = vrot.lane.b32.xlu0 %v6485, 64
        %v6708 = vpop.permute.xlu0 %6707
        %6710 = vrot.lane.b32.xlu0 %v6551, 96
        %v6711 = vpop.permute.xlu0 %6710
        %6713 = vrot.lane.b32.xlu0 %v6548, 32
        %v6714 = vpop.permute.xlu0 %6713
        %6716 = vrot.lane.b32.xlu0 %v6486, 64
        %v6717 = vpop.permute.xlu0 %6716
        %6719 = vrot.lane.b32.xlu0 %v6552, 96
        %v6720 = vpop.permute.xlu0 %6719
        %6722 = vrot.lane.b32.xlu0 %v6657, 32
        %v6723 = vpop.permute.xlu0 %6722
        %6725 = vrot.lane.b32.xlu0 %v6615, 64
        %v6726 = vpop.permute.xlu0 %6725
        %6728 = vrot.lane.b32.xlu0 %v6681, 96
        %v6729 = vpop.permute.xlu0 %6728
        %6731 = vrot.lane.b32.xlu0 %v6664, 32
        %v6732 = vpop.permute.xlu0 %6731
        %6734 = vrot.lane.b32.xlu0 %v6616, 64
        %v6735 = vpop.permute.xlu0 %6734
        %6737 = vrot.lane.b32.xlu0 %v6682, 96
        %v6738 = vpop.permute.xlu0 %6737
        %6740 = vrot.lane.b32.xlu0 %v6673, 32
        %v6741 = vpop.permute.xlu0 %6740
        %6743 = vrot.lane.b32.xlu0 %v6617, 64
        %v6744 = vpop.permute.xlu0 %6743
        %6746 = vrot.lane.b32.xlu0 %v6683, 96
        %v6747 = vpop.permute.xlu0 %6746
        %6749 = vrot.lane.b32.xlu0 %v6680, 32
        %v6750 = vpop.permute.xlu0 %6749
        %6752 = vrot.lane.b32.xlu0 %v6618, 64
        %v6753 = vpop.permute.xlu0 %6752
        %6755 = vrot.lane.b32.xlu0 %v6684, 96
        %v6756 = vpop.permute.xlu0 %6755
        %v6759 = vsel %vm4052, %v6459, %v6687
        %v6761 = vsel %vm4056, %v6759, %v6690
        %v6763 = vsel %vm4059, %v6761, %v6693
        %v6766 = vsel %vm4052, %v6466, %v6696
        %v6768 = vsel %vm4056, %v6766, %v6699
        %v6770 = vsel %vm4059, %v6768, %v6702
        %v6773 = vsel %vm4052, %v6475, %v6705
        %v6775 = vsel %vm4056, %v6773, %v6708
        %v6777 = vsel %vm4059, %v6775, %v6711
        %v6780 = vsel %vm4052, %v6482, %v6714
        %v6782 = vsel %vm4056, %v6780, %v6717
        %v6784 = vsel %vm4059, %v6782, %v6720
        %v6787 = vsel %vm4052, %v6591, %v6723
        %v6789 = vsel %vm4056, %v6787, %v6726
        %v6791 = vsel %vm4059, %v6789, %v6729
        %v6794 = vsel %vm4052, %v6598, %v6732
        %v6796 = vsel %vm4056, %v6794, %v6735
        %v6798 = vsel %vm4059, %v6796, %v6738
        %v6801 = vsel %vm4052, %v6607, %v6741
        %v6803 = vsel %vm4056, %v6801, %v6744
        %v6805 = vsel %vm4059, %v6803, %v6747
        %v6808 = vsel %vm4052, %v6614, %v6750
        %v6810 = vsel %vm4056, %v6808, %v6753
        %v6812 = vsel %vm4059, %v6810, %v6756
        %6813 = vrot.lane.b32.xlu0 %v6371, 127
        %v6814 = vpop.permute.xlu0 %6813
        %6815 = vrot.lane.b32.xlu0 %v6373, 127
        %v6816 = vpop.permute.xlu0 %6815
        %6817 = vrot.lane.b32.xlu0 %v6376, 127
        %v6818 = vpop.permute.xlu0 %6817
        %6819 = vrot.lane.b32.xlu0 %v6378, 127
        %v6820 = vpop.permute.xlu0 %6819
        %6821 = vrot.lane.b32.xlu0 %v6381, 127
        %v6822 = vpop.permute.xlu0 %6821
        %6823 = vrot.lane.b32.xlu0 %v6383, 127
        %v6824 = vpop.permute.xlu0 %6823
        %6825 = vrot.lane.b32.xlu0 %v6386, 127
        %v6826 = vpop.permute.xlu0 %6825
        %6827 = vrot.lane.b32.xlu0 %v6388, 127
        %v6828 = vpop.permute.xlu0 %6827
        %v6831 = vpack.i.b16 %v6818, %v6814
        %v6833 = vshrl.u32 %v6814, 16
        %v6834 = vshrl.u32 %v6818, 16
        %v6835 = vpack.i.b16 %v6834, %v6833
        %v6839 = vpack.i.b16 %v6826, %v6822
        %v6841 = vshrl.u32 %v6822, 16
        %v6842 = vshrl.u32 %v6826, 16
        %v6843 = vpack.i.b16 %v6842, %v6841
        %v6847 = vpack.i.b16 %v6820, %v6816
        %v6849 = vshrl.u32 %v6816, 16
        %v6850 = vshrl.u32 %v6820, 16
        %v6851 = vpack.i.b16 %v6850, %v6849
        %v6855 = vpack.i.b16 %v6828, %v6824
        %v6857 = vshrl.u32 %v6824, 16
        %v6858 = vshrl.u32 %v6828, 16
        %v6859 = vpack.i.b16 %v6858, %v6857
        %v6861 = vcombine.high %v6831, %v3699
        %v6863 = vunpack.c.l.s4 1983009808
        %v6864 = vunpack.c.0.s8 %v6863
        %v6865 = vlaneseq
        %v6866 = vshrl.u32 %v6865, 7
        %v6867 = vsub.s32 %v6864, %v6866
        %v6868 = vrot.slane %v6831, %v6867
        %v6870 = vunpack.c.l.s4 1983009808
        %v6871 = vunpack.c.0.s8 %v6870
        %v6872 = vlaneseq
        %v6873 = vshrl.u32 %v6872, 7
        %v6874 = vsub.s32 %v6871, %v6873
        %v6875 = vrot.slane %v6861, %v6874
        %v6876 = vcombine.high %v6839, %v3699
        %v6878 = vunpack.c.l.s4 1983009808
        %v6879 = vunpack.c.0.s8 %v6878
        %v6880 = vlaneseq
        %v6881 = vshrl.u32 %v6880, 7
        %v6882 = vsub.s32 %v6879, %v6881
        %v6883 = vrot.slane %v6839, %v6882
        %v6885 = vunpack.c.l.s4 1983009808
        %v6886 = vunpack.c.0.s8 %v6885
        %v6887 = vlaneseq
        %v6888 = vshrl.u32 %v6887, 7
        %v6889 = vsub.s32 %v6886, %v6888
        %v6890 = vrot.slane %v6876, %v6889
        %v6891 = vcombine.low %v6868, %v6883
        %v6892 = vcombine.high %v6868, %v6883
        %v6894 = vunpack.c.l.s4 1934713408
        %v6895 = vunpack.c.0.s8 %v6894
        %v6896 = vlaneseq
        %v6897 = vshrl.u32 %v6896, 7
        %v6898 = vsub.s32 %v6895, %v6897
        %v6899 = vrot.slane %v6891, %v6898
        %v6901 = vunpack.c.l.s4 1934713408
        %v6902 = vunpack.c.0.s8 %v6901
        %v6903 = vlaneseq
        %v6904 = vshrl.u32 %v6903, 7
        %v6905 = vsub.s32 %v6902, %v6904
        %v6906 = vrot.slane %v6892, %v6905
        %v6907 = vcombine.low %v6875, %v6890
        %v6908 = vcombine.high %v6875, %v6890
        %v6910 = vunpack.c.l.s4 1934713408
        %v6911 = vunpack.c.0.s8 %v6910
        %v6912 = vlaneseq
        %v6913 = vshrl.u32 %v6912, 7
        %v6914 = vsub.s32 %v6911, %v6913
        %v6915 = vrot.slane %v6907, %v6914
        %v6917 = vunpack.c.l.s4 1934713408
        %v6918 = vunpack.c.0.s8 %v6917
        %v6919 = vlaneseq
        %v6920 = vshrl.u32 %v6919, 7
        %v6921 = vsub.s32 %v6918, %v6920
        %v6922 = vrot.slane %v6908, %v6921
        %v6923 = vcombine.high %v6899, 0
        %v6924 = vcombine.high %v6906, 0
        %v6925 = vcombine.high %v6915, 0
        %v6926 = vcombine.high %v6922, 0
        %v6927 = vcombine.high %v6835, %v3702
        %v6929 = vunpack.c.l.s4 1983009808
        %v6930 = vunpack.c.0.s8 %v6929
        %v6931 = vlaneseq
        %v6932 = vshrl.u32 %v6931, 7
        %v6933 = vsub.s32 %v6930, %v6932
        %v6934 = vrot.slane %v6835, %v6933
        %v6936 = vunpack.c.l.s4 1983009808
        %v6937 = vunpack.c.0.s8 %v6936
        %v6938 = vlaneseq
        %v6939 = vshrl.u32 %v6938, 7
        %v6940 = vsub.s32 %v6937, %v6939
        %v6941 = vrot.slane %v6927, %v6940
        %v6942 = vcombine.high %v6843, %v3702
        %v6944 = vunpack.c.l.s4 1983009808
        %v6945 = vunpack.c.0.s8 %v6944
        %v6946 = vlaneseq
        %v6947 = vshrl.u32 %v6946, 7
        %v6948 = vsub.s32 %v6945, %v6947
        %v6949 = vrot.slane %v6843, %v6948
        %v6951 = vunpack.c.l.s4 1983009808
        %v6952 = vunpack.c.0.s8 %v6951
        %v6953 = vlaneseq
        %v6954 = vshrl.u32 %v6953, 7
        %v6955 = vsub.s32 %v6952, %v6954
        %v6956 = vrot.slane %v6942, %v6955
        %v6957 = vcombine.low %v6934, %v6949
        %v6958 = vcombine.high %v6934, %v6949
        %v6960 = vunpack.c.l.s4 1934713408
        %v6961 = vunpack.c.0.s8 %v6960
        %v6962 = vlaneseq
        %v6963 = vshrl.u32 %v6962, 7
        %v6964 = vsub.s32 %v6961, %v6963
        %v6965 = vrot.slane %v6957, %v6964
        %v6967 = vunpack.c.l.s4 1934713408
        %v6968 = vunpack.c.0.s8 %v6967
        %v6969 = vlaneseq
        %v6970 = vshrl.u32 %v6969, 7
        %v6971 = vsub.s32 %v6968, %v6970
        %v6972 = vrot.slane %v6958, %v6971
        %v6973 = vcombine.low %v6941, %v6956
        %v6974 = vcombine.high %v6941, %v6956
        %v6976 = vunpack.c.l.s4 1934713408
        %v6977 = vunpack.c.0.s8 %v6976
        %v6978 = vlaneseq
        %v6979 = vshrl.u32 %v6978, 7
        %v6980 = vsub.s32 %v6977, %v6979
        %v6981 = vrot.slane %v6973, %v6980
        %v6983 = vunpack.c.l.s4 1934713408
        %v6984 = vunpack.c.0.s8 %v6983
        %v6985 = vlaneseq
        %v6986 = vshrl.u32 %v6985, 7
        %v6987 = vsub.s32 %v6984, %v6986
        %v6988 = vrot.slane %v6974, %v6987
        %v6989 = vcombine.high %v6965, 0
        %v6990 = vcombine.high %v6972, 0
        %v6991 = vcombine.high %v6981, 0
        %v6992 = vcombine.high %v6988, 0
        %v6993 = vcombine.high %v6847, %v3699
        %v6995 = vunpack.c.l.s4 1983009808
        %v6996 = vunpack.c.0.s8 %v6995
        %v6997 = vlaneseq
        %v6998 = vshrl.u32 %v6997, 7
        %v6999 = vsub.s32 %v6996, %v6998
        %v7000 = vrot.slane %v6847, %v6999
        %v7002 = vunpack.c.l.s4 1983009808
        %v7003 = vunpack.c.0.s8 %v7002
        %v7004 = vlaneseq
        %v7005 = vshrl.u32 %v7004, 7
        %v7006 = vsub.s32 %v7003, %v7005
        %v7007 = vrot.slane %v6993, %v7006
        %v7008 = vcombine.high %v6855, %v3699
        %v7010 = vunpack.c.l.s4 1983009808
        %v7011 = vunpack.c.0.s8 %v7010
        %v7012 = vlaneseq
        %v7013 = vshrl.u32 %v7012, 7
        %v7014 = vsub.s32 %v7011, %v7013
        %v7015 = vrot.slane %v6855, %v7014
        %v7017 = vunpack.c.l.s4 1983009808
        %v7018 = vunpack.c.0.s8 %v7017
        %v7019 = vlaneseq
        %v7020 = vshrl.u32 %v7019, 7
        %v7021 = vsub.s32 %v7018, %v7020
        %v7022 = vrot.slane %v7008, %v7021
        %v7023 = vcombine.low %v7000, %v7015
        %v7024 = vcombine.high %v7000, %v7015
        %v7026 = vunpack.c.l.s4 1934713408
        %v7027 = vunpack.c.0.s8 %v7026
        %v7028 = vlaneseq
        %v7029 = vshrl.u32 %v7028, 7
        %v7030 = vsub.s32 %v7027, %v7029
        %v7031 = vrot.slane %v7023, %v7030
        %v7033 = vunpack.c.l.s4 1934713408
        %v7034 = vunpack.c.0.s8 %v7033
        %v7035 = vlaneseq
        %v7036 = vshrl.u32 %v7035, 7
        %v7037 = vsub.s32 %v7034, %v7036
        %v7038 = vrot.slane %v7024, %v7037
        %v7039 = vcombine.low %v7007, %v7022
        %v7040 = vcombine.high %v7007, %v7022
        %v7042 = vunpack.c.l.s4 1934713408
        %v7043 = vunpack.c.0.s8 %v7042
        %v7044 = vlaneseq
        %v7045 = vshrl.u32 %v7044, 7
        %v7046 = vsub.s32 %v7043, %v7045
        %v7047 = vrot.slane %v7039, %v7046
        %v7049 = vunpack.c.l.s4 1934713408
        %v7050 = vunpack.c.0.s8 %v7049
        %v7051 = vlaneseq
        %v7052 = vshrl.u32 %v7051, 7
        %v7053 = vsub.s32 %v7050, %v7052
        %v7054 = vrot.slane %v7040, %v7053
        %v7055 = vcombine.high %v7031, 0
        %v7056 = vcombine.high %v7038, 0
        %v7057 = vcombine.high %v7047, 0
        %v7058 = vcombine.high %v7054, 0
        %v7059 = vcombine.high %v6851, %v3702
        %v7061 = vunpack.c.l.s4 1983009808
        %v7062 = vunpack.c.0.s8 %v7061
        %v7063 = vlaneseq
        %v7064 = vshrl.u32 %v7063, 7
        %v7065 = vsub.s32 %v7062, %v7064
        %v7066 = vrot.slane %v6851, %v7065
        %v7068 = vunpack.c.l.s4 1983009808
        %v7069 = vunpack.c.0.s8 %v7068
        %v7070 = vlaneseq
        %v7071 = vshrl.u32 %v7070, 7
        %v7072 = vsub.s32 %v7069, %v7071
        %v7073 = vrot.slane %v7059, %v7072
        %v7074 = vcombine.high %v6859, %v3702
        %v7076 = vunpack.c.l.s4 1983009808
        %v7077 = vunpack.c.0.s8 %v7076
        %v7078 = vlaneseq
        %v7079 = vshrl.u32 %v7078, 7
        %v7080 = vsub.s32 %v7077, %v7079
        %v7081 = vrot.slane %v6859, %v7080
        %v7083 = vunpack.c.l.s4 1983009808
        %v7084 = vunpack.c.0.s8 %v7083
        %v7085 = vlaneseq
        %v7086 = vshrl.u32 %v7085, 7
        %v7087 = vsub.s32 %v7084, %v7086
        %v7088 = vrot.slane %v7074, %v7087
        %v7089 = vcombine.low %v7066, %v7081
        %v7090 = vcombine.high %v7066, %v7081
        %v7092 = vunpack.c.l.s4 1934713408
        %v7093 = vunpack.c.0.s8 %v7092
        %v7094 = vlaneseq
        %v7095 = vshrl.u32 %v7094, 7
        %v7096 = vsub.s32 %v7093, %v7095
        %v7097 = vrot.slane %v7089, %v7096
        %v7099 = vunpack.c.l.s4 1934713408
        %v7100 = vunpack.c.0.s8 %v7099
        %v7101 = vlaneseq
        %v7102 = vshrl.u32 %v7101, 7
        %v7103 = vsub.s32 %v7100, %v7102
        %v7104 = vrot.slane %v7090, %v7103
        %v7105 = vcombine.low %v7073, %v7088
        %v7106 = vcombine.high %v7073, %v7088
        %v7108 = vunpack.c.l.s4 1934713408
        %v7109 = vunpack.c.0.s8 %v7108
        %v7110 = vlaneseq
        %v7111 = vshrl.u32 %v7110, 7
        %v7112 = vsub.s32 %v7109, %v7111
        %v7113 = vrot.slane %v7105, %v7112
        %v7115 = vunpack.c.l.s4 1934713408
        %v7116 = vunpack.c.0.s8 %v7115
        %v7117 = vlaneseq
        %v7118 = vshrl.u32 %v7117, 7
        %v7119 = vsub.s32 %v7116, %v7118
        %v7120 = vrot.slane %v7106, %v7119
        %v7121 = vcombine.high %v7097, 0
        %v7122 = vcombine.high %v7104, 0
        %v7123 = vcombine.high %v7113, 0
        %v7124 = vcombine.high %v7120, 0
        %7126 = vrot.lane.b32.xlu0 %v6965, 32
        %v7127 = vpop.permute.xlu0 %7126
        %7129 = vrot.lane.b32.xlu0 %v6923, 64
        %v7130 = vpop.permute.xlu0 %7129
        %7132 = vrot.lane.b32.xlu0 %v6989, 96
        %v7133 = vpop.permute.xlu0 %7132
        %7135 = vrot.lane.b32.xlu0 %v6972, 32
        %v7136 = vpop.permute.xlu0 %7135
        %7138 = vrot.lane.b32.xlu0 %v6924, 64
        %v7139 = vpop.permute.xlu0 %7138
        %7141 = vrot.lane.b32.xlu0 %v6990, 96
        %v7142 = vpop.permute.xlu0 %7141
        %7144 = vrot.lane.b32.xlu0 %v6981, 32
        %v7145 = vpop.permute.xlu0 %7144
        %7147 = vrot.lane.b32.xlu0 %v6925, 64
        %v7148 = vpop.permute.xlu0 %7147
        %7150 = vrot.lane.b32.xlu0 %v6991, 96
        %v7151 = vpop.permute.xlu0 %7150
        %7153 = vrot.lane.b32.xlu0 %v6988, 32
        %v7154 = vpop.permute.xlu0 %7153
        %7156 = vrot.lane.b32.xlu0 %v6926, 64
        %v7157 = vpop.permute.xlu0 %7156
        %7159 = vrot.lane.b32.xlu0 %v6992, 96
        %v7160 = vpop.permute.xlu0 %7159
        %7162 = vrot.lane.b32.xlu0 %v7097, 32
        %v7163 = vpop.permute.xlu0 %7162
        %7165 = vrot.lane.b32.xlu0 %v7055, 64
        %v7166 = vpop.permute.xlu0 %7165
        %7168 = vrot.lane.b32.xlu0 %v7121, 96
        %v7169 = vpop.permute.xlu0 %7168
        %7171 = vrot.lane.b32.xlu0 %v7104, 32
        %v7172 = vpop.permute.xlu0 %7171
        %7174 = vrot.lane.b32.xlu0 %v7056, 64
        %v7175 = vpop.permute.xlu0 %7174
        %7177 = vrot.lane.b32.xlu0 %v7122, 96
        %v7178 = vpop.permute.xlu0 %7177
        %7180 = vrot.lane.b32.xlu0 %v7113, 32
        %v7181 = vpop.permute.xlu0 %7180
        %7183 = vrot.lane.b32.xlu0 %v7057, 64
        %v7184 = vpop.permute.xlu0 %7183
        %7186 = vrot.lane.b32.xlu0 %v7123, 96
        %v7187 = vpop.permute.xlu0 %7186
        %7189 = vrot.lane.b32.xlu0 %v7120, 32
        %v7190 = vpop.permute.xlu0 %7189
        %7192 = vrot.lane.b32.xlu0 %v7058, 64
        %v7193 = vpop.permute.xlu0 %7192
        %7195 = vrot.lane.b32.xlu0 %v7124, 96
        %v7196 = vpop.permute.xlu0 %7195
        %v7199 = vsel %vm4052, %v6899, %v7127
        %v7201 = vsel %vm4056, %v7199, %v7130
        %v7203 = vsel %vm4059, %v7201, %v7133
        %v7206 = vsel %vm4052, %v6906, %v7136
        %v7208 = vsel %vm4056, %v7206, %v7139
        %v7210 = vsel %vm4059, %v7208, %v7142
        %v7213 = vsel %vm4052, %v6915, %v7145
        %v7215 = vsel %vm4056, %v7213, %v7148
        %v7217 = vsel %vm4059, %v7215, %v7151
        %v7220 = vsel %vm4052, %v6922, %v7154
        %v7222 = vsel %vm4056, %v7220, %v7157
        %v7224 = vsel %vm4059, %v7222, %v7160
        %v7227 = vsel %vm4052, %v7031, %v7163
        %v7229 = vsel %vm4056, %v7227, %v7166
        %v7231 = vsel %vm4059, %v7229, %v7169
        %v7234 = vsel %vm4052, %v7038, %v7172
        %v7236 = vsel %vm4056, %v7234, %v7175
        %v7238 = vsel %vm4059, %v7236, %v7178
        %v7241 = vsel %vm4052, %v7047, %v7181
        %v7243 = vsel %vm4056, %v7241, %v7184
        %v7245 = vsel %vm4059, %v7243, %v7187
        %v7248 = vsel %vm4052, %v7054, %v7190
        %v7250 = vsel %vm4056, %v7248, %v7193
        %v7252 = vsel %vm4059, %v7250, %v7196
        %7253 = vrot.lane.b32.xlu0 %v6371, 126
        %v7254 = vpop.permute.xlu0 %7253
        %7255 = vrot.lane.b32.xlu0 %v6373, 126
        %v7256 = vpop.permute.xlu0 %7255
        %7257 = vrot.lane.b32.xlu0 %v6376, 126
        %v7258 = vpop.permute.xlu0 %7257
        %7259 = vrot.lane.b32.xlu0 %v6378, 126
        %v7260 = vpop.permute.xlu0 %7259
        %7261 = vrot.lane.b32.xlu0 %v6381, 126
        %v7262 = vpop.permute.xlu0 %7261
        %7263 = vrot.lane.b32.xlu0 %v6383, 126
        %v7264 = vpop.permute.xlu0 %7263
        %7265 = vrot.lane.b32.xlu0 %v6386, 126
        %v7266 = vpop.permute.xlu0 %7265
        %7267 = vrot.lane.b32.xlu0 %v6388, 126
        %v7268 = vpop.permute.xlu0 %7267
        %v7271 = vpack.i.b16 %v7258, %v7254
        %v7273 = vshrl.u32 %v7254, 16
        %v7274 = vshrl.u32 %v7258, 16
        %v7275 = vpack.i.b16 %v7274, %v7273
        %v7279 = vpack.i.b16 %v7266, %v7262
        %v7281 = vshrl.u32 %v7262, 16
        %v7282 = vshrl.u32 %v7266, 16
        %v7283 = vpack.i.b16 %v7282, %v7281
        %v7287 = vpack.i.b16 %v7260, %v7256
        %v7289 = vshrl.u32 %v7256, 16
        %v7290 = vshrl.u32 %v7260, 16
        %v7291 = vpack.i.b16 %v7290, %v7289
        %v7295 = vpack.i.b16 %v7268, %v7264
        %v7297 = vshrl.u32 %v7264, 16
        %v7298 = vshrl.u32 %v7268, 16
        %v7299 = vpack.i.b16 %v7298, %v7297
        %v7301 = vcombine.high %v7271, %v3699
        %v7303 = vunpack.c.l.s4 1983009808
        %v7304 = vunpack.c.0.s8 %v7303
        %v7305 = vlaneseq
        %v7306 = vshrl.u32 %v7305, 7
        %v7307 = vsub.s32 %v7304, %v7306
        %v7308 = vrot.slane %v7271, %v7307
        %v7310 = vunpack.c.l.s4 1983009808
        %v7311 = vunpack.c.0.s8 %v7310
        %v7312 = vlaneseq
        %v7313 = vshrl.u32 %v7312, 7
        %v7314 = vsub.s32 %v7311, %v7313
        %v7315 = vrot.slane %v7301, %v7314
        %v7316 = vcombine.high %v7279, %v3699
        %v7318 = vunpack.c.l.s4 1983009808
        %v7319 = vunpack.c.0.s8 %v7318
        %v7320 = vlaneseq
        %v7321 = vshrl.u32 %v7320, 7
        %v7322 = vsub.s32 %v7319, %v7321
        %v7323 = vrot.slane %v7279, %v7322
        %v7325 = vunpack.c.l.s4 1983009808
        %v7326 = vunpack.c.0.s8 %v7325
        %v7327 = vlaneseq
        %v7328 = vshrl.u32 %v7327, 7
        %v7329 = vsub.s32 %v7326, %v7328
        %v7330 = vrot.slane %v7316, %v7329
        %v7331 = vcombine.low %v7308, %v7323
        %v7332 = vcombine.high %v7308, %v7323
        %v7334 = vunpack.c.l.s4 1934713408
        %v7335 = vunpack.c.0.s8 %v7334
        %v7336 = vlaneseq
        %v7337 = vshrl.u32 %v7336, 7
        %v7338 = vsub.s32 %v7335, %v7337
        %v7339 = vrot.slane %v7331, %v7338
        %v7341 = vunpack.c.l.s4 1934713408
        %v7342 = vunpack.c.0.s8 %v7341
        %v7343 = vlaneseq
        %v7344 = vshrl.u32 %v7343, 7
        %v7345 = vsub.s32 %v7342, %v7344
        %v7346 = vrot.slane %v7332, %v7345
        %v7347 = vcombine.low %v7315, %v7330
        %v7348 = vcombine.high %v7315, %v7330
        %v7350 = vunpack.c.l.s4 1934713408
        %v7351 = vunpack.c.0.s8 %v7350
        %v7352 = vlaneseq
        %v7353 = vshrl.u32 %v7352, 7
        %v7354 = vsub.s32 %v7351, %v7353
        %v7355 = vrot.slane %v7347, %v7354
        %v7357 = vunpack.c.l.s4 1934713408
        %v7358 = vunpack.c.0.s8 %v7357
        %v7359 = vlaneseq
        %v7360 = vshrl.u32 %v7359, 7
        %v7361 = vsub.s32 %v7358, %v7360
        %v7362 = vrot.slane %v7348, %v7361
        %v7363 = vcombine.high %v7339, 0
        %v7364 = vcombine.high %v7346, 0
        %v7365 = vcombine.high %v7355, 0
        %v7366 = vcombine.high %v7362, 0
        %v7367 = vcombine.high %v7275, %v3702
        %v7369 = vunpack.c.l.s4 1983009808
        %v7370 = vunpack.c.0.s8 %v7369
        %v7371 = vlaneseq
        %v7372 = vshrl.u32 %v7371, 7
        %v7373 = vsub.s32 %v7370, %v7372
        %v7374 = vrot.slane %v7275, %v7373
        %v7376 = vunpack.c.l.s4 1983009808
        %v7377 = vunpack.c.0.s8 %v7376
        %v7378 = vlaneseq
        %v7379 = vshrl.u32 %v7378, 7
        %v7380 = vsub.s32 %v7377, %v7379
        %v7381 = vrot.slane %v7367, %v7380
        %v7382 = vcombine.high %v7283, %v3702
        %v7384 = vunpack.c.l.s4 1983009808
        %v7385 = vunpack.c.0.s8 %v7384
        %v7386 = vlaneseq
        %v7387 = vshrl.u32 %v7386, 7
        %v7388 = vsub.s32 %v7385, %v7387
        %v7389 = vrot.slane %v7283, %v7388
        %v7391 = vunpack.c.l.s4 1983009808
        %v7392 = vunpack.c.0.s8 %v7391
        %v7393 = vlaneseq
        %v7394 = vshrl.u32 %v7393, 7
        %v7395 = vsub.s32 %v7392, %v7394
        %v7396 = vrot.slane %v7382, %v7395
        %v7397 = vcombine.low %v7374, %v7389
        %v7398 = vcombine.high %v7374, %v7389
        %v7400 = vunpack.c.l.s4 1934713408
        %v7401 = vunpack.c.0.s8 %v7400
        %v7402 = vlaneseq
        %v7403 = vshrl.u32 %v7402, 7
        %v7404 = vsub.s32 %v7401, %v7403
        %v7405 = vrot.slane %v7397, %v7404
        %v7407 = vunpack.c.l.s4 1934713408
        %v7408 = vunpack.c.0.s8 %v7407
        %v7409 = vlaneseq
        %v7410 = vshrl.u32 %v7409, 7
        %v7411 = vsub.s32 %v7408, %v7410
        %v7412 = vrot.slane %v7398, %v7411
        %v7413 = vcombine.low %v7381, %v7396
        %v7414 = vcombine.high %v7381, %v7396
        %v7416 = vunpack.c.l.s4 1934713408
        %v7417 = vunpack.c.0.s8 %v7416
        %v7418 = vlaneseq
        %v7419 = vshrl.u32 %v7418, 7
        %v7420 = vsub.s32 %v7417, %v7419
        %v7421 = vrot.slane %v7413, %v7420
        %v7423 = vunpack.c.l.s4 1934713408
        %v7424 = vunpack.c.0.s8 %v7423
        %v7425 = vlaneseq
        %v7426 = vshrl.u32 %v7425, 7
        %v7427 = vsub.s32 %v7424, %v7426
        %v7428 = vrot.slane %v7414, %v7427
        %v7429 = vcombine.high %v7405, 0
        %v7430 = vcombine.high %v7412, 0
        %v7431 = vcombine.high %v7421, 0
        %v7432 = vcombine.high %v7428, 0
        %v7433 = vcombine.high %v7287, %v3699
        %v7435 = vunpack.c.l.s4 1983009808
        %v7436 = vunpack.c.0.s8 %v7435
        %v7437 = vlaneseq
        %v7438 = vshrl.u32 %v7437, 7
        %v7439 = vsub.s32 %v7436, %v7438
        %v7440 = vrot.slane %v7287, %v7439
        %v7442 = vunpack.c.l.s4 1983009808
        %v7443 = vunpack.c.0.s8 %v7442
        %v7444 = vlaneseq
        %v7445 = vshrl.u32 %v7444, 7
        %v7446 = vsub.s32 %v7443, %v7445
        %v7447 = vrot.slane %v7433, %v7446
        %v7448 = vcombine.high %v7295, %v3699
        %v7450 = vunpack.c.l.s4 1983009808
        %v7451 = vunpack.c.0.s8 %v7450
        %v7452 = vlaneseq
        %v7453 = vshrl.u32 %v7452, 7
        %v7454 = vsub.s32 %v7451, %v7453
        %v7455 = vrot.slane %v7295, %v7454
        %v7457 = vunpack.c.l.s4 1983009808
        %v7458 = vunpack.c.0.s8 %v7457
        %v7459 = vlaneseq
        %v7460 = vshrl.u32 %v7459, 7
        %v7461 = vsub.s32 %v7458, %v7460
        %v7462 = vrot.slane %v7448, %v7461
        %v7463 = vcombine.low %v7440, %v7455
        %v7464 = vcombine.high %v7440, %v7455
        %v7466 = vunpack.c.l.s4 1934713408
        %v7467 = vunpack.c.0.s8 %v7466
        %v7468 = vlaneseq
        %v7469 = vshrl.u32 %v7468, 7
        %v7470 = vsub.s32 %v7467, %v7469
        %v7471 = vrot.slane %v7463, %v7470
        %v7473 = vunpack.c.l.s4 1934713408
        %v7474 = vunpack.c.0.s8 %v7473
        %v7475 = vlaneseq
        %v7476 = vshrl.u32 %v7475, 7
        %v7477 = vsub.s32 %v7474, %v7476
        %v7478 = vrot.slane %v7464, %v7477
        %v7479 = vcombine.low %v7447, %v7462
        %v7480 = vcombine.high %v7447, %v7462
        %v7482 = vunpack.c.l.s4 1934713408
        %v7483 = vunpack.c.0.s8 %v7482
        %v7484 = vlaneseq
        %v7485 = vshrl.u32 %v7484, 7
        %v7486 = vsub.s32 %v7483, %v7485
        %v7487 = vrot.slane %v7479, %v7486
        %v7489 = vunpack.c.l.s4 1934713408
        %v7490 = vunpack.c.0.s8 %v7489
        %v7491 = vlaneseq
        %v7492 = vshrl.u32 %v7491, 7
        %v7493 = vsub.s32 %v7490, %v7492
        %v7494 = vrot.slane %v7480, %v7493
        %v7495 = vcombine.high %v7471, 0
        %v7496 = vcombine.high %v7478, 0
        %v7497 = vcombine.high %v7487, 0
        %v7498 = vcombine.high %v7494, 0
        %v7499 = vcombine.high %v7291, %v3702
        %v7501 = vunpack.c.l.s4 1983009808
        %v7502 = vunpack.c.0.s8 %v7501
        %v7503 = vlaneseq
        %v7504 = vshrl.u32 %v7503, 7
        %v7505 = vsub.s32 %v7502, %v7504
        %v7506 = vrot.slane %v7291, %v7505
        %v7508 = vunpack.c.l.s4 1983009808
        %v7509 = vunpack.c.0.s8 %v7508
        %v7510 = vlaneseq
        %v7511 = vshrl.u32 %v7510, 7
        %v7512 = vsub.s32 %v7509, %v7511
        %v7513 = vrot.slane %v7499, %v7512
        %v7514 = vcombine.high %v7299, %v3702
        %v7516 = vunpack.c.l.s4 1983009808
        %v7517 = vunpack.c.0.s8 %v7516
        %v7518 = vlaneseq
        %v7519 = vshrl.u32 %v7518, 7
        %v7520 = vsub.s32 %v7517, %v7519
        %v7521 = vrot.slane %v7299, %v7520
        %v7523 = vunpack.c.l.s4 1983009808
        %v7524 = vunpack.c.0.s8 %v7523
        %v7525 = vlaneseq
        %v7526 = vshrl.u32 %v7525, 7
        %v7527 = vsub.s32 %v7524, %v7526
        %v7528 = vrot.slane %v7514, %v7527
        %v7529 = vcombine.low %v7506, %v7521
        %v7530 = vcombine.high %v7506, %v7521
        %v7532 = vunpack.c.l.s4 1934713408
        %v7533 = vunpack.c.0.s8 %v7532
        %v7534 = vlaneseq
        %v7535 = vshrl.u32 %v7534, 7
        %v7536 = vsub.s32 %v7533, %v7535
        %v7537 = vrot.slane %v7529, %v7536
        %v7539 = vunpack.c.l.s4 1934713408
        %v7540 = vunpack.c.0.s8 %v7539
        %v7541 = vlaneseq
        %v7542 = vshrl.u32 %v7541, 7
        %v7543 = vsub.s32 %v7540, %v7542
        %v7544 = vrot.slane %v7530, %v7543
        %v7545 = vcombine.low %v7513, %v7528
        %v7546 = vcombine.high %v7513, %v7528
        %v7548 = vunpack.c.l.s4 1934713408
        %v7549 = vunpack.c.0.s8 %v7548
        %v7550 = vlaneseq
        %v7551 = vshrl.u32 %v7550, 7
        %v7552 = vsub.s32 %v7549, %v7551
        %v7553 = vrot.slane %v7545, %v7552
        %v7555 = vunpack.c.l.s4 1934713408
        %v7556 = vunpack.c.0.s8 %v7555
        %v7557 = vlaneseq
        %v7558 = vshrl.u32 %v7557, 7
        %v7559 = vsub.s32 %v7556, %v7558
        %v7560 = vrot.slane %v7546, %v7559
        %v7561 = vcombine.high %v7537, 0
        %v7562 = vcombine.high %v7544, 0
        %v7563 = vcombine.high %v7553, 0
        %v7564 = vcombine.high %v7560, 0
        %7566 = vrot.lane.b32.xlu0 %v7405, 32
        %v7567 = vpop.permute.xlu0 %7566
        %7569 = vrot.lane.b32.xlu0 %v7363, 64
        %v7570 = vpop.permute.xlu0 %7569
        %7572 = vrot.lane.b32.xlu0 %v7429, 96
        %v7573 = vpop.permute.xlu0 %7572
        %7575 = vrot.lane.b32.xlu0 %v7412, 32
        %v7576 = vpop.permute.xlu0 %7575
        %7578 = vrot.lane.b32.xlu0 %v7364, 64
        %v7579 = vpop.permute.xlu0 %7578
        %7581 = vrot.lane.b32.xlu0 %v7430, 96
        %v7582 = vpop.permute.xlu0 %7581
        %7584 = vrot.lane.b32.xlu0 %v7421, 32
        %v7585 = vpop.permute.xlu0 %7584
        %7587 = vrot.lane.b32.xlu0 %v7365, 64
        %v7588 = vpop.permute.xlu0 %7587
        %7590 = vrot.lane.b32.xlu0 %v7431, 96
        %v7591 = vpop.permute.xlu0 %7590
        %7593 = vrot.lane.b32.xlu0 %v7428, 32
        %v7594 = vpop.permute.xlu0 %7593
        %7596 = vrot.lane.b32.xlu0 %v7366, 64
        %v7597 = vpop.permute.xlu0 %7596
        %7599 = vrot.lane.b32.xlu0 %v7432, 96
        %v7600 = vpop.permute.xlu0 %7599
        %7602 = vrot.lane.b32.xlu0 %v7537, 32
        %v7603 = vpop.permute.xlu0 %7602
        %7605 = vrot.lane.b32.xlu0 %v7495, 64
        %v7606 = vpop.permute.xlu0 %7605
        %7608 = vrot.lane.b32.xlu0 %v7561, 96
        %v7609 = vpop.permute.xlu0 %7608
        %7611 = vrot.lane.b32.xlu0 %v7544, 32
        %v7612 = vpop.permute.xlu0 %7611
        %7614 = vrot.lane.b32.xlu0 %v7496, 64
        %v7615 = vpop.permute.xlu0 %7614
        %7617 = vrot.lane.b32.xlu0 %v7562, 96
        %v7618 = vpop.permute.xlu0 %7617
        %7620 = vrot.lane.b32.xlu0 %v7553, 32
        %v7621 = vpop.permute.xlu0 %7620
        %7623 = vrot.lane.b32.xlu0 %v7497, 64
        %v7624 = vpop.permute.xlu0 %7623
        %7626 = vrot.lane.b32.xlu0 %v7563, 96
        %v7627 = vpop.permute.xlu0 %7626
        %7629 = vrot.lane.b32.xlu0 %v7560, 32
        %v7630 = vpop.permute.xlu0 %7629
        %7632 = vrot.lane.b32.xlu0 %v7498, 64
        %v7633 = vpop.permute.xlu0 %7632
        %7635 = vrot.lane.b32.xlu0 %v7564, 96
        %v7636 = vpop.permute.xlu0 %7635
        %v7639 = vsel %vm4052, %v7339, %v7567
        %v7641 = vsel %vm4056, %v7639, %v7570
        %v7643 = vsel %vm4059, %v7641, %v7573
        %v7646 = vsel %vm4052, %v7346, %v7576
        %v7648 = vsel %vm4056, %v7646, %v7579
        %v7650 = vsel %vm4059, %v7648, %v7582
        %v7653 = vsel %vm4052, %v7355, %v7585
        %v7655 = vsel %vm4056, %v7653, %v7588
        %v7657 = vsel %vm4059, %v7655, %v7591
        %v7660 = vsel %vm4052, %v7362, %v7594
        %v7662 = vsel %vm4056, %v7660, %v7597
        %v7664 = vsel %vm4059, %v7662, %v7600
        %v7667 = vsel %vm4052, %v7471, %v7603
        %v7669 = vsel %vm4056, %v7667, %v7606
        %v7671 = vsel %vm4059, %v7669, %v7609
        %v7674 = vsel %vm4052, %v7478, %v7612
        %v7676 = vsel %vm4056, %v7674, %v7615
        %v7678 = vsel %vm4059, %v7676, %v7618
        %v7681 = vsel %vm4052, %v7487, %v7621
        %v7683 = vsel %vm4056, %v7681, %v7624
        %v7685 = vsel %vm4059, %v7683, %v7627
        %v7688 = vsel %vm4052, %v7494, %v7630
        %v7690 = vsel %vm4056, %v7688, %v7633
        %v7692 = vsel %vm4059, %v7690, %v7636
        %v7701 = vrot.slane %v4509, 6
        %v7702 = vrot.slane %v4516, 6
        %v7703 = vrot.slane %v4523, 6
        %v7704 = vrot.slane %v4530, 6
        %v7705 = vrot.slane %v4537, 6
        %v7706 = vrot.slane %v4544, 6
        %v7707 = vrot.slane %v4551, 6
        %v7708 = vrot.slane %v4558, 6
        %v7717 = vrot.slane %v4949, 4
        %v7718 = vrot.slane %v4956, 4
        %v7719 = vrot.slane %v4963, 4
        %v7720 = vrot.slane %v4970, 4
        %v7721 = vrot.slane %v4977, 4
        %v7722 = vrot.slane %v4984, 4
        %v7723 = vrot.slane %v4991, 4
        %v7724 = vrot.slane %v4998, 4
        %v7733 = vrot.slane %v5434, 2
        %v7734 = vrot.slane %v5441, 2
        %v7735 = vrot.slane %v5448, 2
        %v7736 = vrot.slane %v5455, 2
        %v7737 = vrot.slane %v5462, 2
        %v7738 = vrot.slane %v5469, 2
        %v7739 = vrot.slane %v5476, 2
        %v7740 = vrot.slane %v5483, 2
        %v7749 = vrot.slane %v6314, 6
        %v7750 = vrot.slane %v6321, 6
        %v7751 = vrot.slane %v6328, 6
        %v7752 = vrot.slane %v6335, 6
        %v7753 = vrot.slane %v6342, 6
        %v7754 = vrot.slane %v6349, 6
        %v7755 = vrot.slane %v6356, 6
        %v7756 = vrot.slane %v6363, 6
        %v7765 = vrot.slane %v6763, 4
        %v7766 = vrot.slane %v6770, 4
        %v7767 = vrot.slane %v6777, 4
        %v7768 = vrot.slane %v6784, 4
        %v7769 = vrot.slane %v6791, 4
        %v7770 = vrot.slane %v6798, 4
        %v7771 = vrot.slane %v6805, 4
        %v7772 = vrot.slane %v6812, 4
        %v7781 = vrot.slane %v7203, 2
        %v7782 = vrot.slane %v7210, 2
        %v7783 = vrot.slane %v7217, 2
        %v7784 = vrot.slane %v7224, 2
        %v7785 = vrot.slane %v7231, 2
        %v7786 = vrot.slane %v7238, 2
        %v7787 = vrot.slane %v7245, 2
        %v7788 = vrot.slane %v7252, 2
        %vm7789 = vcmask 1041408
        %v7791 = vsel %vm7789, %v4061, %v7701
        %v7793 = vsel %vm7789, %v4068, %v7702
        %v7795 = vsel %vm7789, %v4075, %v7703
        %v7797 = vsel %vm7789, %v4082, %v7704
        %v7799 = vsel %vm7789, %v4089, %v7705
        %v7801 = vsel %vm7789, %v4096, %v7706
        %v7803 = vsel %vm7789, %v4103, %v7707
        %v7805 = vsel %vm7789, %v4110, %v7708
        %vm7806 = vcmask 1043456
        %v7808 = vsel %vm7806, %v7791, %v7717
        %v7810 = vsel %vm7806, %v7793, %v7718
        %v7812 = vsel %vm7806, %v7795, %v7719
        %v7814 = vsel %vm7806, %v7797, %v7720
        %v7816 = vsel %vm7806, %v7799, %v7721
        %v7818 = vsel %vm7806, %v7801, %v7722
        %v7820 = vsel %vm7806, %v7803, %v7723
        %v7822 = vsel %vm7806, %v7805, %v7724
        %vm7823 = vcmask 1045504
        %v7825 = vsel %vm7823, %v7808, %v7733
        %v7828 = vsel %vm7823, %v7810, %v7734
        %v7831 = vsel %vm7823, %v7812, %v7735
        %v7834 = vsel %vm7823, %v7814, %v7736
        %v7837 = vsel %vm7823, %v7816, %v7737
        %v7840 = vsel %vm7823, %v7818, %v7738
        %v7843 = vsel %vm7823, %v7820, %v7739
        %v7846 = vsel %vm7823, %v7822, %v7740
        %v7849 = vsel %vm7789, %v5874, %v7749
        %v7851 = vsel %vm7789, %v5881, %v7750
        %v7853 = vsel %vm7789, %v5888, %v7751
        %v7855 = vsel %vm7789, %v5895, %v7752
        %v7857 = vsel %vm7789, %v5902, %v7753
        %v7859 = vsel %vm7789, %v5909, %v7754
        %v7861 = vsel %vm7789, %v5916, %v7755
        %v7863 = vsel %vm7789, %v5923, %v7756
        %v7865 = vsel %vm7806, %v7849, %v7765
        %v7867 = vsel %vm7806, %v7851, %v7766
        %v7869 = vsel %vm7806, %v7853, %v7767
        %v7871 = vsel %vm7806, %v7855, %v7768
        %v7873 = vsel %vm7806, %v7857, %v7769
        %v7875 = vsel %vm7806, %v7859, %v7770
        %v7877 = vsel %vm7806, %v7861, %v7771
        %v7879 = vsel %vm7806, %v7863, %v7772
        %v7881 = vsel %vm7823, %v7865, %v7781
        %v7884 = vsel %vm7823, %v7867, %v7782
        %v7887 = vsel %vm7823, %v7869, %v7783
        %v7890 = vsel %vm7823, %v7871, %v7784
        %v7893 = vsel %vm7823, %v7873, %v7785
        %v7896 = vsel %vm7823, %v7875, %v7786
        %v7899 = vsel %vm7823, %v7877, %v7787
        %v7902 = vsel %vm7823, %v7879, %v7788
        %v7904 = vld [vmem:[%s1] sm:$0xf]
        %v7905 = vld [vmem:[%s2] sm:$0xff]
        %7907 = vset.pattern.permute.xlu0 0
        %7908 = vperm.xlu0 %7907, %v7905
        %v7909 = vpop.permute.xlu0 %7908
        %vm7911 = vcmask 293888
        %v7913 = vsel %vm7911, %v7904, 0
        %v7915 = vsel %vm7789, %v7643, 0
        %v7917 = vsel %vm7789, %v7650, 0
        %v7919 = vsel %vm7789, %v7657, 0
        %v7921 = vsel %vm7789, %v7664, 0
        %v7923 = vsel %vm7789, %v7671, 0
        %v7925 = vsel %vm7789, %v7678, 0
        %v7927 = vsel %vm7789, %v7685, 0
        %v7929 = vsel %vm7789, %v7692, 0
        %7931 = vmatprep.subr.bf16.mxu0 0
        %7932 = vmatpush1.bf16.msra.mxu0 0
        %7933 = vmatprep.subr.bf16.mxu0 0
        %7934 = vmatpush1.bf16.msra.mxu0 0
        %7935 = vmatprep.subr.bf16.mxu0 0
        %7936 = vmatpush1.bf16.msra.mxu0 0
        %7937 = vmatprep.subr.bf16.mxu0 0
        %7938 = vmatpush1.bf16.msra.mxu0 0
        %7939 = vmatprep.subr.bf16.mxu0 0
        %7940 = vmatpush1.bf16.msra.mxu0 0
        %7941 = vmatprep.subr.bf16.mxu0 %v7917
        %7942 = vmatpush1.bf16.msra.mxu0 %v7915
        %7943 = vmatprep.subr.bf16.mxu0 %v7884
        %7944 = vmatpush1.bf16.msra.mxu0 %v7881
        %7945 = vmatprep.subr.bf16.mxu0 %v7828
        %7946 = vmatpush1.bf16.msra.mxu0 %v7825
        %7947 = vmatprep.subr.bf16.mxu0 0
        %7948 = vmatpush2.bf16.msra.mxu0 0
        %7949 = vmatprep.subr.bf16.mxu0 0
        %7950 = vmatpush2.bf16.msra.mxu0 0
        %7951 = vmatprep.subr.bf16.mxu0 0
        %7952 = vmatpush2.bf16.msra.mxu0 0
        %7953 = vmatprep.subr.bf16.mxu0 0
        %7954 = vmatpush2.bf16.msra.mxu0 0
        %7955 = vmatprep.subr.bf16.mxu0 0
        %7956 = vmatpush2.bf16.msra.mxu0 0
        %7957 = vmatprep.subr.bf16.mxu0 0
        %7958 = vmatpush2.bf16.msra.mxu0 0
        %7959 = vmatprep.subr.bf16.mxu0 0
        %7960 = vmatpush2.bf16.msra.mxu0 0
        %7961 = vmatprep.subr.bf16.mxu0 0
        %7962 = vmatpush2.bf16.msra.mxu0 0
        %7963 = vmatprep.mubr.bf16.mxu0 0
        %7964 = vmatmul.mubr.bf16.gmra.mxu0 %v7913
        %v7965 = vpop.f32.mrf.mxu0
        %v7966 = vadd.f32 %v7909, %v7965
        %v7967 = vpop.f32.mrf.mxu0
        %v7968 = vadd.f32 %v7909, %v7967
        %v7969 = vpop.f32.mrf.mxu0
        %v7970 = vpop.f32.mrf.mxu0
        %7971 = vdwg.mxu0
        %7972 = vmatprep.subr.bf16.mxu0 0
        %7973 = vmatpush1.bf16.msra.mxu0 0
        %7974 = vmatprep.subr.bf16.mxu0 0
        %7975 = vmatpush1.bf16.msra.mxu0 0
        %7976 = vmatprep.subr.bf16.mxu0 0
        %7977 = vmatpush1.bf16.msra.mxu0 0
        %7978 = vmatprep.subr.bf16.mxu0 0
        %7979 = vmatpush1.bf16.msra.mxu0 0
        %7980 = vmatprep.subr.bf16.mxu0 0
        %7981 = vmatpush1.bf16.msra.mxu0 0
        %7982 = vmatprep.subr.bf16.mxu0 %v7921
        %7983 = vmatpush1.bf16.msra.mxu0 %v7919
        %7984 = vmatprep.subr.bf16.mxu0 %v7890
        %7985 = vmatpush1.bf16.msra.mxu0 %v7887
        %7986 = vmatprep.subr.bf16.mxu0 %v7834
        %7987 = vmatpush1.bf16.msra.mxu0 %v7831
        %7988 = vmatprep.subr.bf16.mxu0 0
        %7989 = vmatpush2.bf16.msra.mxu0 0
        %7990 = vmatprep.subr.bf16.mxu0 0
        %7991 = vmatpush2.bf16.msra.mxu0 0
        %7992 = vmatprep.subr.bf16.mxu0 0
        %7993 = vmatpush2.bf16.msra.mxu0 0
        %7994 = vmatprep.subr.bf16.mxu0 0
        %7995 = vmatpush2.bf16.msra.mxu0 0
        %7996 = vmatprep.subr.bf16.mxu0 0
        %7997 = vmatpush2.bf16.msra.mxu0 0
        %7998 = vmatprep.subr.bf16.mxu0 0
        %7999 = vmatpush2.bf16.msra.mxu0 0
        %8000 = vmatprep.subr.bf16.mxu0 0
        %8001 = vmatpush2.bf16.msra.mxu0 0
        %8002 = vmatprep.subr.bf16.mxu0 0
        %8003 = vmatpush2.bf16.msra.mxu0 0
        %8004 = vmatprep.mubr.bf16.mxu0 0
        %8005 = vmatmul.mubr.bf16.gmra.mxu0 %v7913
        %v8006 = vpop.f32.mrf.mxu0
        %v8007 = vadd.f32 %v7909, %v8006
        %v8008 = vpop.f32.mrf.mxu0
        %v8009 = vadd.f32 %v7909, %v8008
        %v8010 = vpop.f32.mrf.mxu0
        %v8011 = vpop.f32.mrf.mxu0
        %8012 = vdwg.mxu0
        %8013 = vmatprep.subr.bf16.mxu0 0
        %8014 = vmatpush1.bf16.msra.mxu0 0
        %8015 = vmatprep.subr.bf16.mxu0 0
        %8016 = vmatpush1.bf16.msra.mxu0 0
        %8017 = vmatprep.subr.bf16.mxu0 0
        %8018 = vmatpush1.bf16.msra.mxu0 0
        %8019 = vmatprep.subr.bf16.mxu0 0
        %8020 = vmatpush1.bf16.msra.mxu0 0
        %8021 = vmatprep.subr.bf16.mxu0 0
        %8022 = vmatpush1.bf16.msra.mxu0 0
        %8023 = vmatprep.subr.bf16.mxu0 %v7925
        %8024 = vmatpush1.bf16.msra.mxu0 %v7923
        %8025 = vmatprep.subr.bf16.mxu0 %v7896
        %8026 = vmatpush1.bf16.msra.mxu0 %v7893
        %8027 = vmatprep.subr.bf16.mxu0 %v7840
        %8028 = vmatpush1.bf16.msra.mxu0 %v7837
        %8029 = vmatprep.subr.bf16.mxu0 0
        %8030 = vmatpush2.bf16.msra.mxu0 0
        %8031 = vmatprep.subr.bf16.mxu0 0
        %8032 = vmatpush2.bf16.msra.mxu0 0
        %8033 = vmatprep.subr.bf16.mxu0 0
        %8034 = vmatpush2.bf16.msra.mxu0 0
        %8035 = vmatprep.subr.bf16.mxu0 0
        %8036 = vmatpush2.bf16.msra.mxu0 0
        %8037 = vmatprep.subr.bf16.mxu0 0
        %8038 = vmatpush2.bf16.msra.mxu0 0
        %8039 = vmatprep.subr.bf16.mxu0 0
        %8040 = vmatpush2.bf16.msra.mxu0 0
        %8041 = vmatprep.subr.bf16.mxu0 0
        %8042 = vmatpush2.bf16.msra.mxu0 0
        %8043 = vmatprep.subr.bf16.mxu0 0
        %8044 = vmatpush2.bf16.msra.mxu0 0
        %8045 = vmatprep.mubr.bf16.mxu0 0
        %8046 = vmatmul.mubr.bf16.gmra.mxu0 %v7913
        %v8047 = vpop.f32.mrf.mxu0
        %v8048 = vadd.f32 %v7909, %v8047
        %v8049 = vpop.f32.mrf.mxu0
        %v8050 = vadd.f32 %v7909, %v8049
        %v8051 = vpop.f32.mrf.mxu0
        %v8052 = vpop.f32.mrf.mxu0
        %8053 = vdwg.mxu0
        %8054 = vmatprep.subr.bf16.mxu0 0
        %8055 = vmatpush1.bf16.msra.mxu0 0
        %8056 = vmatprep.subr.bf16.mxu0 0
        %8057 = vmatpush1.bf16.msra.mxu0 0
        %8058 = vmatprep.subr.bf16.mxu0 0
        %8059 = vmatpush1.bf16.msra.mxu0 0
        %8060 = vmatprep.subr.bf16.mxu0 0
        %8061 = vmatpush1.bf16.msra.mxu0 0
        %8062 = vmatprep.subr.bf16.mxu0 0
        %8063 = vmatpush1.bf16.msra.mxu0 0
        %8064 = vmatprep.subr.bf16.mxu0 %v7929
        %8065 = vmatpush1.bf16.msra.mxu0 %v7927
        %8066 = vmatprep.subr.bf16.mxu0 %v7902
        %8067 = vmatpush1.bf16.msra.mxu0 %v7899
        %8068 = vmatprep.subr.bf16.mxu0 %v7846
        %8069 = vmatpush1.bf16.msra.mxu0 %v7843
        %8070 = vmatprep.subr.bf16.mxu0 0
        %8071 = vmatpush2.bf16.msra.mxu0 0
        %8072 = vmatprep.subr.bf16.mxu0 0
        %8073 = vmatpush2.bf16.msra.mxu0 0
        %8074 = vmatprep.subr.bf16.mxu0 0
        %8075 = vmatpush2.bf16.msra.mxu0 0
        %8076 = vmatprep.subr.bf16.mxu0 0
        %8077 = vmatpush2.bf16.msra.mxu0 0
        %8078 = vmatprep.subr.bf16.mxu0 0
        %8079 = vmatpush2.bf16.msra.mxu0 0
        %8080 = vmatprep.subr.bf16.mxu0 0
        %8081 = vmatpush2.bf16.msra.mxu0 0
        %8082 = vmatprep.subr.bf16.mxu0 0
        %8083 = vmatpush2.bf16.msra.mxu0 0
        %8084 = vmatprep.subr.bf16.mxu0 0
        %8085 = vmatpush2.bf16.msra.mxu0 0
        %8086 = vmatprep.mubr.bf16.mxu0 0
        %8087 = vmatmul.mubr.bf16.gmra.mxu0 %v7913
        %v8088 = vpop.f32.mrf.mxu0
        %v8089 = vadd.f32 %v7909, %v8088
        %v8090 = vpop.f32.mrf.mxu0
        %v8091 = vadd.f32 %v7909, %v8090
        %v8092 = vpop.f32.mrf.mxu0
        %v8093 = vpop.f32.mrf.mxu0
        %8094 = vdwg.mxu0
        %8095 = vst [vmem:[%s188] sm:$0xff] %v7966
        %8096 = vst [vmem:[%s188 + $0x8] sm:$0xff] %v7968
        %8097 = vst [vmem:[%s188 + $0x10] sm:$0xff] %v8007
        %8098 = vst [vmem:[%s188 + $0x18] sm:$0xff] %v8009
        %8099 = vst [vmem:[%s188 + $0x20] sm:$0xff] %v8048
        %8100 = vst [vmem:[%s188 + $0x28] sm:$0xff] %v8050
        %8101 = vst [vmem:[%s188 + $0x30] sm:$0xff] %v8089
        %8102 = vst [vmem:[%s188 + $0x38] sm:$0xff] %v8091
        %s8103 = sand.u32 %s96, 1
        %s8104 = scalar_lea.sflag [#allocation4], %s8103
        %s8105 = sand.u32 %s96, 1
        %s8106 = smul.addr %s8105, 64
        %s8107 = scalar_lea.vmem [#allocation5], %s8106
        // Predicated region
        $region37: #{tpu_custom_call.1} parent=31 // pred_check
          %p8108 = pneg %p106
        $region38: #{tpu_custom_call.1} parent=31 // pred_check_branch
          %8110 = sbr.rel (%p8108) target = $region40
        $region39: #{tpu_custom_call.1} parent=31 // pred_region
          %s8112 = ssub.s32 1024, 1024
          %8113 = vsyncadd %s8104, %s8112
          %s8114 = smul.addr %s20, 8
          %s8115 = smul.addr %s8114, 128
          %s8116 = scalar_lea.hbm %s3, %s8115
          %s8118 = sshll.u32 %s8107, 4
          %s8119 = int_to_ptr.vmem [resolvable:$true] %s8118
          %8121 = dma.vmem_to_hbm [thread:$0]  %s8119, 1024, %s8116, %s8104
        $region40: #{tpu_custom_call.1} parent=31 // pred_fallthru
          _
      $region32: #{tpu_custom_call.1} parent=5 // pred_fallthru
        _
      %p8122 = scmp.le.s32.totalorder 2, %s15
      // Predicated region
      $region41: #{tpu_custom_call.1} parent=5 // pred_check
        %p8123 = pneg %p8122
      $region42: #{tpu_custom_call.1} parent=5 // pred_check_branch
        %8125 = sbr.rel (%p8123) target = $region44
      $region43: #{tpu_custom_call.1} parent=5 // pred_region
        %s8126 = ssub.s32 %s15, 2
        // Predicated region
        $region45: #{tpu_custom_call.1} parent=43 // pred_check
          %p8127 = pneg %p112
        $region46: #{tpu_custom_call.1} parent=43 // pred_check_branch
          %8129 = sbr.rel (%p8127) target = $region48
        $region47: #{tpu_custom_call.1} parent=43 // pred_region
          %s8130 = sand.u32 %s97, 1
          %s8131 = scalar_lea.sflag [#allocation4], %s8130
          %s8132 = sand.u32 %s97, 1
          %s8133 = smul.addr %s8132, 64
          %s8134 = scalar_lea.vmem [#allocation5], %s8133
          %8135 = dma.done %s8131, 1024
        $region48: #{tpu_custom_call.1} parent=43 // pred_fallthru
          _
      $region44: #{tpu_custom_call.1} parent=5 // pred_fallthru
        _
    $region6: #{tpu_custom_call.1} parent=1 // loop_footer
      %s19 = sadd.s32 1, %s15
    $region7: #{tpu_custom_call.1} parent=1 // loop_footer_branch
      %14 = sbr.rel target = $region3
    $region8: #{tpu_custom_call.1} parent=1 // loop_exit
      _
    %8136 = vsyncpa [#allocation3], 1
    %s8137 = scalar_lea.sflag [#allocation3], 1
    %8138 = vsyncpa %s8137, 1
    %8139 = vsyncpa [#allocation4], 1
    %s8140 = scalar_lea.sflag [#allocation4], 1
    %8141 = vsyncpa %s8140, 1

</llo_original>
